<compile_context>
chip_gen: v7x
topology: tpu7x:2x2x1
jax: 0.10.0
libtpu: 0.0.40
codegen_flags: <defaults>
</compile_context>

<pallas_src>
from functools import partial

import numpy as np
import jax
import jax.numpy as jnp
from jax.experimental import pallas as pl
from jax.experimental.pallas import tpu as pltpu  # noqa: F401  (TPU backend)

# ---------------- configuration (cfg of the PyTorch module) ----------------
DIM = 32                    # cfg['dim']
N_HEADS = 4                 # cfg['n_heads']
HEAD_DIM = DIM // N_HEADS   # 8
NUM_LANDMARKS = 8           # cfg['num_landmarks']
PINV_ITERS = 6
SCALE = HEAD_DIM ** (-0.5)


# ============================================================================
# Fused forward kernel: qkv linear + Nystrom attention (block-diagonal heads)
#                       + Moore-Penrose pinv + proj linear
# ============================================================================
def _fused_kernel(x_ref, wq_ref, wk_ref, wv_ref, wp_ref, bp_ref,
                  p4_ref, hm_ref, b1_ref, b2_ref, b3_ref, eye_ref,
                  out_ref, attn_ref, *, n_heads, bn):
    def mm(a, b):
        return jnp.dot(a, b, preferred_element_type=jnp.float32)

    def mm_nt(a, b):     # a @ b.T (contract last dims) without materializing b.T
        return jax.lax.dot_general(
            a, b, dimension_numbers=(((1,), (1,)), ((), ())),
            preferred_element_type=jnp.float32)

    def softmax_rows(s, approx_recip):
        mx = jnp.max(s, axis=-1, keepdims=True)
        e = jnp.exp(s - mx)                       # invalid (-1e30) -> exact 0
        den = jnp.sum(e, axis=-1, keepdims=True)
        if approx_recip:
            return e * pl.reciprocal(den, approx=True)   # EUP slot, ~free
        return e / den

    x = x_ref[...]                                # (BN, C)
    q2 = mm(x, wq_ref[...])                       # (BN, C)  scale folded into wq
    k2 = mm(x, wk_ref[...])                       # (BN, C)
    v2 = mm(x, wv_ref[...])                       # (BN, C)

    hm = hm_ref[...]                              # (H*Bm, C) row-block h <-> lane-block h
    qlm = mm(p4_ref[...], q2) * hm                # (H*Bm, C) head-replicated, head-masked q landmarks
    klr = mm(p4_ref[...], k2) * hm                # (H*Bm, C) head-replicated, head-masked k landmarks

    q_rows = jnp.concatenate([q2] * n_heads, axis=0)   # (H*BN, C) head-replicated q

    # One matmul per similarity tensor.  Per-(head, batch) restriction is the
    # additive bias (0 valid / -1e30 invalid) -> row-wise softmaxes only.
    attn1 = softmax_rows(mm_nt(q_rows, klr) + b1_ref[...], approx_recip=True)   # (H*BN, H*Bm)
    attn2 = softmax_rows(mm_nt(qlm, klr) + b2_ref[...], approx_recip=False)     # (H*Bm, H*Bm)
    attn3 = softmax_rows(mm_nt(qlm, k2) + b3_ref[...], approx_recip=True)       # (H*Bm, BN)

    # ---- Moore-Penrose pinv: ONE block-diagonal Newton-Schulz chain ----
    # attn2 is exactly block-diagonal over (head, batch) (masked-softmax rows
    # underflow to exact zeros), so iterating the whole (H*Bm, H*Bm) matrix is
    # identical to the per-(b, h) reference iterations, and its row/col-sum
    # maxima equal torch's whole-tensor maxima (global shared denominator).
    absa = jnp.abs(attn2)
    inv_denom = 1.0 / (jnp.max(jnp.sum(absa, axis=-1, keepdims=True)) *
                       jnp.max(jnp.sum(absa, axis=-2, keepdims=True)))
    eye = eye_ref[...]
    z = jnp.transpose(attn2) * inv_denom
    for _ in range(PINV_ITERS):                   # f32 throughout (sensitive chain)
        xz = mm(attn2, z)
        t = 7.0 * eye - xz
        t = 15.0 * eye - mm(xz, t)
        t = 13.0 * eye - mm(xz, t)
        z = 0.25 * mm(z, t)

    # ---- post-pinv: 4 block-diagonal matmuls, no concatenates ----
    a1z = mm(attn1, z)                                       # (H*BN, H*Bm)
    attn_ref[...] = mm(a1z, attn3).astype(attn_ref.dtype)    # (H*BN, BN) attention map
    av = mm(attn3, v2) * hm                                  # (H*Bm, C) attn3 @ v, own-head lanes
    o_rows = mm(a1z, av)                                     # (H*BN, C) head h's out in row block h
    out2 = o_rows[0:bn]
    for h in range(1, n_heads):                              # head merge = 3 sublane adds
        out2 = out2 + o_rows[h * bn:(h + 1) * bn]

    # output projection (proj_drop has p = 0.0 -> identity, nothing to do)
    out_ref[...] = (mm(out2, wp_ref[...]) + bp_ref[...]).astype(out_ref.dtype)


# ============================================================================
# Tiny precomputed constants (pooling, head mask, softmax biases, identity)
# ============================================================================
def _build_constants(B, N, H, d, m):
    C = H * d
    BN, Bm, l = B * N, B * m, N // m
    NEG = -1e30

    row = np.arange(H * Bm)                       # landmark rows: (h, b, j)
    row_h, row_b, row_j = row // Bm, (row % Bm) // m, row % m
    tok = np.arange(BN)                           # tokens: (b, n)
    tok_b, tok_g = tok // N, (tok % N) // l
    qrow = np.arange(H * BN)                      # query rows: (h, b, n)
    qrow_h, qrow_b = qrow // BN, (qrow % BN) // N
    lane_h = np.arange(C) // d

    # Head-replicated landmark mean-pooling matrix (H*Bm, BN).
    P4 = ((row_b[:, None] == tok_b[None, :]) &
          (row_j[:, None] == tok_g[None, :])).astype(np.float32) / l
    # Head mask: landmark row block h keeps only head h's lanes (H*Bm, C).
    HM = (row_h[:, None] == lane_h[None, :]).astype(np.float32)
    # Additive softmax biases (0 on valid, NEG elsewhere).
    B1 = np.where((qrow_h[:, None] == row_h[None, :]) &
                  (qrow_b[:, None] == row_b[None, :]), 0.0, NEG).astype(np.float32)
    B2 = np.where((row_h[:, None] == row_h[None, :]) &
                  (row_b[:, None] == row_b[None, :]), 0.0, NEG).astype(np.float32)
    B3 = np.where(row_b[:, None] == tok_b[None, :], 0.0, NEG).astype(np.float32)
    EYE = np.eye(H * Bm, dtype=np.float32)

    return (jnp.asarray(P4), jnp.asarray(HM), jnp.asarray(B1),
            jnp.asarray(B2), jnp.asarray(B3), jnp.asarray(EYE))


# ============================================================================
# Wrapper: padding, one gridless pallas_call, cheap XLA reshapes of tiny outputs
# ============================================================================
def nystroformer_forward(x, params):
    B, N0, C = x.shape
    assert C == DIM
    H, d, m = N_HEADS, HEAD_DIM, NUM_LANDMARKS
    pad = (m - N0 % m) % m
    if pad:
        x = jnp.pad(x, ((0, 0), (pad, 0), (0, 0)))   # pad FRONT of N, like F.pad
    N = N0 + pad
    BN = B * N
    x2d = x.reshape(BN, C)

    # Fold the attention scale into the q columns of w_qkv and pre-split the
    # fused qkv weight so the kernel never lane-slices the qkv activation.
    w_qkv = params["w_qkv"]
    wq = w_qkv[:, 0:C] * SCALE
    wk = w_qkv[:, C:2 * C]
    wv = w_qkv[:, 2 * C:3 * C]

    P4, HM, B1, B2, B3, EYE = _build_constants(B, N, H, d, m)

    kernel = partial(_fused_kernel, n_heads=H, bn=BN)
    out2d, attn_all = pl.pallas_call(
        kernel,
        out_shape=(
            jax.ShapeDtypeStruct((BN, C), jnp.float32),
            jax.ShapeDtypeStruct((H * BN, BN), jnp.float32),
        ),
    )(x2d, wq, wk, wv, params["w_proj"], params["b_proj"].reshape(1, C),
      P4, HM, B1, B2, B3, EYE)

    # proj is row-wise -> projecting padded rows then slicing == reference order.
    out = out2d.reshape(B, N, C)[:, -N0:]

    # attn_all[h*B*N + b*N + i, b'*N + j] = attn[b, h, i, j] (cross-batch blocks are 0).
    attn_r = attn_all.reshape(H, B, N, B, N)
    attn = jnp.stack([attn_r[:, b, :, b, :] for b in range(B)], axis=0)  # (B, H, N, N)
    return out, attn


# ============================================================================
# Pure-JAX reference for correctness checking
# ============================================================================
def reference_forward(x, params):
    B, N0, C = x.shape
    m = NUM_LANDMARKS
    rem = N0 % m
    if rem > 0:
        x = jnp.pad(x, ((0, 0), (m - rem, 0), (0, 0)))
    B, N, C = x.shape
    qkv = x @ params["w_qkv"]                      # qkv_bias=False
    q, k, v = jnp.split(qkv, 3, axis=-1)

    def reh(t):
        return t.reshape(B, N, N_HEADS, HEAD_DIM).transpose(0, 2, 1, 3)

    q, k, v = reh(q), reh(k), reh(v)
    q = q * SCALE
    l = N // m
    q_land = q.reshape(B, N_HEADS, m, l, HEAD_DIM).sum(3) / l
    k_land = k.reshape(B, N_HEADS, m, l, HEAD_DIM).sum(3) / l
    sim1 = jnp.einsum("bhnd,bhmd->bhnm", q, k_land)
    sim2 = jnp.einsum("bhid,bhjd->bhij", q_land, k_land)
    sim3 = jnp.einsum("bhmd,bhnd->bhmn", q_land, k)
    attn1 = jax.nn.softmax(sim1, -1)
    attn2 = jax.nn.softmax(sim2, -1)
    attn3 = jax.nn.softmax(sim3, -1)
    absa = jnp.abs(attn2)
    z = jnp.swapaxes(attn2, -1, -2) / (absa.sum(-1).max() * absa.sum(-2).max())
    I = jnp.eye(m)
    for _ in range(PINV_ITERS):
        xz = attn2 @ z
        z = 0.25 * z @ (13 * I - xz @ (15 * I - xz @ (7 * I - xz)))
    attn = attn1 @ z @ attn3
    out = attn1 @ z @ (attn3 @ v)
    out = out.transpose(0, 2, 1, 3).reshape(B, N, C)
    out = out[:, -N0:]
    out = out @ params["w_proj"] + params["b_proj"]
    return out, attn


# ============================================================================
if __name__ == "__main__":
    key = jax.random.PRNGKey(0)
    k1, k2, k3, k4 = jax.random.split(key, 4)

    B, N0 = 2, 12  # N0 not a multiple of num_landmarks -> exercises padding path
    x = jax.random.normal(k1, (B, N0, DIM), dtype=jnp.float32)

    params = {
        "w_qkv": jax.random.normal(k2, (DIM, 3 * DIM), jnp.float32) * 0.02,
        "w_proj": jax.random.normal(k3, (DIM, DIM), jnp.float32) * 0.02,
        "b_proj": jax.random.normal(k4, (DIM,), jnp.float32) * 0.02,
    }

    out, attn = nystroformer_forward(x, params)
    out, attn = jax.block_until_ready((out, attn))

    ref_out, ref_attn = reference_forward(x, params)
    assert out.shape == (B, N0, DIM)
    assert attn.shape == (B, N_HEADS, 16, 16)
    assert jnp.allclose(out, ref_out, atol=2e-3, rtol=2e-3)
    assert jnp.allclose(attn, ref_attn, atol=2e-3, rtol=2e-3)

    print("KERNEL_OK")
</pallas_src>

<mosaic_0001>
module attributes {stable_mosaic.version = 11 : i64} {
  func.func @_fused_kernel(%arg0: memref<32x32xf32, #tpu.memory_space<vmem>>, %arg1: memref<32x32xf32, #tpu.memory_space<vmem>>, %arg2: memref<32x32xf32, #tpu.memory_space<vmem>>, %arg3: memref<32x32xf32, #tpu.memory_space<vmem>>, %arg4: memref<32x32xf32, #tpu.memory_space<vmem>>, %arg5: memref<1x32xf32, #tpu.memory_space<vmem>>, %arg6: memref<64x32xf32, #tpu.memory_space<vmem>>, %arg7: memref<64x32xf32, #tpu.memory_space<vmem>>, %arg8: memref<128x64xf32, #tpu.memory_space<vmem>>, %arg9: memref<64x64xf32, #tpu.memory_space<vmem>>, %arg10: memref<64x32xf32, #tpu.memory_space<vmem>>, %arg11: memref<64x64xf32, #tpu.memory_space<vmem>>, %arg12: memref<32x32xf32, #tpu.memory_space<vmem>>, %arg13: memref<128x32xf32, #tpu.memory_space<vmem>>) attributes {dimension_semantics = [], scalar_prefetch = 0 : i64, scratch_operands = 0 : i64, tpu.core_type = #tpu.core_type<tc>} {
    %c0 = arith.constant 0 : index
    %c0_0 = arith.constant 0 : index
    %0 = vector.load %arg0[%c0, %c0_0] : memref<32x32xf32, #tpu.memory_space<vmem>>, vector<32x32xf32>
    %c0_1 = arith.constant 0 : index
    %c0_2 = arith.constant 0 : index
    %1 = vector.load %arg1[%c0_1, %c0_2] : memref<32x32xf32, #tpu.memory_space<vmem>>, vector<32x32xf32>
    %cst = arith.constant dense<0.000000e+00> : vector<32x32xf32>
    %2 = tpu.matmul %0, %1, %cst {dimension_numbers = #tpu.dot_dimension_numbers<[1], [0], [0], [1], [0, 0, 1, 1], [], []>} : vector<32x32xf32>, vector<32x32xf32>, vector<32x32xf32> -> vector<32x32xf32>
    %c0_3 = arith.constant 0 : index
    %c0_4 = arith.constant 0 : index
    %3 = vector.load %arg2[%c0_3, %c0_4] : memref<32x32xf32, #tpu.memory_space<vmem>>, vector<32x32xf32>
    %cst_5 = arith.constant dense<0.000000e+00> : vector<32x32xf32>
    %4 = tpu.matmul %0, %3, %cst_5 {dimension_numbers = #tpu.dot_dimension_numbers<[1], [0], [0], [1], [0, 0, 1, 1], [], []>} : vector<32x32xf32>, vector<32x32xf32>, vector<32x32xf32> -> vector<32x32xf32>
    %c0_6 = arith.constant 0 : index
    %c0_7 = arith.constant 0 : index
    %5 = vector.load %arg3[%c0_6, %c0_7] : memref<32x32xf32, #tpu.memory_space<vmem>>, vector<32x32xf32>
    %cst_8 = arith.constant dense<0.000000e+00> : vector<32x32xf32>
    %6 = tpu.matmul %0, %5, %cst_8 {dimension_numbers = #tpu.dot_dimension_numbers<[1], [0], [0], [1], [0, 0, 1, 1], [], []>} : vector<32x32xf32>, vector<32x32xf32>, vector<32x32xf32> -> vector<32x32xf32>
    %c0_9 = arith.constant 0 : index
    %c0_10 = arith.constant 0 : index
    %7 = vector.load %arg7[%c0_9, %c0_10] : memref<64x32xf32, #tpu.memory_space<vmem>>, vector<64x32xf32>
    %c0_11 = arith.constant 0 : index
    %c0_12 = arith.constant 0 : index
    %8 = vector.load %arg6[%c0_11, %c0_12] : memref<64x32xf32, #tpu.memory_space<vmem>>, vector<64x32xf32>
    %cst_13 = arith.constant dense<0.000000e+00> : vector<64x32xf32>
    %9 = tpu.matmul %8, %2, %cst_13 {dimension_numbers = #tpu.dot_dimension_numbers<[1], [0], [0], [1], [0, 0, 1, 1], [], []>} : vector<64x32xf32>, vector<32x32xf32>, vector<64x32xf32> -> vector<64x32xf32>
    %10 = arith.mulf %9, %7 : vector<64x32xf32>
    %c0_14 = arith.constant 0 : index
    %c0_15 = arith.constant 0 : index
    %11 = vector.load %arg6[%c0_14, %c0_15] : memref<64x32xf32, #tpu.memory_space<vmem>>, vector<64x32xf32>
    %cst_16 = arith.constant dense<0.000000e+00> : vector<64x32xf32>
    %12 = tpu.matmul %11, %4, %cst_16 {dimension_numbers = #tpu.dot_dimension_numbers<[1], [0], [0], [1], [0, 0, 1, 1], [], []>} : vector<64x32xf32>, vector<32x32xf32>, vector<64x32xf32> -> vector<64x32xf32>
    %13 = arith.mulf %12, %7 : vector<64x32xf32>
    %14 = tpu.concatenate %2, %2, %2, %2 in 0 : vector<32x32xf32>, vector<32x32xf32>, vector<32x32xf32>, vector<32x32xf32> -> vector<128x32xf32>
    %cst_17 = arith.constant dense<0.000000e+00> : vector<128x64xf32>
    %15 = tpu.matmul %14, %13, %cst_17 {dimension_numbers = #tpu.dot_dimension_numbers<[1], [1], [0], [0], [0, 0, 1, 0], [], []>} : vector<128x32xf32>, vector<64x32xf32>, vector<128x64xf32> -> vector<128x64xf32>
    %c0_18 = arith.constant 0 : index
    %c0_19 = arith.constant 0 : index
    %16 = vector.load %arg8[%c0_18, %c0_19] : memref<128x64xf32, #tpu.memory_space<vmem>>, vector<128x64xf32>
    %17 = arith.addf %15, %16 : vector<128x64xf32>
    %cst_20 = arith.constant dense<0xFF800000> : vector<128xf32>
    %18 = vector.multi_reduction <maximumf>, %17, %cst_20 [1] : vector<128x64xf32> to vector<128xf32>
    %19 = vector.shape_cast %18 : vector<128xf32> to vector<128x1xf32>
    %20 = vector.broadcast %19 : vector<128x1xf32> to vector<128x64xf32>
    %21 = arith.subf %17, %20 : vector<128x64xf32>
    %22 = math.exp %21 : vector<128x64xf32>
    %cst_21 = arith.constant dense<0.000000e+00> : vector<128xf32>
    %23 = vector.multi_reduction <add>, %22, %cst_21 [1] : vector<128x64xf32> to vector<128xf32>
    %24 = vector.shape_cast %23 : vector<128xf32> to vector<128x1xf32>
    %25 = tpu.reciprocal %24 {approx = true} : vector<128x1xf32> -> vector<128x1xf32>
    %26 = vector.broadcast %25 : vector<128x1xf32> to vector<128x64xf32>
    %27 = arith.mulf %22, %26 : vector<128x64xf32>
    %cst_22 = arith.constant dense<0.000000e+00> : vector<64x64xf32>
    %28 = tpu.matmul %10, %13, %cst_22 {dimension_numbers = #tpu.dot_dimension_numbers<[1], [1], [0], [0], [0, 0, 1, 0], [], []>} : vector<64x32xf32>, vector<64x32xf32>, vector<64x64xf32> -> vector<64x64xf32>
    %c0_23 = arith.constant 0 : index
    %c0_24 = arith.constant 0 : index
    %29 = vector.load %arg9[%c0_23, %c0_24] : memref<64x64xf32, #tpu.memory_space<vmem>>, vector<64x64xf32>
    %30 = arith.addf %28, %29 : vector<64x64xf32>
    %cst_25 = arith.constant dense<0xFF800000> : vector<64xf32>
    %31 = vector.multi_reduction <maximumf>, %30, %cst_25 [1] : vector<64x64xf32> to vector<64xf32>
    %32 = vector.shape_cast %31 : vector<64xf32> to vector<64x1xf32>
    %33 = vector.broadcast %32 : vector<64x1xf32> to vector<64x64xf32>
    %34 = arith.subf %30, %33 : vector<64x64xf32>
    %35 = math.exp %34 : vector<64x64xf32>
    %cst_26 = arith.constant dense<0.000000e+00> : vector<64xf32>
    %36 = vector.multi_reduction <add>, %35, %cst_26 [1] : vector<64x64xf32> to vector<64xf32>
    %37 = vector.shape_cast %36 : vector<64xf32> to vector<64x1xf32>
    %38 = vector.broadcast %37 : vector<64x1xf32> to vector<64x64xf32>
    %39 = arith.divf %35, %38 : vector<64x64xf32>
    %cst_27 = arith.constant dense<0.000000e+00> : vector<64x32xf32>
    %40 = tpu.matmul %10, %4, %cst_27 {dimension_numbers = #tpu.dot_dimension_numbers<[1], [1], [0], [0], [0, 0, 1, 0], [], []>} : vector<64x32xf32>, vector<32x32xf32>, vector<64x32xf32> -> vector<64x32xf32>
    %c0_28 = arith.constant 0 : index
    %c0_29 = arith.constant 0 : index
    %41 = vector.load %arg10[%c0_28, %c0_29] : memref<64x32xf32, #tpu.memory_space<vmem>>, vector<64x32xf32>
    %42 = arith.addf %40, %41 : vector<64x32xf32>
    %cst_30 = arith.constant dense<0xFF800000> : vector<64xf32>
    %43 = vector.multi_reduction <maximumf>, %42, %cst_30 [1] : vector<64x32xf32> to vector<64xf32>
    %44 = vector.shape_cast %43 : vector<64xf32> to vector<64x1xf32>
    %45 = vector.broadcast %44 : vector<64x1xf32> to vector<64x32xf32>
    %46 = arith.subf %42, %45 : vector<64x32xf32>
    %47 = math.exp %46 : vector<64x32xf32>
    %cst_31 = arith.constant dense<0.000000e+00> : vector<64xf32>
    %48 = vector.multi_reduction <add>, %47, %cst_31 [1] : vector<64x32xf32> to vector<64xf32>
    %49 = vector.shape_cast %48 : vector<64xf32> to vector<64x1xf32>
    %50 = tpu.reciprocal %49 {approx = true} : vector<64x1xf32> -> vector<64x1xf32>
    %51 = vector.broadcast %50 : vector<64x1xf32> to vector<64x32xf32>
    %52 = arith.mulf %47, %51 : vector<64x32xf32>
    %53 = math.absf %39 : vector<64x64xf32>
    %cst_32 = arith.constant dense<0.000000e+00> : vector<64xf32>
    %54 = vector.multi_reduction <add>, %53, %cst_32 [1] : vector<64x64xf32> to vector<64xf32>
    %55 = vector.shape_cast %54 : vector<64xf32> to vector<64x1xf32>
    %56 = vector.shape_cast %55 : vector<64x1xf32> to vector<1x64x1xf32>
    %cst_33 = arith.constant dense<0xFF800000> : vector<1xf32>
    %57 = vector.multi_reduction <maximumf>, %56, %cst_33 [1, 2] : vector<1x64x1xf32> to vector<1xf32>
    %58 = vector.shape_cast %57 : vector<1xf32> to vector<1x1x1xf32>
    %59 = vector.extract %58[0, 0, 0] : f32 from vector<1x1x1xf32>
    %cst_34 = arith.constant dense<0.000000e+00> : vector<64xf32>
    %60 = vector.multi_reduction <add>, %53, %cst_34 [0] : vector<64x64xf32> to vector<64xf32>
    %61 = vector.shape_cast %60 : vector<64xf32> to vector<1x64xf32>
    %62 = vector.shape_cast %61 : vector<1x64xf32> to vector<1x1x64xf32>
    %cst_35 = arith.constant dense<0xFF800000> : vector<1xf32>
    %63 = vector.multi_reduction <maximumf>, %62, %cst_35 [1, 2] : vector<1x1x64xf32> to vector<1xf32>
    %64 = vector.shape_cast %63 : vector<1xf32> to vector<1x1x1xf32>
    %65 = vector.extract %64[0, 0, 0] : f32 from vector<1x1x1xf32>
    %66 = arith.mulf %59, %65 : f32
    %cst_36 = arith.constant 1.000000e+00 : f32
    %67 = arith.divf %cst_36, %66 : f32
    %c0_37 = arith.constant 0 : index
    %c0_38 = arith.constant 0 : index
    %68 = vector.load %arg11[%c0_37, %c0_38] : memref<64x64xf32, #tpu.memory_space<vmem>>, vector<64x64xf32>
    %69 = tpu.transpose %39, [1, 0] : vector<64x64xf32> -> vector<64x64xf32>
    %70 = vector.broadcast %67 : f32 to vector<64x64xf32>
    %71 = arith.mulf %69, %70 : vector<64x64xf32>
    %cst_39 = arith.constant dense<0.000000e+00> : vector<64x64xf32>
    %72 = tpu.matmul %39, %71, %cst_39 {dimension_numbers = #tpu.dot_dimension_numbers<[1], [0], [0], [1], [0, 0, 1, 1], [], []>} : vector<64x64xf32>, vector<64x64xf32>, vector<64x64xf32> -> vector<64x64xf32>
    %cst_40 = arith.constant 7.000000e+00 : f32
    %73 = vector.broadcast %cst_40 : f32 to vector<64x64xf32>
    %74 = arith.mulf %73, %68 : vector<64x64xf32>
    %75 = arith.subf %74, %72 : vector<64x64xf32>
    %cst_41 = arith.constant 1.500000e+01 : f32
    %76 = vector.broadcast %cst_41 : f32 to vector<64x64xf32>
    %77 = arith.mulf %76, %68 : vector<64x64xf32>
    %cst_42 = arith.constant dense<0.000000e+00> : vector<64x64xf32>
    %78 = tpu.matmul %72, %75, %cst_42 {dimension_numbers = #tpu.dot_dimension_numbers<[1], [0], [0], [1], [0, 0, 1, 1], [], []>} : vector<64x64xf32>, vector<64x64xf32>, vector<64x64xf32> -> vector<64x64xf32>
    %79 = arith.subf %77, %78 : vector<64x64xf32>
    %cst_43 = arith.constant 1.300000e+01 : f32
    %80 = vector.broadcast %cst_43 : f32 to vector<64x64xf32>
    %81 = arith.mulf %80, %68 : vector<64x64xf32>
    %cst_44 = arith.constant dense<0.000000e+00> : vector<64x64xf32>
    %82 = tpu.matmul %72, %79, %cst_44 {dimension_numbers = #tpu.dot_dimension_numbers<[1], [0], [0], [1], [0, 0, 1, 1], [], []>} : vector<64x64xf32>, vector<64x64xf32>, vector<64x64xf32> -> vector<64x64xf32>
    %83 = arith.subf %81, %82 : vector<64x64xf32>
    %cst_45 = arith.constant dense<0.000000e+00> : vector<64x64xf32>
    %84 = tpu.matmul %71, %83, %cst_45 {dimension_numbers = #tpu.dot_dimension_numbers<[1], [0], [0], [1], [0, 0, 1, 1], [], []>} : vector<64x64xf32>, vector<64x64xf32>, vector<64x64xf32> -> vector<64x64xf32>
    %cst_46 = arith.constant 2.500000e-01 : f32
    %85 = vector.broadcast %cst_46 : f32 to vector<64x64xf32>
    %86 = arith.mulf %85, %84 : vector<64x64xf32>
    %cst_47 = arith.constant dense<0.000000e+00> : vector<64x64xf32>
    %87 = tpu.matmul %39, %86, %cst_47 {dimension_numbers = #tpu.dot_dimension_numbers<[1], [0], [0], [1], [0, 0, 1, 1], [], []>} : vector<64x64xf32>, vector<64x64xf32>, vector<64x64xf32> -> vector<64x64xf32>
    %cst_48 = arith.constant 7.000000e+00 : f32
    %88 = vector.broadcast %cst_48 : f32 to vector<64x64xf32>
    %89 = arith.mulf %88, %68 : vector<64x64xf32>
    %90 = arith.subf %89, %87 : vector<64x64xf32>
    %cst_49 = arith.constant 1.500000e+01 : f32
    %91 = vector.broadcast %cst_49 : f32 to vector<64x64xf32>
    %92 = arith.mulf %91, %68 : vector<64x64xf32>
    %cst_50 = arith.constant dense<0.000000e+00> : vector<64x64xf32>
    %93 = tpu.matmul %87, %90, %cst_50 {dimension_numbers = #tpu.dot_dimension_numbers<[1], [0], [0], [1], [0, 0, 1, 1], [], []>} : vector<64x64xf32>, vector<64x64xf32>, vector<64x64xf32> -> vector<64x64xf32>
    %94 = arith.subf %92, %93 : vector<64x64xf32>
    %cst_51 = arith.constant 1.300000e+01 : f32
    %95 = vector.broadcast %cst_51 : f32 to vector<64x64xf32>
    %96 = arith.mulf %95, %68 : vector<64x64xf32>
    %cst_52 = arith.constant dense<0.000000e+00> : vector<64x64xf32>
    %97 = tpu.matmul %87, %94, %cst_52 {dimension_numbers = #tpu.dot_dimension_numbers<[1], [0], [0], [1], [0, 0, 1, 1], [], []>} : vector<64x64xf32>, vector<64x64xf32>, vector<64x64xf32> -> vector<64x64xf32>
    %98 = arith.subf %96, %97 : vector<64x64xf32>
    %cst_53 = arith.constant dense<0.000000e+00> : vector<64x64xf32>
    %99 = tpu.matmul %86, %98, %cst_53 {dimension_numbers = #tpu.dot_dimension_numbers<[1], [0], [0], [1], [0, 0, 1, 1], [], []>} : vector<64x64xf32>, vector<64x64xf32>, vector<64x64xf32> -> vector<64x64xf32>
    %cst_54 = arith.constant 2.500000e-01 : f32
    %100 = vector.broadcast %cst_54 : f32 to vector<64x64xf32>
    %101 = arith.mulf %100, %99 : vector<64x64xf32>
    %cst_55 = arith.constant dense<0.000000e+00> : vector<64x64xf32>
    %102 = tpu.matmul %39, %101, %cst_55 {dimension_numbers = #tpu.dot_dimension_numbers<[1], [0], [0], [1], [0, 0, 1, 1], [], []>} : vector<64x64xf32>, vector<64x64xf32>, vector<64x64xf32> -> vector<64x64xf32>
    %cst_56 = arith.constant 7.000000e+00 : f32
    %103 = vector.broadcast %cst_56 : f32 to vector<64x64xf32>
    %104 = arith.mulf %103, %68 : vector<64x64xf32>
    %105 = arith.subf %104, %102 : vector<64x64xf32>
    %cst_57 = arith.constant 1.500000e+01 : f32
    %106 = vector.broadcast %cst_57 : f32 to vector<64x64xf32>
    %107 = arith.mulf %106, %68 : vector<64x64xf32>
    %cst_58 = arith.constant dense<0.000000e+00> : vector<64x64xf32>
    %108 = tpu.matmul %102, %105, %cst_58 {dimension_numbers = #tpu.dot_dimension_numbers<[1], [0], [0], [1], [0, 0, 1, 1], [], []>} : vector<64x64xf32>, vector<64x64xf32>, vector<64x64xf32> -> vector<64x64xf32>
    %109 = arith.subf %107, %108 : vector<64x64xf32>
    %cst_59 = arith.constant 1.300000e+01 : f32
    %110 = vector.broadcast %cst_59 : f32 to vector<64x64xf32>
    %111 = arith.mulf %110, %68 : vector<64x64xf32>
    %cst_60 = arith.constant dense<0.000000e+00> : vector<64x64xf32>
    %112 = tpu.matmul %102, %109, %cst_60 {dimension_numbers = #tpu.dot_dimension_numbers<[1], [0], [0], [1], [0, 0, 1, 1], [], []>} : vector<64x64xf32>, vector<64x64xf32>, vector<64x64xf32> -> vector<64x64xf32>
    %113 = arith.subf %111, %112 : vector<64x64xf32>
    %cst_61 = arith.constant dense<0.000000e+00> : vector<64x64xf32>
    %114 = tpu.matmul %101, %113, %cst_61 {dimension_numbers = #tpu.dot_dimension_numbers<[1], [0], [0], [1], [0, 0, 1, 1], [], []>} : vector<64x64xf32>, vector<64x64xf32>, vector<64x64xf32> -> vector<64x64xf32>
    %cst_62 = arith.constant 2.500000e-01 : f32
    %115 = vector.broadcast %cst_62 : f32 to vector<64x64xf32>
    %116 = arith.mulf %115, %114 : vector<64x64xf32>
    %cst_63 = arith.constant dense<0.000000e+00> : vector<64x64xf32>
    %117 = tpu.matmul %39, %116, %cst_63 {dimension_numbers = #tpu.dot_dimension_numbers<[1], [0], [0], [1], [0, 0, 1, 1], [], []>} : vector<64x64xf32>, vector<64x64xf32>, vector<64x64xf32> -> vector<64x64xf32>
    %cst_64 = arith.constant 7.000000e+00 : f32
    %118 = vector.broadcast %cst_64 : f32 to vector<64x64xf32>
    %119 = arith.mulf %118, %68 : vector<64x64xf32>
    %120 = arith.subf %119, %117 : vector<64x64xf32>
    %cst_65 = arith.constant 1.500000e+01 : f32
    %121 = vector.broadcast %cst_65 : f32 to vector<64x64xf32>
    %122 = arith.mulf %121, %68 : vector<64x64xf32>
    %cst_66 = arith.constant dense<0.000000e+00> : vector<64x64xf32>
    %123 = tpu.matmul %117, %120, %cst_66 {dimension_numbers = #tpu.dot_dimension_numbers<[1], [0], [0], [1], [0, 0, 1, 1], [], []>} : vector<64x64xf32>, vector<64x64xf32>, vector<64x64xf32> -> vector<64x64xf32>
    %124 = arith.subf %122, %123 : vector<64x64xf32>
    %cst_67 = arith.constant 1.300000e+01 : f32
    %125 = vector.broadcast %cst_67 : f32 to vector<64x64xf32>
    %126 = arith.mulf %125, %68 : vector<64x64xf32>
    %cst_68 = arith.constant dense<0.000000e+00> : vector<64x64xf32>
    %127 = tpu.matmul %117, %124, %cst_68 {dimension_numbers = #tpu.dot_dimension_numbers<[1], [0], [0], [1], [0, 0, 1, 1], [], []>} : vector<64x64xf32>, vector<64x64xf32>, vector<64x64xf32> -> vector<64x64xf32>
    %128 = arith.subf %126, %127 : vector<64x64xf32>
    %cst_69 = arith.constant dense<0.000000e+00> : vector<64x64xf32>
    %129 = tpu.matmul %116, %128, %cst_69 {dimension_numbers = #tpu.dot_dimension_numbers<[1], [0], [0], [1], [0, 0, 1, 1], [], []>} : vector<64x64xf32>, vector<64x64xf32>, vector<64x64xf32> -> vector<64x64xf32>
    %cst_70 = arith.constant 2.500000e-01 : f32
    %130 = vector.broadcast %cst_70 : f32 to vector<64x64xf32>
    %131 = arith.mulf %130, %129 : vector<64x64xf32>
    %cst_71 = arith.constant dense<0.000000e+00> : vector<64x64xf32>
    %132 = tpu.matmul %39, %131, %cst_71 {dimension_numbers = #tpu.dot_dimension_numbers<[1], [0], [0], [1], [0, 0, 1, 1], [], []>} : vector<64x64xf32>, vector<64x64xf32>, vector<64x64xf32> -> vector<64x64xf32>
    %cst_72 = arith.constant 7.000000e+00 : f32
    %133 = vector.broadcast %cst_72 : f32 to vector<64x64xf32>
    %134 = arith.mulf %133, %68 : vector<64x64xf32>
    %135 = arith.subf %134, %132 : vector<64x64xf32>
    %cst_73 = arith.constant 1.500000e+01 : f32
    %136 = vector.broadcast %cst_73 : f32 to vector<64x64xf32>
    %137 = arith.mulf %136, %68 : vector<64x64xf32>
    %cst_74 = arith.constant dense<0.000000e+00> : vector<64x64xf32>
    %138 = tpu.matmul %132, %135, %cst_74 {dimension_numbers = #tpu.dot_dimension_numbers<[1], [0], [0], [1], [0, 0, 1, 1], [], []>} : vector<64x64xf32>, vector<64x64xf32>, vector<64x64xf32> -> vector<64x64xf32>
    %139 = arith.subf %137, %138 : vector<64x64xf32>
    %cst_75 = arith.constant 1.300000e+01 : f32
    %140 = vector.broadcast %cst_75 : f32 to vector<64x64xf32>
    %141 = arith.mulf %140, %68 : vector<64x64xf32>
    %cst_76 = arith.constant dense<0.000000e+00> : vector<64x64xf32>
    %142 = tpu.matmul %132, %139, %cst_76 {dimension_numbers = #tpu.dot_dimension_numbers<[1], [0], [0], [1], [0, 0, 1, 1], [], []>} : vector<64x64xf32>, vector<64x64xf32>, vector<64x64xf32> -> vector<64x64xf32>
    %143 = arith.subf %141, %142 : vector<64x64xf32>
    %cst_77 = arith.constant dense<0.000000e+00> : vector<64x64xf32>
    %144 = tpu.matmul %131, %143, %cst_77 {dimension_numbers = #tpu.dot_dimension_numbers<[1], [0], [0], [1], [0, 0, 1, 1], [], []>} : vector<64x64xf32>, vector<64x64xf32>, vector<64x64xf32> -> vector<64x64xf32>
    %cst_78 = arith.constant 2.500000e-01 : f32
    %145 = vector.broadcast %cst_78 : f32 to vector<64x64xf32>
    %146 = arith.mulf %145, %144 : vector<64x64xf32>
    %cst_79 = arith.constant dense<0.000000e+00> : vector<64x64xf32>
    %147 = tpu.matmul %39, %146, %cst_79 {dimension_numbers = #tpu.dot_dimension_numbers<[1], [0], [0], [1], [0, 0, 1, 1], [], []>} : vector<64x64xf32>, vector<64x64xf32>, vector<64x64xf32> -> vector<64x64xf32>
    %cst_80 = arith.constant 7.000000e+00 : f32
    %148 = vector.broadcast %cst_80 : f32 to vector<64x64xf32>
    %149 = arith.mulf %148, %68 : vector<64x64xf32>
    %150 = arith.subf %149, %147 : vector<64x64xf32>
    %cst_81 = arith.constant 1.500000e+01 : f32
    %151 = vector.broadcast %cst_81 : f32 to vector<64x64xf32>
    %152 = arith.mulf %151, %68 : vector<64x64xf32>
    %cst_82 = arith.constant dense<0.000000e+00> : vector<64x64xf32>
    %153 = tpu.matmul %147, %150, %cst_82 {dimension_numbers = #tpu.dot_dimension_numbers<[1], [0], [0], [1], [0, 0, 1, 1], [], []>} : vector<64x64xf32>, vector<64x64xf32>, vector<64x64xf32> -> vector<64x64xf32>
    %154 = arith.subf %152, %153 : vector<64x64xf32>
    %cst_83 = arith.constant 1.300000e+01 : f32
    %155 = vector.broadcast %cst_83 : f32 to vector<64x64xf32>
    %156 = arith.mulf %155, %68 : vector<64x64xf32>
    %cst_84 = arith.constant dense<0.000000e+00> : vector<64x64xf32>
    %157 = tpu.matmul %147, %154, %cst_84 {dimension_numbers = #tpu.dot_dimension_numbers<[1], [0], [0], [1], [0, 0, 1, 1], [], []>} : vector<64x64xf32>, vector<64x64xf32>, vector<64x64xf32> -> vector<64x64xf32>
    %158 = arith.subf %156, %157 : vector<64x64xf32>
    %cst_85 = arith.constant dense<0.000000e+00> : vector<64x64xf32>
    %159 = tpu.matmul %146, %158, %cst_85 {dimension_numbers = #tpu.dot_dimension_numbers<[1], [0], [0], [1], [0, 0, 1, 1], [], []>} : vector<64x64xf32>, vector<64x64xf32>, vector<64x64xf32> -> vector<64x64xf32>
    %cst_86 = arith.constant 2.500000e-01 : f32
    %160 = vector.broadcast %cst_86 : f32 to vector<64x64xf32>
    %161 = arith.mulf %160, %159 : vector<64x64xf32>
    %cst_87 = arith.constant dense<0.000000e+00> : vector<128x64xf32>
    %162 = tpu.matmul %27, %161, %cst_87 {dimension_numbers = #tpu.dot_dimension_numbers<[1], [0], [0], [1], [0, 0, 1, 1], [], []>} : vector<128x64xf32>, vector<64x64xf32>, vector<128x64xf32> -> vector<128x64xf32>
    %cst_88 = arith.constant dense<0.000000e+00> : vector<128x32xf32>
    %163 = tpu.matmul %162, %52, %cst_88 {dimension_numbers = #tpu.dot_dimension_numbers<[1], [0], [0], [1], [0, 0, 1, 1], [], []>} : vector<128x64xf32>, vector<64x32xf32>, vector<128x32xf32> -> vector<128x32xf32>
    %c0_89 = arith.constant 0 : index
    %c0_90 = arith.constant 0 : index
    %164 = vector.load %arg13[%c0_89, %c0_90] : memref<128x32xf32, #tpu.memory_space<vmem>>, vector<128x32xf32>
    tpu.vector_store %arg13[%c0_89, %c0_90], %163 {strides = array<i32>} : memref<128x32xf32, #tpu.memory_space<vmem>>, vector<128x32xf32>,
    %cst_91 = arith.constant dense<0.000000e+00> : vector<64x32xf32>
    %165 = tpu.matmul %52, %6, %cst_91 {dimension_numbers = #tpu.dot_dimension_numbers<[1], [0], [0], [1], [0, 0, 1, 1], [], []>} : vector<64x32xf32>, vector<32x32xf32>, vector<64x32xf32> -> vector<64x32xf32>
    %166 = arith.mulf %165, %7 : vector<64x32xf32>
    %cst_92 = arith.constant dense<0.000000e+00> : vector<128x32xf32>
    %167 = tpu.matmul %162, %166, %cst_92 {dimension_numbers = #tpu.dot_dimension_numbers<[1], [0], [0], [1], [0, 0, 1, 1], [], []>} : vector<128x64xf32>, vector<64x32xf32>, vector<128x32xf32> -> vector<128x32xf32>
    %168 = vector.extract_strided_slice %167 {offsets = [0, 0], sizes = [32, 32], strides = [1, 1]} : vector<128x32xf32> to vector<32x32xf32>
    %169 = vector.extract_strided_slice %167 {offsets = [32, 0], sizes = [32, 32], strides = [1, 1]} : vector<128x32xf32> to vector<32x32xf32>
    %170 = arith.addf %168, %169 : vector<32x32xf32>
    %171 = vector.extract_strided_slice %167 {offsets = [64, 0], sizes = [32, 32], strides = [1, 1]} : vector<128x32xf32> to vector<32x32xf32>
    %172 = arith.addf %170, %171 : vector<32x32xf32>
    %173 = vector.extract_strided_slice %167 {offsets = [96, 0], sizes = [32, 32], strides = [1, 1]} : vector<128x32xf32> to vector<32x32xf32>
    %174 = arith.addf %172, %173 : vector<32x32xf32>
    %c0_93 = arith.constant 0 : index
    %c0_94 = arith.constant 0 : index
    %175 = vector.load %arg4[%c0_93, %c0_94] : memref<32x32xf32, #tpu.memory_space<vmem>>, vector<32x32xf32>
    %cst_95 = arith.constant dense<0.000000e+00> : vector<32x32xf32>
    %176 = tpu.matmul %174, %175, %cst_95 {dimension_numbers = #tpu.dot_dimension_numbers<[1], [0], [0], [1], [0, 0, 1, 1], [], []>} : vector<32x32xf32>, vector<32x32xf32>, vector<32x32xf32> -> vector<32x32xf32>
    %c0_96 = arith.constant 0 : index
    %c0_97 = arith.constant 0 : index
    %177 = vector.load %arg5[%c0_96, %c0_97] : memref<1x32xf32, #tpu.memory_space<vmem>>, vector<1x32xf32>
    %178 = vector.broadcast %177 : vector<1x32xf32> to vector<32x32xf32>
    %179 = arith.addf %176, %178 : vector<32x32xf32>
    %c0_98 = arith.constant 0 : index
    %c0_99 = arith.constant 0 : index
    %180 = vector.load %arg12[%c0_98, %c0_99] : memref<32x32xf32, #tpu.memory_space<vmem>>, vector<32x32xf32>
    tpu.vector_store %arg12[%c0_98, %c0_99], %179 {strides = array<i32>} : memref<32x32xf32, #tpu.memory_space<vmem>>, vector<32x32xf32>,
    return
  }
}

</mosaic_0001>

<llo_original>
// kernel: tpu_custom_call.1
$region0: #{tpu_custom_call.1}
  #allocation0 [shape = 'u32[]', space=smem, size = 0x4, offset = 0x4, fixed_abs, tag = 'smem constant byte address 0x4 - core index']
  #allocation1 [shape = 'u32[144,128]{1,0:T(1,128)}', space=vmem, size = 0x12000, scoped, tag = 'internal scratch']
  %s0 = inlined_call_operand.vmem [shape: f32[32,32], index: 0, kind: input, shape index: {}]
  %s1 = inlined_call_operand.vmem [shape: f32[32,32], index: 1, kind: input, shape index: {}]
  %s2 = inlined_call_operand.vmem [shape: f32[32,32], index: 2, kind: input, shape index: {}]
  %s3 = inlined_call_operand.vmem [shape: f32[32,32], index: 3, kind: input, shape index: {}]
  %s4 = inlined_call_operand.vmem [shape: f32[32,32], index: 4, kind: input, shape index: {}]
  %s5 = inlined_call_operand.vmem [shape: f32[1,32], index: 5, kind: input, shape index: {}]
  %s6 = inlined_call_operand.vmem [shape: f32[64,32], index: 6, kind: input, shape index: {}]
  %s7 = inlined_call_operand.vmem [shape: f32[64,32], index: 7, kind: input, shape index: {}]
  %s8 = inlined_call_operand.vmem [shape: f32[128,64], index: 8, kind: input, shape index: {}]
  %s9 = inlined_call_operand.vmem [shape: f32[64,64], index: 9, kind: input, shape index: {}]
  %s10 = inlined_call_operand.vmem [shape: f32[64,32], index: 10, kind: input, shape index: {}]
  %s11 = inlined_call_operand.vmem [shape: f32[64,64], index: 11, kind: input, shape index: {}]
  %s12 = inlined_call_operand.hbm [shape: f32[32,32], index: 12, kind: output, shape index: {0}]
  %s13 = inlined_call_operand.vmem [shape: f32[128,32], index: 13, kind: output, shape index: {1}]
  %14 = xla_tuple %s12, %s13
  %s15 = sld [smem:[#allocation0]]
  $region66: #{tpu_custom_call.1} parent=0
    _
  %s17 = ssub.s32 1, %s15
  %s18 = scalar_select 0, %s17, %s15
  $region1: #{tpu_custom_call.1} parent=0
    #allocation2 [shape = 'u8[16384]{0}', space=vmem, size = 0x4000, scoped, tag = 'output window, operand 0, single buffered']
    #allocation3 [shape = 's32[1]{0}', space=sflag, size = 0x4, scoped, tag = 'scoped memory for tpu_custom_call.1']
    %19 = vsyncpa [#allocation3], 0
    // Predicated region
    $region2: #{tpu_custom_call.1} parent=1 // pred_check
      _
    $region3: #{tpu_custom_call.1} parent=1 // pred_check_branch
      %21 = sbr.rel (0) target = $region5
    $region4: #{tpu_custom_call.1} parent=1 // pred_region
      _
    $region5: #{tpu_custom_call.1} parent=1 // pred_fallthru
      _
    // Predicated region
    $region6: #{tpu_custom_call.1} parent=1 // pred_check
      _
    $region7: #{tpu_custom_call.1} parent=1 // pred_check_branch
      %23 = sbr.rel (0) target = $region9
    $region8: #{tpu_custom_call.1} parent=1 // pred_region
      _
    $region9: #{tpu_custom_call.1} parent=1 // pred_fallthru
      _
    // Predicated region
    $region10: #{tpu_custom_call.1} parent=1 // pred_check
      _
    $region11: #{tpu_custom_call.1} parent=1 // pred_check_branch
      %25 = sbr.rel (0) target = $region13
    $region12: #{tpu_custom_call.1} parent=1 // pred_region
      _
    $region13: #{tpu_custom_call.1} parent=1 // pred_fallthru
      _
    // Predicated region
    $region14: #{tpu_custom_call.1} parent=1 // pred_check
      _
    $region15: #{tpu_custom_call.1} parent=1 // pred_check_branch
      %27 = sbr.rel (0) target = $region17
    $region16: #{tpu_custom_call.1} parent=1 // pred_region
      _
    $region17: #{tpu_custom_call.1} parent=1 // pred_fallthru
      _
    // Predicated region
    $region18: #{tpu_custom_call.1} parent=1 // pred_check
      _
    $region19: #{tpu_custom_call.1} parent=1 // pred_check_branch
      %29 = sbr.rel (0) target = $region21
    $region20: #{tpu_custom_call.1} parent=1 // pred_region
      _
    $region21: #{tpu_custom_call.1} parent=1 // pred_fallthru
      _
    // Predicated region
    $region22: #{tpu_custom_call.1} parent=1 // pred_check
      _
    $region23: #{tpu_custom_call.1} parent=1 // pred_check_branch
      %31 = sbr.rel (0) target = $region25
    $region24: #{tpu_custom_call.1} parent=1 // pred_region
      _
    $region25: #{tpu_custom_call.1} parent=1 // pred_fallthru
      _
    // Predicated region
    $region26: #{tpu_custom_call.1} parent=1 // pred_check
      _
    $region27: #{tpu_custom_call.1} parent=1 // pred_check_branch
      %33 = sbr.rel (0) target = $region29
    $region28: #{tpu_custom_call.1} parent=1 // pred_region
      _
    $region29: #{tpu_custom_call.1} parent=1 // pred_fallthru
      _
    // Predicated region
    $region30: #{tpu_custom_call.1} parent=1 // pred_check
      _
    $region31: #{tpu_custom_call.1} parent=1 // pred_check_branch
      %35 = sbr.rel (0) target = $region33
    $region32: #{tpu_custom_call.1} parent=1 // pred_region
      _
    $region33: #{tpu_custom_call.1} parent=1 // pred_fallthru
      _
    // Predicated region
    $region34: #{tpu_custom_call.1} parent=1 // pred_check
      _
    $region35: #{tpu_custom_call.1} parent=1 // pred_check_branch
      %37 = sbr.rel (0) target = $region37
    $region36: #{tpu_custom_call.1} parent=1 // pred_region
      _
    $region37: #{tpu_custom_call.1} parent=1 // pred_fallthru
      _
    // Predicated region
    $region38: #{tpu_custom_call.1} parent=1 // pred_check
      _
    $region39: #{tpu_custom_call.1} parent=1 // pred_check_branch
      %39 = sbr.rel (0) target = $region41
    $region40: #{tpu_custom_call.1} parent=1 // pred_region
      _
    $region41: #{tpu_custom_call.1} parent=1 // pred_fallthru
      _
    // Predicated region
    $region42: #{tpu_custom_call.1} parent=1 // pred_check
      _
    $region43: #{tpu_custom_call.1} parent=1 // pred_check_branch
      %41 = sbr.rel (0) target = $region45
    $region44: #{tpu_custom_call.1} parent=1 // pred_region
      _
    $region45: #{tpu_custom_call.1} parent=1 // pred_fallthru
      _
    // Predicated region
    $region46: #{tpu_custom_call.1} parent=1 // pred_check
      _
    $region47: #{tpu_custom_call.1} parent=1 // pred_check_branch
      %43 = sbr.rel (0) target = $region49
    $region48: #{tpu_custom_call.1} parent=1 // pred_region
      _
    $region49: #{tpu_custom_call.1} parent=1 // pred_fallthru
      _
    %v44 = vld [vmem:[%s0] sm:$0xff]
    %v45 = vld [vmem:[%s0 + $0x8] sm:$0xff]
    %v46 = vld [vmem:[%s0 + $0x10] sm:$0xff]
    %v47 = vld [vmem:[%s0 + $0x18] sm:$0xff]
    %v48 = vld [vmem:[%s1] sm:$0xff]
    %v49 = vld [vmem:[%s1 + $0x8] sm:$0xff]
    %v50 = vld [vmem:[%s1 + $0x10] sm:$0xff]
    %v51 = vld [vmem:[%s1 + $0x18] sm:$0xff]
    %vm52 = vcmask 261120
    %v54 = vsel %vm52, %v44, 0
    %v57 = vsel %vm52, %v45, 0
    %v60 = vsel %vm52, %v46, 0
    %v63 = vsel %vm52, %v47, 0
    %65 = vmatprep.subr.mxu0 0.0
    %66 = vmatpush1.msra.mxu0 %v48
    %67 = vmatprep.subr.mxu0 0.0
    %68 = vmatpush1.msra.mxu0 %v49
    %69 = vmatprep.subr.mxu0 0.0
    %70 = vmatpush1.msra.mxu0 %v50
    %71 = vmatprep.subr.mxu0 0.0
    %72 = vmatpush1.msra.mxu0 %v51
    %73 = vmatprep.subr.mxu0 0.0
    %74 = vmatpush1.msra.mxu0 0.0
    %75 = vmatprep.subr.mxu0 0.0
    %76 = vmatpush1.msra.mxu0 0.0
    %77 = vmatprep.subr.mxu0 0.0
    %78 = vmatpush1.msra.mxu0 0.0
    %79 = vmatprep.subr.mxu0 0.0
    %80 = vmatpush1.msra.mxu0 0.0
    %81 = vmatprep.subr.mxu0 0.0
    %82 = vmatpush1.msra.mxu0 0.0
    %83 = vmatprep.subr.mxu0 0.0
    %84 = vmatpush1.msra.mxu0 0.0
    %85 = vmatprep.subr.mxu0 0.0
    %86 = vmatpush1.msra.mxu0 0.0
    %87 = vmatprep.subr.mxu0 0.0
    %88 = vmatpush1.msra.mxu0 0.0
    %89 = vmatprep.subr.mxu0 0.0
    %90 = vmatpush1.msra.mxu0 0.0
    %91 = vmatprep.subr.mxu0 0.0
    %92 = vmatpush1.msra.mxu0 0.0
    %93 = vmatprep.subr.mxu0 0.0
    %94 = vmatpush1.msra.mxu0 0.0
    %95 = vmatprep.subr.mxu0 0.0
    %96 = vmatpush1.msra.mxu0 0.0
    %97 = vmatprep.subr.mxu0 0.0
    %98 = vmatpush1.msra.mxu0 0.0
    %99 = vmatprep.subr.mxu0 0.0
    %100 = vmatpush1.msra.mxu0 0.0
    %101 = vmatprep.subr.mxu0 0.0
    %102 = vmatpush1.msra.mxu0 0.0
    %103 = vmatprep.subr.mxu0 0.0
    %104 = vmatpush1.msra.mxu0 0.0
    %105 = vmatprep.subr.mxu0 0.0
    %106 = vmatpush1.msra.mxu0 0.0
    %107 = vmatprep.subr.mxu0 0.0
    %108 = vmatpush1.msra.mxu0 0.0
    %109 = vmatprep.subr.mxu0 0.0
    %110 = vmatpush1.msra.mxu0 0.0
    %111 = vmatprep.subr.mxu0 0.0
    %112 = vmatpush1.msra.mxu0 0.0
    %113 = vmatprep.subr.mxu0 0.0
    %114 = vmatpush1.msra.mxu0 0.0
    %115 = vmatprep.subr.mxu0 0.0
    %116 = vmatpush1.msra.mxu0 0.0
    %117 = vmatprep.subr.mxu0 0.0
    %118 = vmatpush1.msra.mxu0 0.0
    %119 = vmatprep.subr.mxu0 0.0
    %120 = vmatpush1.msra.mxu0 0.0
    %121 = vmatprep.subr.mxu0 0.0
    %122 = vmatpush1.msra.mxu0 0.0
    %123 = vmatprep.subr.mxu0 0.0
    %124 = vmatpush1.msra.mxu0 0.0
    %125 = vmatprep.subr.mxu0 0.0
    %126 = vmatpush1.msra.mxu0 0.0
    %127 = vmatprep.subr.mxu0 0.0
    %128 = vmatpush1.msra.mxu0 0.0
    %129 = vmatprep.mubr.f32.mxu0 0.0
    %130 = vmatmul.mubr.f32.gmra.mrb[0].mxu0 %v54
    %v131 = vpop.f32.mrb[0].mxu0
    %v132 = vadd.f32 0.0, %v131
    %v133 = vpop.f32.mrb[0].mxu0
    %134 = vmatprep.mubr.f32.mxu0 0.0
    %135 = vmatmul.mubr.f32.gmra.mrb[0].mxu0 %v57
    %v136 = vpop.f32.mrb[0].mxu0
    %v137 = vadd.f32 0.0, %v136
    %v138 = vpop.f32.mrb[0].mxu0
    %139 = vmatprep.mubr.f32.mxu0 0.0
    %140 = vmatmul.mubr.f32.gmra.mrb[0].mxu0 %v60
    %v141 = vpop.f32.mrb[0].mxu0
    %v142 = vadd.f32 0.0, %v141
    %v143 = vpop.f32.mrb[0].mxu0
    %144 = vmatprep.mubr.f32.mxu0 0.0
    %145 = vmatmul.mubr.f32.gmra.mrb[0].mxu0 %v63
    %v146 = vpop.f32.mrb[0].mxu0
    %v147 = vadd.f32 0.0, %v146
    %v148 = vpop.f32.mrb[0].mxu0
    %149 = vdwg.mxu0
    %v150 = vld [vmem:[%s2] sm:$0xff]
    %v151 = vld [vmem:[%s2 + $0x8] sm:$0xff]
    %v152 = vld [vmem:[%s2 + $0x10] sm:$0xff]
    %v153 = vld [vmem:[%s2 + $0x18] sm:$0xff]
    %154 = vmatprep.subr.mxu0 0.0
    %155 = vmatpush1.msra.mxu0 %v150
    %156 = vmatprep.subr.mxu0 0.0
    %157 = vmatpush1.msra.mxu0 %v151
    %158 = vmatprep.subr.mxu0 0.0
    %159 = vmatpush1.msra.mxu0 %v152
    %160 = vmatprep.subr.mxu0 0.0
    %161 = vmatpush1.msra.mxu0 %v153
    %162 = vmatprep.subr.mxu0 0.0
    %163 = vmatpush1.msra.mxu0 0.0
    %164 = vmatprep.subr.mxu0 0.0
    %165 = vmatpush1.msra.mxu0 0.0
    %166 = vmatprep.subr.mxu0 0.0
    %167 = vmatpush1.msra.mxu0 0.0
    %168 = vmatprep.subr.mxu0 0.0
    %169 = vmatpush1.msra.mxu0 0.0
    %170 = vmatprep.subr.mxu0 0.0
    %171 = vmatpush1.msra.mxu0 0.0
    %172 = vmatprep.subr.mxu0 0.0
    %173 = vmatpush1.msra.mxu0 0.0
    %174 = vmatprep.subr.mxu0 0.0
    %175 = vmatpush1.msra.mxu0 0.0
    %176 = vmatprep.subr.mxu0 0.0
    %177 = vmatpush1.msra.mxu0 0.0
    %178 = vmatprep.subr.mxu0 0.0
    %179 = vmatpush1.msra.mxu0 0.0
    %180 = vmatprep.subr.mxu0 0.0
    %181 = vmatpush1.msra.mxu0 0.0
    %182 = vmatprep.subr.mxu0 0.0
    %183 = vmatpush1.msra.mxu0 0.0
    %184 = vmatprep.subr.mxu0 0.0
    %185 = vmatpush1.msra.mxu0 0.0
    %186 = vmatprep.subr.mxu0 0.0
    %187 = vmatpush1.msra.mxu0 0.0
    %188 = vmatprep.subr.mxu0 0.0
    %189 = vmatpush1.msra.mxu0 0.0
    %190 = vmatprep.subr.mxu0 0.0
    %191 = vmatpush1.msra.mxu0 0.0
    %192 = vmatprep.subr.mxu0 0.0
    %193 = vmatpush1.msra.mxu0 0.0
    %194 = vmatprep.subr.mxu0 0.0
    %195 = vmatpush1.msra.mxu0 0.0
    %196 = vmatprep.subr.mxu0 0.0
    %197 = vmatpush1.msra.mxu0 0.0
    %198 = vmatprep.subr.mxu0 0.0
    %199 = vmatpush1.msra.mxu0 0.0
    %200 = vmatprep.subr.mxu0 0.0
    %201 = vmatpush1.msra.mxu0 0.0
    %202 = vmatprep.subr.mxu0 0.0
    %203 = vmatpush1.msra.mxu0 0.0
    %204 = vmatprep.subr.mxu0 0.0
    %205 = vmatpush1.msra.mxu0 0.0
    %206 = vmatprep.subr.mxu0 0.0
    %207 = vmatpush1.msra.mxu0 0.0
    %208 = vmatprep.subr.mxu0 0.0
    %209 = vmatpush1.msra.mxu0 0.0
    %210 = vmatprep.subr.mxu0 0.0
    %211 = vmatpush1.msra.mxu0 0.0
    %212 = vmatprep.subr.mxu0 0.0
    %213 = vmatpush1.msra.mxu0 0.0
    %214 = vmatprep.subr.mxu0 0.0
    %215 = vmatpush1.msra.mxu0 0.0
    %216 = vmatprep.subr.mxu0 0.0
    %217 = vmatpush1.msra.mxu0 0.0
    %218 = vmatprep.mubr.f32.mxu0 0.0
    %219 = vmatmul.mubr.f32.gmra.mrb[0].mxu0 %v54
    %v220 = vpop.f32.mrb[0].mxu0
    %v221 = vadd.f32 0.0, %v220
    %v222 = vpop.f32.mrb[0].mxu0
    %223 = vmatprep.mubr.f32.mxu0 0.0
    %224 = vmatmul.mubr.f32.gmra.mrb[0].mxu0 %v57
    %v225 = vpop.f32.mrb[0].mxu0
    %v226 = vadd.f32 0.0, %v225
    %v227 = vpop.f32.mrb[0].mxu0
    %228 = vmatprep.mubr.f32.mxu0 0.0
    %229 = vmatmul.mubr.f32.gmra.mrb[0].mxu0 %v60
    %v230 = vpop.f32.mrb[0].mxu0
    %v231 = vadd.f32 0.0, %v230
    %v232 = vpop.f32.mrb[0].mxu0
    %233 = vmatprep.mubr.f32.mxu0 0.0
    %234 = vmatmul.mubr.f32.gmra.mrb[0].mxu0 %v63
    %v235 = vpop.f32.mrb[0].mxu0
    %v236 = vadd.f32 0.0, %v235
    %v237 = vpop.f32.mrb[0].mxu0
    %238 = vdwg.mxu0
    %v239 = vld [vmem:[%s3] sm:$0xff]
    %v240 = vld [vmem:[%s3 + $0x8] sm:$0xff]
    %v241 = vld [vmem:[%s3 + $0x10] sm:$0xff]
    %v242 = vld [vmem:[%s3 + $0x18] sm:$0xff]
    %243 = vmatprep.subr.mxu0 0.0
    %244 = vmatpush1.msra.mxu0 %v239
    %245 = vmatprep.subr.mxu0 0.0
    %246 = vmatpush1.msra.mxu0 %v240
    %247 = vmatprep.subr.mxu0 0.0
    %248 = vmatpush1.msra.mxu0 %v241
    %249 = vmatprep.subr.mxu0 0.0
    %250 = vmatpush1.msra.mxu0 %v242
    %251 = vmatprep.subr.mxu0 0.0
    %252 = vmatpush1.msra.mxu0 0.0
    %253 = vmatprep.subr.mxu0 0.0
    %254 = vmatpush1.msra.mxu0 0.0
    %255 = vmatprep.subr.mxu0 0.0
    %256 = vmatpush1.msra.mxu0 0.0
    %257 = vmatprep.subr.mxu0 0.0
    %258 = vmatpush1.msra.mxu0 0.0
    %259 = vmatprep.subr.mxu0 0.0
    %260 = vmatpush1.msra.mxu0 0.0
    %261 = vmatprep.subr.mxu0 0.0
    %262 = vmatpush1.msra.mxu0 0.0
    %263 = vmatprep.subr.mxu0 0.0
    %264 = vmatpush1.msra.mxu0 0.0
    %265 = vmatprep.subr.mxu0 0.0
    %266 = vmatpush1.msra.mxu0 0.0
    %267 = vmatprep.subr.mxu0 0.0
    %268 = vmatpush1.msra.mxu0 0.0
    %269 = vmatprep.subr.mxu0 0.0
    %270 = vmatpush1.msra.mxu0 0.0
    %271 = vmatprep.subr.mxu0 0.0
    %272 = vmatpush1.msra.mxu0 0.0
    %273 = vmatprep.subr.mxu0 0.0
    %274 = vmatpush1.msra.mxu0 0.0
    %275 = vmatprep.subr.mxu0 0.0
    %276 = vmatpush1.msra.mxu0 0.0
    %277 = vmatprep.subr.mxu0 0.0
    %278 = vmatpush1.msra.mxu0 0.0
    %279 = vmatprep.subr.mxu0 0.0
    %280 = vmatpush1.msra.mxu0 0.0
    %281 = vmatprep.subr.mxu0 0.0
    %282 = vmatpush1.msra.mxu0 0.0
    %283 = vmatprep.subr.mxu0 0.0
    %284 = vmatpush1.msra.mxu0 0.0
    %285 = vmatprep.subr.mxu0 0.0
    %286 = vmatpush1.msra.mxu0 0.0
    %287 = vmatprep.subr.mxu0 0.0
    %288 = vmatpush1.msra.mxu0 0.0
    %289 = vmatprep.subr.mxu0 0.0
    %290 = vmatpush1.msra.mxu0 0.0
    %291 = vmatprep.subr.mxu0 0.0
    %292 = vmatpush1.msra.mxu0 0.0
    %293 = vmatprep.subr.mxu0 0.0
    %294 = vmatpush1.msra.mxu0 0.0
    %295 = vmatprep.subr.mxu0 0.0
    %296 = vmatpush1.msra.mxu0 0.0
    %297 = vmatprep.subr.mxu0 0.0
    %298 = vmatpush1.msra.mxu0 0.0
    %299 = vmatprep.subr.mxu0 0.0
    %300 = vmatpush1.msra.mxu0 0.0
    %301 = vmatprep.subr.mxu0 0.0
    %302 = vmatpush1.msra.mxu0 0.0
    %303 = vmatprep.subr.mxu0 0.0
    %304 = vmatpush1.msra.mxu0 0.0
    %305 = vmatprep.subr.mxu0 0.0
    %306 = vmatpush1.msra.mxu0 0.0
    %307 = vmatprep.mubr.f32.mxu0 0.0
    %308 = vmatmul.mubr.f32.gmra.mrb[0].mxu0 %v54
    %v309 = vpop.f32.mrb[0].mxu0
    %v310 = vadd.f32 0.0, %v309
    %v311 = vpop.f32.mrb[0].mxu0
    %312 = vmatprep.mubr.f32.mxu0 0.0
    %313 = vmatmul.mubr.f32.gmra.mrb[0].mxu0 %v57
    %v314 = vpop.f32.mrb[0].mxu0
    %v315 = vadd.f32 0.0, %v314
    %v316 = vpop.f32.mrb[0].mxu0
    %317 = vmatprep.mubr.f32.mxu0 0.0
    %318 = vmatmul.mubr.f32.gmra.mrb[0].mxu0 %v60
    %v319 = vpop.f32.mrb[0].mxu0
    %v320 = vadd.f32 0.0, %v319
    %v321 = vpop.f32.mrb[0].mxu0
    %322 = vmatprep.mubr.f32.mxu0 0.0
    %323 = vmatmul.mubr.f32.gmra.mrb[0].mxu0 %v63
    %v324 = vpop.f32.mrb[0].mxu0
    %v325 = vadd.f32 0.0, %v324
    %v326 = vpop.f32.mrb[0].mxu0
    %327 = vdwg.mxu0
    %v328 = vld [vmem:[%s7] sm:$0xff]
    %v329 = vld [vmem:[%s7 + $0x8] sm:$0xff]
    %v330 = vld [vmem:[%s7 + $0x10] sm:$0xff]
    %v331 = vld [vmem:[%s7 + $0x18] sm:$0xff]
    %v332 = vld [vmem:[%s7 + $0x20] sm:$0xff]
    %v333 = vld [vmem:[%s7 + $0x28] sm:$0xff]
    %v334 = vld [vmem:[%s7 + $0x30] sm:$0xff]
    %v335 = vld [vmem:[%s7 + $0x38] sm:$0xff]
    %v336 = vld [vmem:[%s6] sm:$0xff]
    %v337 = vld [vmem:[%s6 + $0x8] sm:$0xff]
    %v338 = vld [vmem:[%s6 + $0x10] sm:$0xff]
    %v339 = vld [vmem:[%s6 + $0x18] sm:$0xff]
    %v340 = vld [vmem:[%s6 + $0x20] sm:$0xff]
    %v341 = vld [vmem:[%s6 + $0x28] sm:$0xff]
    %v342 = vld [vmem:[%s6 + $0x30] sm:$0xff]
    %v343 = vld [vmem:[%s6 + $0x38] sm:$0xff]
    %v345 = vsel %vm52, %v336, 0
    %v348 = vsel %vm52, %v337, 0
    %v351 = vsel %vm52, %v338, 0
    %v354 = vsel %vm52, %v339, 0
    %v357 = vsel %vm52, %v340, 0
    %v360 = vsel %vm52, %v341, 0
    %v363 = vsel %vm52, %v342, 0
    %v366 = vsel %vm52, %v343, 0
    %368 = vmatprep.subr.mxu0 0.0
    %369 = vmatpush1.msra.mxu0 %v132
    %370 = vmatprep.subr.mxu0 0.0
    %371 = vmatpush1.msra.mxu0 %v137
    %372 = vmatprep.subr.mxu0 0.0
    %373 = vmatpush1.msra.mxu0 %v142
    %374 = vmatprep.subr.mxu0 0.0
    %375 = vmatpush1.msra.mxu0 %v147
    %376 = vmatprep.subr.mxu0 0.0
    %377 = vmatpush1.msra.mxu0 0.0
    %378 = vmatprep.subr.mxu0 0.0
    %379 = vmatpush1.msra.mxu0 0.0
    %380 = vmatprep.subr.mxu0 0.0
    %381 = vmatpush1.msra.mxu0 0.0
    %382 = vmatprep.subr.mxu0 0.0
    %383 = vmatpush1.msra.mxu0 0.0
    %384 = vmatprep.subr.mxu0 0.0
    %385 = vmatpush1.msra.mxu0 0.0
    %386 = vmatprep.subr.mxu0 0.0
    %387 = vmatpush1.msra.mxu0 0.0
    %388 = vmatprep.subr.mxu0 0.0
    %389 = vmatpush1.msra.mxu0 0.0
    %390 = vmatprep.subr.mxu0 0.0
    %391 = vmatpush1.msra.mxu0 0.0
    %392 = vmatprep.subr.mxu0 0.0
    %393 = vmatpush1.msra.mxu0 0.0
    %394 = vmatprep.subr.mxu0 0.0
    %395 = vmatpush1.msra.mxu0 0.0
    %396 = vmatprep.subr.mxu0 0.0
    %397 = vmatpush1.msra.mxu0 0.0
    %398 = vmatprep.subr.mxu0 0.0
    %399 = vmatpush1.msra.mxu0 0.0
    %400 = vmatprep.subr.mxu0 0.0
    %401 = vmatpush1.msra.mxu0 0.0
    %402 = vmatprep.subr.mxu0 0.0
    %403 = vmatpush1.msra.mxu0 0.0
    %404 = vmatprep.subr.mxu0 0.0
    %405 = vmatpush1.msra.mxu0 0.0
    %406 = vmatprep.subr.mxu0 0.0
    %407 = vmatpush1.msra.mxu0 0.0
    %408 = vmatprep.subr.mxu0 0.0
    %409 = vmatpush1.msra.mxu0 0.0
    %410 = vmatprep.subr.mxu0 0.0
    %411 = vmatpush1.msra.mxu0 0.0
    %412 = vmatprep.subr.mxu0 0.0
    %413 = vmatpush1.msra.mxu0 0.0
    %414 = vmatprep.subr.mxu0 0.0
    %415 = vmatpush1.msra.mxu0 0.0
    %416 = vmatprep.subr.mxu0 0.0
    %417 = vmatpush1.msra.mxu0 0.0
    %418 = vmatprep.subr.mxu0 0.0
    %419 = vmatpush1.msra.mxu0 0.0
    %420 = vmatprep.subr.mxu0 0.0
    %421 = vmatpush1.msra.mxu0 0.0
    %422 = vmatprep.subr.mxu0 0.0
    %423 = vmatpush1.msra.mxu0 0.0
    %424 = vmatprep.subr.mxu0 0.0
    %425 = vmatpush1.msra.mxu0 0.0
    %426 = vmatprep.subr.mxu0 0.0
    %427 = vmatpush1.msra.mxu0 0.0
    %428 = vmatprep.subr.mxu0 0.0
    %429 = vmatpush1.msra.mxu0 0.0
    %430 = vmatprep.subr.mxu0 0.0
    %431 = vmatpush1.msra.mxu0 0.0
    %432 = vmatprep.mubr.f32.mxu0 0.0
    %433 = vmatmul.mubr.f32.gmra.mrb[0].mxu0 %v345
    %v434 = vpop.f32.mrb[0].mxu0
    %v435 = vadd.f32 0.0, %v434
    %v436 = vpop.f32.mrb[0].mxu0
    %437 = vmatprep.mubr.f32.mxu0 0.0
    %438 = vmatmul.mubr.f32.gmra.mrb[0].mxu0 %v348
    %v439 = vpop.f32.mrb[0].mxu0
    %v440 = vadd.f32 0.0, %v439
    %v441 = vpop.f32.mrb[0].mxu0
    %442 = vmatprep.mubr.f32.mxu0 0.0
    %443 = vmatmul.mubr.f32.gmra.mrb[0].mxu0 %v351
    %v444 = vpop.f32.mrb[0].mxu0
    %v445 = vadd.f32 0.0, %v444
    %v446 = vpop.f32.mrb[0].mxu0
    %447 = vmatprep.mubr.f32.mxu0 0.0
    %448 = vmatmul.mubr.f32.gmra.mrb[0].mxu0 %v354
    %v449 = vpop.f32.mrb[0].mxu0
    %v450 = vadd.f32 0.0, %v449
    %v451 = vpop.f32.mrb[0].mxu0
    %452 = vmatprep.mubr.f32.mxu0 0.0
    %453 = vmatmul.mubr.f32.gmra.mrb[0].mxu0 %v357
    %v454 = vpop.f32.mrb[0].mxu0
    %v455 = vadd.f32 0.0, %v454
    %v456 = vpop.f32.mrb[0].mxu0
    %457 = vmatprep.mubr.f32.mxu0 0.0
    %458 = vmatmul.mubr.f32.gmra.mrb[0].mxu0 %v360
    %v459 = vpop.f32.mrb[0].mxu0
    %v460 = vadd.f32 0.0, %v459
    %v461 = vpop.f32.mrb[0].mxu0
    %462 = vmatprep.mubr.f32.mxu0 0.0
    %463 = vmatmul.mubr.f32.gmra.mrb[0].mxu0 %v363
    %v464 = vpop.f32.mrb[0].mxu0
    %v465 = vadd.f32 0.0, %v464
    %v466 = vpop.f32.mrb[0].mxu0
    %467 = vmatprep.mubr.f32.mxu0 0.0
    %468 = vmatmul.mubr.f32.gmra.mrb[0].mxu0 %v366
    %v469 = vpop.f32.mrb[0].mxu0
    %v470 = vadd.f32 0.0, %v469
    %v471 = vpop.f32.mrb[0].mxu0
    %472 = vdwg.mxu0
    %v473 = vmul.f32 %v435, %v328
    %v474 = vmul.f32 %v440, %v329
    %v475 = vmul.f32 %v445, %v330
    %v476 = vmul.f32 %v450, %v331
    %v477 = vmul.f32 %v455, %v332
    %v478 = vmul.f32 %v460, %v333
    %v479 = vmul.f32 %v465, %v334
    %v480 = vmul.f32 %v470, %v335
    %481 = vmatprep.subr.mxu0 0.0
    %482 = vmatpush1.msra.mxu0 %v221
    %483 = vmatprep.subr.mxu0 0.0
    %484 = vmatpush1.msra.mxu0 %v226
    %485 = vmatprep.subr.mxu0 0.0
    %486 = vmatpush1.msra.mxu0 %v231
    %487 = vmatprep.subr.mxu0 0.0
    %488 = vmatpush1.msra.mxu0 %v236
    %489 = vmatprep.subr.mxu0 0.0
    %490 = vmatpush1.msra.mxu0 0.0
    %491 = vmatprep.subr.mxu0 0.0
    %492 = vmatpush1.msra.mxu0 0.0
    %493 = vmatprep.subr.mxu0 0.0
    %494 = vmatpush1.msra.mxu0 0.0
    %495 = vmatprep.subr.mxu0 0.0
    %496 = vmatpush1.msra.mxu0 0.0
    %497 = vmatprep.subr.mxu0 0.0
    %498 = vmatpush1.msra.mxu0 0.0
    %499 = vmatprep.subr.mxu0 0.0
    %500 = vmatpush1.msra.mxu0 0.0
    %501 = vmatprep.subr.mxu0 0.0
    %502 = vmatpush1.msra.mxu0 0.0
    %503 = vmatprep.subr.mxu0 0.0
    %504 = vmatpush1.msra.mxu0 0.0
    %505 = vmatprep.subr.mxu0 0.0
    %506 = vmatpush1.msra.mxu0 0.0
    %507 = vmatprep.subr.mxu0 0.0
    %508 = vmatpush1.msra.mxu0 0.0
    %509 = vmatprep.subr.mxu0 0.0
    %510 = vmatpush1.msra.mxu0 0.0
    %511 = vmatprep.subr.mxu0 0.0
    %512 = vmatpush1.msra.mxu0 0.0
    %513 = vmatprep.subr.mxu0 0.0
    %514 = vmatpush1.msra.mxu0 0.0
    %515 = vmatprep.subr.mxu0 0.0
    %516 = vmatpush1.msra.mxu0 0.0
    %517 = vmatprep.subr.mxu0 0.0
    %518 = vmatpush1.msra.mxu0 0.0
    %519 = vmatprep.subr.mxu0 0.0
    %520 = vmatpush1.msra.mxu0 0.0
    %521 = vmatprep.subr.mxu0 0.0
    %522 = vmatpush1.msra.mxu0 0.0
    %523 = vmatprep.subr.mxu0 0.0
    %524 = vmatpush1.msra.mxu0 0.0
    %525 = vmatprep.subr.mxu0 0.0
    %526 = vmatpush1.msra.mxu0 0.0
    %527 = vmatprep.subr.mxu0 0.0
    %528 = vmatpush1.msra.mxu0 0.0
    %529 = vmatprep.subr.mxu0 0.0
    %530 = vmatpush1.msra.mxu0 0.0
    %531 = vmatprep.subr.mxu0 0.0
    %532 = vmatpush1.msra.mxu0 0.0
    %533 = vmatprep.subr.mxu0 0.0
    %534 = vmatpush1.msra.mxu0 0.0
    %535 = vmatprep.subr.mxu0 0.0
    %536 = vmatpush1.msra.mxu0 0.0
    %537 = vmatprep.subr.mxu0 0.0
    %538 = vmatpush1.msra.mxu0 0.0
    %539 = vmatprep.subr.mxu0 0.0
    %540 = vmatpush1.msra.mxu0 0.0
    %541 = vmatprep.subr.mxu0 0.0
    %542 = vmatpush1.msra.mxu0 0.0
    %543 = vmatprep.subr.mxu0 0.0
    %544 = vmatpush1.msra.mxu0 0.0
    %545 = vmatprep.mubr.f32.mxu0 0.0
    %546 = vmatmul.mubr.f32.gmra.mrb[0].mxu0 %v345
    %v547 = vpop.f32.mrb[0].mxu0
    %v548 = vadd.f32 0.0, %v547
    %v549 = vpop.f32.mrb[0].mxu0
    %550 = vmatprep.mubr.f32.mxu0 0.0
    %551 = vmatmul.mubr.f32.gmra.mrb[0].mxu0 %v348
    %v552 = vpop.f32.mrb[0].mxu0
    %v553 = vadd.f32 0.0, %v552
    %v554 = vpop.f32.mrb[0].mxu0
    %555 = vmatprep.mubr.f32.mxu0 0.0
    %556 = vmatmul.mubr.f32.gmra.mrb[0].mxu0 %v351
    %v557 = vpop.f32.mrb[0].mxu0
    %v558 = vadd.f32 0.0, %v557
    %v559 = vpop.f32.mrb[0].mxu0
    %560 = vmatprep.mubr.f32.mxu0 0.0
    %561 = vmatmul.mubr.f32.gmra.mrb[0].mxu0 %v354
    %v562 = vpop.f32.mrb[0].mxu0
    %v563 = vadd.f32 0.0, %v562
    %v564 = vpop.f32.mrb[0].mxu0
    %565 = vmatprep.mubr.f32.mxu0 0.0
    %566 = vmatmul.mubr.f32.gmra.mrb[0].mxu0 %v357
    %v567 = vpop.f32.mrb[0].mxu0
    %v568 = vadd.f32 0.0, %v567
    %v569 = vpop.f32.mrb[0].mxu0
    %570 = vmatprep.mubr.f32.mxu0 0.0
    %571 = vmatmul.mubr.f32.gmra.mrb[0].mxu0 %v360
    %v572 = vpop.f32.mrb[0].mxu0
    %v573 = vadd.f32 0.0, %v572
    %v574 = vpop.f32.mrb[0].mxu0
    %575 = vmatprep.mubr.f32.mxu0 0.0
    %576 = vmatmul.mubr.f32.gmra.mrb[0].mxu0 %v363
    %v577 = vpop.f32.mrb[0].mxu0
    %v578 = vadd.f32 0.0, %v577
    %v579 = vpop.f32.mrb[0].mxu0
    %580 = vmatprep.mubr.f32.mxu0 0.0
    %581 = vmatmul.mubr.f32.gmra.mrb[0].mxu0 %v366
    %v582 = vpop.f32.mrb[0].mxu0
    %v583 = vadd.f32 0.0, %v582
    %v584 = vpop.f32.mrb[0].mxu0
    %585 = vdwg.mxu0
    %v586 = vmul.f32 %v548, %v328
    %v587 = vmul.f32 %v553, %v329
    %v588 = vmul.f32 %v558, %v330
    %v589 = vmul.f32 %v563, %v331
    %v590 = vmul.f32 %v568, %v332
    %v591 = vmul.f32 %v573, %v333
    %v592 = vmul.f32 %v578, %v334
    %v593 = vmul.f32 %v583, %v335
    %v594 = vld [vmem:[%s8] sm:$0xff]
    %v595 = vld [vmem:[%s8 + $0x8] sm:$0xff]
    %v596 = vld [vmem:[%s8 + $0x10] sm:$0xff]
    %v597 = vld [vmem:[%s8 + $0x18] sm:$0xff]
    %v598 = vld [vmem:[%s8 + $0x20] sm:$0xff]
    %v599 = vld [vmem:[%s8 + $0x28] sm:$0xff]
    %v600 = vld [vmem:[%s8 + $0x30] sm:$0xff]
    %v601 = vld [vmem:[%s8 + $0x38] sm:$0xff]
    %v602 = vld [vmem:[%s8 + $0x40] sm:$0xff]
    %v603 = vld [vmem:[%s8 + $0x48] sm:$0xff]
    %v604 = vld [vmem:[%s8 + $0x50] sm:$0xff]
    %v605 = vld [vmem:[%s8 + $0x58] sm:$0xff]
    %v606 = vld [vmem:[%s8 + $0x60] sm:$0xff]
    %v607 = vld [vmem:[%s8 + $0x68] sm:$0xff]
    %v608 = vld [vmem:[%s8 + $0x70] sm:$0xff]
    %v609 = vld [vmem:[%s8 + $0x78] sm:$0xff]
    %v611 = vsel %vm52, %v132, 0
    %v614 = vsel %vm52, %v137, 0
    %v617 = vsel %vm52, %v142, 0
    %v620 = vsel %vm52, %v147, 0
    %v623 = vsel %vm52, %v586, 0
    %v626 = vsel %vm52, %v587, 0
    %v629 = vsel %vm52, %v588, 0
    %v632 = vsel %vm52, %v589, 0
    %v635 = vsel %vm52, %v590, 0
    %v638 = vsel %vm52, %v591, 0
    %v641 = vsel %vm52, %v592, 0
    %v644 = vsel %vm52, %v593, 0
    %646 = vmatprep.subr.mxu0 0.0
    %647 = vmatpush1.xpose.msra.mxu0 %v623
    %648 = vmatprep.subr.mxu0 0.0
    %649 = vmatpush1.xpose.msra.mxu0 %v626
    %650 = vmatprep.subr.mxu0 0.0
    %651 = vmatpush1.xpose.msra.mxu0 %v629
    %652 = vmatprep.subr.mxu0 0.0
    %653 = vmatpush1.xpose.msra.mxu0 %v632
    %654 = vmatprep.subr.mxu0 0.0
    %655 = vmatpush1.xpose.msra.mxu0 %v635
    %656 = vmatprep.subr.mxu0 0.0
    %657 = vmatpush1.xpose.msra.mxu0 %v638
    %658 = vmatprep.subr.mxu0 0.0
    %659 = vmatpush1.xpose.msra.mxu0 %v641
    %660 = vmatprep.subr.mxu0 0.0
    %661 = vmatpush1.xpose.msra.mxu0 %v644
    %662 = vmatprep.subr.mxu0 0.0
    %663 = vmatpush1.xpose.msra.mxu0 0.0
    %664 = vmatprep.subr.mxu0 0.0
    %665 = vmatpush1.xpose.msra.mxu0 0.0
    %666 = vmatprep.subr.mxu0 0.0
    %667 = vmatpush1.xpose.msra.mxu0 0.0
    %668 = vmatprep.subr.mxu0 0.0
    %669 = vmatpush1.xpose.msra.mxu0 0.0
    %670 = vmatprep.subr.mxu0 0.0
    %671 = vmatpush1.xpose.msra.mxu0 0.0
    %672 = vmatprep.subr.mxu0 0.0
    %673 = vmatpush1.xpose.msra.mxu0 0.0
    %674 = vmatprep.subr.mxu0 0.0
    %675 = vmatpush1.xpose.msra.mxu0 0.0
    %676 = vmatprep.subr.mxu0 0.0
    %677 = vmatpush1.xpose.msra.mxu0 0.0
    %678 = vmatprep.subr.mxu0 0.0
    %679 = vmatpush1.xpose.msra.mxu0 0.0
    %680 = vmatprep.subr.mxu0 0.0
    %681 = vmatpush1.xpose.msra.mxu0 0.0
    %682 = vmatprep.subr.mxu0 0.0
    %683 = vmatpush1.xpose.msra.mxu0 0.0
    %684 = vmatprep.subr.mxu0 0.0
    %685 = vmatpush1.xpose.msra.mxu0 0.0
    %686 = vmatprep.subr.mxu0 0.0
    %687 = vmatpush1.xpose.msra.mxu0 0.0
    %688 = vmatprep.subr.mxu0 0.0
    %689 = vmatpush1.xpose.msra.mxu0 0.0
    %690 = vmatprep.subr.mxu0 0.0
    %691 = vmatpush1.xpose.msra.mxu0 0.0
    %692 = vmatprep.subr.mxu0 0.0
    %693 = vmatpush1.xpose.msra.mxu0 0.0
    %694 = vmatprep.subr.mxu0 0.0
    %695 = vmatpush1.xpose.msra.mxu0 0.0
    %696 = vmatprep.subr.mxu0 0.0
    %697 = vmatpush1.xpose.msra.mxu0 0.0
    %698 = vmatprep.subr.mxu0 0.0
    %699 = vmatpush1.xpose.msra.mxu0 0.0
    %700 = vmatprep.subr.mxu0 0.0
    %701 = vmatpush1.xpose.msra.mxu0 0.0
    %702 = vmatprep.subr.mxu0 0.0
    %703 = vmatpush1.xpose.msra.mxu0 0.0
    %704 = vmatprep.subr.mxu0 0.0
    %705 = vmatpush1.xpose.msra.mxu0 0.0
    %706 = vmatprep.subr.mxu0 0.0
    %707 = vmatpush1.xpose.msra.mxu0 0.0
    %708 = vmatprep.subr.mxu0 0.0
    %709 = vmatpush1.xpose.msra.mxu0 0.0
    %710 = vmatprep.mubr.f32.mxu0 0.0
    %711 = vmatmul.mubr.f32.gmra.mrb[0].mxu0 %v611
    %v712 = vpop.f32.mrb[0].mxu0
    %v713 = vadd.f32 %v594, %v712
    %v714 = vpop.f32.mrb[0].mxu0
    %715 = vmatprep.mubr.f32.mxu0 0.0
    %716 = vmatmul.mubr.f32.gmra.mrb[0].mxu0 %v614
    %v717 = vpop.f32.mrb[0].mxu0
    %v718 = vadd.f32 %v595, %v717
    %v719 = vpop.f32.mrb[0].mxu0
    %720 = vmatprep.mubr.f32.mxu0 0.0
    %721 = vmatmul.mubr.f32.gmra.mrb[0].mxu0 %v617
    %v722 = vpop.f32.mrb[0].mxu0
    %v723 = vadd.f32 %v596, %v722
    %v724 = vpop.f32.mrb[0].mxu0
    %725 = vmatprep.mubr.f32.mxu0 0.0
    %726 = vmatmul.mubr.f32.gmra.mrb[0].mxu0 %v620
    %v727 = vpop.f32.mrb[0].mxu0
    %v728 = vadd.f32 %v597, %v727
    %v729 = vpop.f32.mrb[0].mxu0
    %730 = vmatprep.mubr.f32.mxu0 0.0
    %731 = vmatmul.mubr.f32.gmra.mrb[0].mxu0 %v611
    %v732 = vpop.f32.mrb[0].mxu0
    %v733 = vadd.f32 %v598, %v732
    %v734 = vpop.f32.mrb[0].mxu0
    %735 = vmatprep.mubr.f32.mxu0 0.0
    %736 = vmatmul.mubr.f32.gmra.mrb[0].mxu0 %v614
    %v737 = vpop.f32.mrb[0].mxu0
    %v738 = vadd.f32 %v599, %v737
    %v739 = vpop.f32.mrb[0].mxu0
    %740 = vmatprep.mubr.f32.mxu0 0.0
    %741 = vmatmul.mubr.f32.gmra.mrb[0].mxu0 %v617
    %v742 = vpop.f32.mrb[0].mxu0
    %v743 = vadd.f32 %v600, %v742
    %v744 = vpop.f32.mrb[0].mxu0
    %745 = vmatprep.mubr.f32.mxu0 0.0
    %746 = vmatmul.mubr.f32.gmra.mrb[0].mxu0 %v620
    %v747 = vpop.f32.mrb[0].mxu0
    %v748 = vadd.f32 %v601, %v747
    %v749 = vpop.f32.mrb[0].mxu0
    %750 = vmatprep.mubr.f32.mxu0 0.0
    %751 = vmatmul.mubr.f32.gmra.mrb[0].mxu0 %v611
    %v752 = vpop.f32.mrb[0].mxu0
    %v753 = vadd.f32 %v602, %v752
    %v754 = vpop.f32.mrb[0].mxu0
    %755 = vmatprep.mubr.f32.mxu0 0.0
    %756 = vmatmul.mubr.f32.gmra.mrb[0].mxu0 %v614
    %v757 = vpop.f32.mrb[0].mxu0
    %v758 = vadd.f32 %v603, %v757
    %v759 = vpop.f32.mrb[0].mxu0
    %760 = vmatprep.mubr.f32.mxu0 0.0
    %761 = vmatmul.mubr.f32.gmra.mrb[0].mxu0 %v617
    %v762 = vpop.f32.mrb[0].mxu0
    %v763 = vadd.f32 %v604, %v762
    %v764 = vpop.f32.mrb[0].mxu0
    %765 = vmatprep.mubr.f32.mxu0 0.0
    %766 = vmatmul.mubr.f32.gmra.mrb[0].mxu0 %v620
    %v767 = vpop.f32.mrb[0].mxu0
    %v768 = vadd.f32 %v605, %v767
    %v769 = vpop.f32.mrb[0].mxu0
    %770 = vmatprep.mubr.f32.mxu0 0.0
    %771 = vmatmul.mubr.f32.gmra.mrb[0].mxu0 %v611
    %v772 = vpop.f32.mrb[0].mxu0
    %v773 = vadd.f32 %v606, %v772
    %v774 = vpop.f32.mrb[0].mxu0
    %775 = vmatprep.mubr.f32.mxu0 0.0
    %776 = vmatmul.mubr.f32.gmra.mrb[0].mxu0 %v614
    %v777 = vpop.f32.mrb[0].mxu0
    %v778 = vadd.f32 %v607, %v777
    %v779 = vpop.f32.mrb[0].mxu0
    %780 = vmatprep.mubr.f32.mxu0 0.0
    %781 = vmatmul.mubr.f32.gmra.mrb[0].mxu0 %v617
    %v782 = vpop.f32.mrb[0].mxu0
    %v783 = vadd.f32 %v608, %v782
    %v784 = vpop.f32.mrb[0].mxu0
    %785 = vmatprep.mubr.f32.mxu0 0.0
    %786 = vmatmul.mubr.f32.gmra.mrb[0].mxu0 %v620
    %v787 = vpop.f32.mrb[0].mxu0
    %v788 = vadd.f32 %v609, %v787
    %v789 = vpop.f32.mrb[0].mxu0
    %790 = vdwg.mxu0
    %vm791 = vcmask 523264
    %v792 = vsel %vm791, %v713, -inf
    %793 = vmax.xlane.f32.xlu0 %v792
    %v794 = vpop.xlane.xlu0 %793
    %v795 = vsel %vm791, %v718, -inf
    %796 = vmax.xlane.f32.xlu0 %v795
    %v797 = vpop.xlane.xlu0 %796
    %v798 = vsel %vm791, %v723, -inf
    %799 = vmax.xlane.f32.xlu0 %v798
    %v800 = vpop.xlane.xlu0 %799
    %v801 = vsel %vm791, %v728, -inf
    %802 = vmax.xlane.f32.xlu0 %v801
    %v803 = vpop.xlane.xlu0 %802
    %v804 = vsel %vm791, %v733, -inf
    %805 = vmax.xlane.f32.xlu0 %v804
    %v806 = vpop.xlane.xlu0 %805
    %v807 = vsel %vm791, %v738, -inf
    %808 = vmax.xlane.f32.xlu0 %v807
    %v809 = vpop.xlane.xlu0 %808
    %v810 = vsel %vm791, %v743, -inf
    %811 = vmax.xlane.f32.xlu0 %v810
    %v812 = vpop.xlane.xlu0 %811
    %v813 = vsel %vm791, %v748, -inf
    %814 = vmax.xlane.f32.xlu0 %v813
    %v815 = vpop.xlane.xlu0 %814
    %v816 = vsel %vm791, %v753, -inf
    %817 = vmax.xlane.f32.xlu0 %v816
    %v818 = vpop.xlane.xlu0 %817
    %v819 = vsel %vm791, %v758, -inf
    %820 = vmax.xlane.f32.xlu0 %v819
    %v821 = vpop.xlane.xlu0 %820
    %v822 = vsel %vm791, %v763, -inf
    %823 = vmax.xlane.f32.xlu0 %v822
    %v824 = vpop.xlane.xlu0 %823
    %v825 = vsel %vm791, %v768, -inf
    %826 = vmax.xlane.f32.xlu0 %v825
    %v827 = vpop.xlane.xlu0 %826
    %v828 = vsel %vm791, %v773, -inf
    %829 = vmax.xlane.f32.xlu0 %v828
    %v830 = vpop.xlane.xlu0 %829
    %v831 = vsel %vm791, %v778, -inf
    %832 = vmax.xlane.f32.xlu0 %v831
    %v833 = vpop.xlane.xlu0 %832
    %v834 = vsel %vm791, %v783, -inf
    %835 = vmax.xlane.f32.xlu0 %v834
    %v836 = vpop.xlane.xlu0 %835
    %v837 = vsel %vm791, %v788, -inf
    %838 = vmax.xlane.f32.xlu0 %v837
    %v839 = vpop.xlane.xlu0 %838
    %v840 = vsub.f32 %v713, %v794
    %v841 = vsub.f32 %v718, %v797
    %v842 = vsub.f32 %v723, %v800
    %v843 = vsub.f32 %v728, %v803
    %v844 = vsub.f32 %v733, %v806
    %v845 = vsub.f32 %v738, %v809
    %v846 = vsub.f32 %v743, %v812
    %v847 = vsub.f32 %v748, %v815
    %v848 = vsub.f32 %v753, %v818
    %v849 = vsub.f32 %v758, %v821
    %v850 = vsub.f32 %v763, %v824
    %v851 = vsub.f32 %v768, %v827
    %v852 = vsub.f32 %v773, %v830
    %v853 = vsub.f32 %v778, %v833
    %v854 = vsub.f32 %v783, %v836
    %v855 = vsub.f32 %v788, %v839
    %v856 = vmul.f32 %v840, 1.442695
    %v857 = vpow.pop %v856
    %v858 = vmul.f32 %v841, 1.442695
    %v859 = vpow.pop %v858
    %v860 = vmul.f32 %v842, 1.442695
    %v861 = vpow.pop %v860
    %v862 = vmul.f32 %v843, 1.442695
    %v863 = vpow.pop %v862
    %v864 = vmul.f32 %v844, 1.442695
    %v865 = vpow.pop %v864
    %v866 = vmul.f32 %v845, 1.442695
    %v867 = vpow.pop %v866
    %v868 = vmul.f32 %v846, 1.442695
    %v869 = vpow.pop %v868
    %v870 = vmul.f32 %v847, 1.442695
    %v871 = vpow.pop %v870
    %v872 = vmul.f32 %v848, 1.442695
    %v873 = vpow.pop %v872
    %v874 = vmul.f32 %v849, 1.442695
    %v875 = vpow.pop %v874
    %v876 = vmul.f32 %v850, 1.442695
    %v877 = vpow.pop %v876
    %v878 = vmul.f32 %v851, 1.442695
    %v879 = vpow.pop %v878
    %v880 = vmul.f32 %v852, 1.442695
    %v881 = vpow.pop %v880
    %v882 = vmul.f32 %v853, 1.442695
    %v883 = vpow.pop %v882
    %v884 = vmul.f32 %v854, 1.442695
    %v885 = vpow.pop %v884
    %v886 = vmul.f32 %v855, 1.442695
    %v887 = vpow.pop %v886
    %v888 = vsel %vm791, %v857, 0.0
    %889 = vadd.xlane.f32.xlu0 %v888
    %v890 = vpop.xlane.xlu0 %889
    %v891 = vsel %vm791, %v859, 0.0
    %892 = vadd.xlane.f32.xlu0 %v891
    %v893 = vpop.xlane.xlu0 %892
    %v894 = vsel %vm791, %v861, 0.0
    %895 = vadd.xlane.f32.xlu0 %v894
    %v896 = vpop.xlane.xlu0 %895
    %v897 = vsel %vm791, %v863, 0.0
    %898 = vadd.xlane.f32.xlu0 %v897
    %v899 = vpop.xlane.xlu0 %898
    %v900 = vsel %vm791, %v865, 0.0
    %901 = vadd.xlane.f32.xlu0 %v900
    %v902 = vpop.xlane.xlu0 %901
    %v903 = vsel %vm791, %v867, 0.0
    %904 = vadd.xlane.f32.xlu0 %v903
    %v905 = vpop.xlane.xlu0 %904
    %v906 = vsel %vm791, %v869, 0.0
    %907 = vadd.xlane.f32.xlu0 %v906
    %v908 = vpop.xlane.xlu0 %907
    %v909 = vsel %vm791, %v871, 0.0
    %910 = vadd.xlane.f32.xlu0 %v909
    %v911 = vpop.xlane.xlu0 %910
    %v912 = vsel %vm791, %v873, 0.0
    %913 = vadd.xlane.f32.xlu0 %v912
    %v914 = vpop.xlane.xlu0 %913
    %v915 = vsel %vm791, %v875, 0.0
    %916 = vadd.xlane.f32.xlu0 %v915
    %v917 = vpop.xlane.xlu0 %916
    %v918 = vsel %vm791, %v877, 0.0
    %919 = vadd.xlane.f32.xlu0 %v918
    %v920 = vpop.xlane.xlu0 %919
    %v921 = vsel %vm791, %v879, 0.0
    %922 = vadd.xlane.f32.xlu0 %v921
    %v923 = vpop.xlane.xlu0 %922
    %v924 = vsel %vm791, %v881, 0.0
    %925 = vadd.xlane.f32.xlu0 %v924
    %v926 = vpop.xlane.xlu0 %925
    %v927 = vsel %vm791, %v883, 0.0
    %928 = vadd.xlane.f32.xlu0 %v927
    %v929 = vpop.xlane.xlu0 %928
    %v930 = vsel %vm791, %v885, 0.0
    %931 = vadd.xlane.f32.xlu0 %v930
    %v932 = vpop.xlane.xlu0 %931
    %v933 = vsel %vm791, %v887, 0.0
    %934 = vadd.xlane.f32.xlu0 %v933
    %v935 = vpop.xlane.xlu0 %934
    %v936 = vrcp.pop %v890
    %v937 = vrcp.pop %v893
    %v938 = vrcp.pop %v896
    %v939 = vrcp.pop %v899
    %v940 = vrcp.pop %v902
    %v941 = vrcp.pop %v905
    %v942 = vrcp.pop %v908
    %v943 = vrcp.pop %v911
    %v944 = vrcp.pop %v914
    %v945 = vrcp.pop %v917
    %v946 = vrcp.pop %v920
    %v947 = vrcp.pop %v923
    %v948 = vrcp.pop %v926
    %v949 = vrcp.pop %v929
    %v950 = vrcp.pop %v932
    %v951 = vrcp.pop %v935
    %v952 = vmul.f32 %v857, %v936
    %v953 = vmul.f32 %v859, %v937
    %v954 = vmul.f32 %v861, %v938
    %v955 = vmul.f32 %v863, %v939
    %v956 = vmul.f32 %v865, %v940
    %v957 = vmul.f32 %v867, %v941
    %v958 = vmul.f32 %v869, %v942
    %v959 = vmul.f32 %v871, %v943
    %v960 = vmul.f32 %v873, %v944
    %v961 = vmul.f32 %v875, %v945
    %v962 = vmul.f32 %v877, %v946
    %v963 = vmul.f32 %v879, %v947
    %v964 = vmul.f32 %v881, %v948
    %v965 = vmul.f32 %v883, %v949
    %v966 = vmul.f32 %v885, %v950
    %v967 = vmul.f32 %v887, %v951
    %v968 = vld [vmem:[%s9] sm:$0xff]
    %v969 = vld [vmem:[%s9 + $0x8] sm:$0xff]
    %v970 = vld [vmem:[%s9 + $0x10] sm:$0xff]
    %v971 = vld [vmem:[%s9 + $0x18] sm:$0xff]
    %v972 = vld [vmem:[%s9 + $0x20] sm:$0xff]
    %v973 = vld [vmem:[%s9 + $0x28] sm:$0xff]
    %v974 = vld [vmem:[%s9 + $0x30] sm:$0xff]
    %v975 = vld [vmem:[%s9 + $0x38] sm:$0xff]
    %v977 = vsel %vm52, %v473, 0
    %v980 = vsel %vm52, %v474, 0
    %v983 = vsel %vm52, %v475, 0
    %v986 = vsel %vm52, %v476, 0
    %v989 = vsel %vm52, %v477, 0
    %v992 = vsel %vm52, %v478, 0
    %v995 = vsel %vm52, %v479, 0
    %v998 = vsel %vm52, %v480, 0
    %1000 = vmatprep.subr.mxu0 0.0
    %1001 = vmatpush1.xpose.msra.mxu0 %v623
    %1002 = vmatprep.subr.mxu0 0.0
    %1003 = vmatpush1.xpose.msra.mxu0 %v626
    %1004 = vmatprep.subr.mxu0 0.0
    %1005 = vmatpush1.xpose.msra.mxu0 %v629
    %1006 = vmatprep.subr.mxu0 0.0
    %1007 = vmatpush1.xpose.msra.mxu0 %v632
    %1008 = vmatprep.subr.mxu0 0.0
    %1009 = vmatpush1.xpose.msra.mxu0 %v635
    %1010 = vmatprep.subr.mxu0 0.0
    %1011 = vmatpush1.xpose.msra.mxu0 %v638
    %1012 = vmatprep.subr.mxu0 0.0
    %1013 = vmatpush1.xpose.msra.mxu0 %v641
    %1014 = vmatprep.subr.mxu0 0.0
    %1015 = vmatpush1.xpose.msra.mxu0 %v644
    %1016 = vmatprep.subr.mxu0 0.0
    %1017 = vmatpush1.xpose.msra.mxu0 0.0
    %1018 = vmatprep.subr.mxu0 0.0
    %1019 = vmatpush1.xpose.msra.mxu0 0.0
    %1020 = vmatprep.subr.mxu0 0.0
    %1021 = vmatpush1.xpose.msra.mxu0 0.0
    %1022 = vmatprep.subr.mxu0 0.0
    %1023 = vmatpush1.xpose.msra.mxu0 0.0
    %1024 = vmatprep.subr.mxu0 0.0
    %1025 = vmatpush1.xpose.msra.mxu0 0.0
    %1026 = vmatprep.subr.mxu0 0.0
    %1027 = vmatpush1.xpose.msra.mxu0 0.0
    %1028 = vmatprep.subr.mxu0 0.0
    %1029 = vmatpush1.xpose.msra.mxu0 0.0
    %1030 = vmatprep.subr.mxu0 0.0
    %1031 = vmatpush1.xpose.msra.mxu0 0.0
    %1032 = vmatprep.subr.mxu0 0.0
    %1033 = vmatpush1.xpose.msra.mxu0 0.0
    %1034 = vmatprep.subr.mxu0 0.0
    %1035 = vmatpush1.xpose.msra.mxu0 0.0
    %1036 = vmatprep.subr.mxu0 0.0
    %1037 = vmatpush1.xpose.msra.mxu0 0.0
    %1038 = vmatprep.subr.mxu0 0.0
    %1039 = vmatpush1.xpose.msra.mxu0 0.0
    %1040 = vmatprep.subr.mxu0 0.0
    %1041 = vmatpush1.xpose.msra.mxu0 0.0
    %1042 = vmatprep.subr.mxu0 0.0
    %1043 = vmatpush1.xpose.msra.mxu0 0.0
    %1044 = vmatprep.subr.mxu0 0.0
    %1045 = vmatpush1.xpose.msra.mxu0 0.0
    %1046 = vmatprep.subr.mxu0 0.0
    %1047 = vmatpush1.xpose.msra.mxu0 0.0
    %1048 = vmatprep.subr.mxu0 0.0
    %1049 = vmatpush1.xpose.msra.mxu0 0.0
    %1050 = vmatprep.subr.mxu0 0.0
    %1051 = vmatpush1.xpose.msra.mxu0 0.0
    %1052 = vmatprep.subr.mxu0 0.0
    %1053 = vmatpush1.xpose.msra.mxu0 0.0
    %1054 = vmatprep.subr.mxu0 0.0
    %1055 = vmatpush1.xpose.msra.mxu0 0.0
    %1056 = vmatprep.subr.mxu0 0.0
    %1057 = vmatpush1.xpose.msra.mxu0 0.0
    %1058 = vmatprep.subr.mxu0 0.0
    %1059 = vmatpush1.xpose.msra.mxu0 0.0
    %1060 = vmatprep.subr.mxu0 0.0
    %1061 = vmatpush1.xpose.msra.mxu0 0.0
    %1062 = vmatprep.subr.mxu0 0.0
    %1063 = vmatpush1.xpose.msra.mxu0 0.0
    %1064 = vmatprep.mubr.f32.mxu0 0.0
    %1065 = vmatmul.mubr.f32.gmra.mrb[0].mxu0 %v977
    %v1066 = vpop.f32.mrb[0].mxu0
    %v1067 = vadd.f32 %v968, %v1066
    %v1068 = vpop.f32.mrb[0].mxu0
    %1069 = vmatprep.mubr.f32.mxu0 0.0
    %1070 = vmatmul.mubr.f32.gmra.mrb[0].mxu0 %v980
    %v1071 = vpop.f32.mrb[0].mxu0
    %v1072 = vadd.f32 %v969, %v1071
    %v1073 = vpop.f32.mrb[0].mxu0
    %1074 = vmatprep.mubr.f32.mxu0 0.0
    %1075 = vmatmul.mubr.f32.gmra.mrb[0].mxu0 %v983
    %v1076 = vpop.f32.mrb[0].mxu0
    %v1077 = vadd.f32 %v970, %v1076
    %v1078 = vpop.f32.mrb[0].mxu0
    %1079 = vmatprep.mubr.f32.mxu0 0.0
    %1080 = vmatmul.mubr.f32.gmra.mrb[0].mxu0 %v986
    %v1081 = vpop.f32.mrb[0].mxu0
    %v1082 = vadd.f32 %v971, %v1081
    %v1083 = vpop.f32.mrb[0].mxu0
    %1084 = vmatprep.mubr.f32.mxu0 0.0
    %1085 = vmatmul.mubr.f32.gmra.mrb[0].mxu0 %v989
    %v1086 = vpop.f32.mrb[0].mxu0
    %v1087 = vadd.f32 %v972, %v1086
    %v1088 = vpop.f32.mrb[0].mxu0
    %1089 = vmatprep.mubr.f32.mxu0 0.0
    %1090 = vmatmul.mubr.f32.gmra.mrb[0].mxu0 %v992
    %v1091 = vpop.f32.mrb[0].mxu0
    %v1092 = vadd.f32 %v973, %v1091
    %v1093 = vpop.f32.mrb[0].mxu0
    %1094 = vmatprep.mubr.f32.mxu0 0.0
    %1095 = vmatmul.mubr.f32.gmra.mrb[0].mxu0 %v995
    %v1096 = vpop.f32.mrb[0].mxu0
    %v1097 = vadd.f32 %v974, %v1096
    %v1098 = vpop.f32.mrb[0].mxu0
    %1099 = vmatprep.mubr.f32.mxu0 0.0
    %1100 = vmatmul.mubr.f32.gmra.mrb[0].mxu0 %v998
    %v1101 = vpop.f32.mrb[0].mxu0
    %v1102 = vadd.f32 %v975, %v1101
    %v1103 = vpop.f32.mrb[0].mxu0
    %1104 = vdwg.mxu0
    %v1105 = vsel %vm791, %v1067, -inf
    %1106 = vmax.xlane.f32.xlu0 %v1105
    %v1107 = vpop.xlane.xlu0 %1106
    %v1108 = vsel %vm791, %v1072, -inf
    %1109 = vmax.xlane.f32.xlu0 %v1108
    %v1110 = vpop.xlane.xlu0 %1109
    %v1111 = vsel %vm791, %v1077, -inf
    %1112 = vmax.xlane.f32.xlu0 %v1111
    %v1113 = vpop.xlane.xlu0 %1112
    %v1114 = vsel %vm791, %v1082, -inf
    %1115 = vmax.xlane.f32.xlu0 %v1114
    %v1116 = vpop.xlane.xlu0 %1115
    %v1117 = vsel %vm791, %v1087, -inf
    %1118 = vmax.xlane.f32.xlu0 %v1117
    %v1119 = vpop.xlane.xlu0 %1118
    %v1120 = vsel %vm791, %v1092, -inf
    %1121 = vmax.xlane.f32.xlu0 %v1120
    %v1122 = vpop.xlane.xlu0 %1121
    %v1123 = vsel %vm791, %v1097, -inf
    %1124 = vmax.xlane.f32.xlu0 %v1123
    %v1125 = vpop.xlane.xlu0 %1124
    %v1126 = vsel %vm791, %v1102, -inf
    %1127 = vmax.xlane.f32.xlu0 %v1126
    %v1128 = vpop.xlane.xlu0 %1127
    %v1129 = vsub.f32 %v1067, %v1107
    %v1130 = vsub.f32 %v1072, %v1110
    %v1131 = vsub.f32 %v1077, %v1113
    %v1132 = vsub.f32 %v1082, %v1116
    %v1133 = vsub.f32 %v1087, %v1119
    %v1134 = vsub.f32 %v1092, %v1122
    %v1135 = vsub.f32 %v1097, %v1125
    %v1136 = vsub.f32 %v1102, %v1128
    %v1137 = vmul.f32 %v1129, 1.442695
    %v1138 = vpow.pop %v1137
    %v1139 = vmul.f32 %v1130, 1.442695
    %v1140 = vpow.pop %v1139
    %v1141 = vmul.f32 %v1131, 1.442695
    %v1142 = vpow.pop %v1141
    %v1143 = vmul.f32 %v1132, 1.442695
    %v1144 = vpow.pop %v1143
    %v1145 = vmul.f32 %v1133, 1.442695
    %v1146 = vpow.pop %v1145
    %v1147 = vmul.f32 %v1134, 1.442695
    %v1148 = vpow.pop %v1147
    %v1149 = vmul.f32 %v1135, 1.442695
    %v1150 = vpow.pop %v1149
    %v1151 = vmul.f32 %v1136, 1.442695
    %v1152 = vpow.pop %v1151
    %v1153 = vsel %vm791, %v1138, 0.0
    %1154 = vadd.xlane.f32.xlu0 %v1153
    %v1155 = vpop.xlane.xlu0 %1154
    %v1156 = vsel %vm791, %v1140, 0.0
    %1157 = vadd.xlane.f32.xlu0 %v1156
    %v1158 = vpop.xlane.xlu0 %1157
    %v1159 = vsel %vm791, %v1142, 0.0
    %1160 = vadd.xlane.f32.xlu0 %v1159
    %v1161 = vpop.xlane.xlu0 %1160
    %v1162 = vsel %vm791, %v1144, 0.0
    %1163 = vadd.xlane.f32.xlu0 %v1162
    %v1164 = vpop.xlane.xlu0 %1163
    %v1165 = vsel %vm791, %v1146, 0.0
    %1166 = vadd.xlane.f32.xlu0 %v1165
    %v1167 = vpop.xlane.xlu0 %1166
    %v1168 = vsel %vm791, %v1148, 0.0
    %1169 = vadd.xlane.f32.xlu0 %v1168
    %v1170 = vpop.xlane.xlu0 %1169
    %v1171 = vsel %vm791, %v1150, 0.0
    %1172 = vadd.xlane.f32.xlu0 %v1171
    %v1173 = vpop.xlane.xlu0 %1172
    %v1174 = vsel %vm791, %v1152, 0.0
    %1175 = vadd.xlane.f32.xlu0 %v1174
    %v1176 = vpop.xlane.xlu0 %1175
    %v1177 = vrcp.pop %v1155
    %v1178 = vmul.f32 %v1138, %v1177
    %v1179 = vrcp.pop %v1158
    %v1180 = vmul.f32 %v1140, %v1179
    %v1181 = vrcp.pop %v1161
    %v1182 = vmul.f32 %v1142, %v1181
    %v1183 = vrcp.pop %v1164
    %v1184 = vmul.f32 %v1144, %v1183
    %v1185 = vrcp.pop %v1167
    %v1186 = vmul.f32 %v1146, %v1185
    %v1187 = vrcp.pop %v1170
    %v1188 = vmul.f32 %v1148, %v1187
    %v1189 = vrcp.pop %v1173
    %v1190 = vmul.f32 %v1150, %v1189
    %v1191 = vrcp.pop %v1176
    %v1192 = vmul.f32 %v1152, %v1191
    %v1193 = vld [vmem:[%s10] sm:$0xff]
    %v1194 = vld [vmem:[%s10 + $0x8] sm:$0xff]
    %v1195 = vld [vmem:[%s10 + $0x10] sm:$0xff]
    %v1196 = vld [vmem:[%s10 + $0x18] sm:$0xff]
    %v1197 = vld [vmem:[%s10 + $0x20] sm:$0xff]
    %v1198 = vld [vmem:[%s10 + $0x28] sm:$0xff]
    %v1199 = vld [vmem:[%s10 + $0x30] sm:$0xff]
    %v1200 = vld [vmem:[%s10 + $0x38] sm:$0xff]
    %v1202 = vsel %vm52, %v221, 0
    %v1205 = vsel %vm52, %v226, 0
    %v1208 = vsel %vm52, %v231, 0
    %v1211 = vsel %vm52, %v236, 0
    %1213 = vmatprep.subr.mxu0 0.0
    %1214 = vmatpush1.xpose.msra.mxu0 %v1202
    %1215 = vmatprep.subr.mxu0 0.0
    %1216 = vmatpush1.xpose.msra.mxu0 %v1205
    %1217 = vmatprep.subr.mxu0 0.0
    %1218 = vmatpush1.xpose.msra.mxu0 %v1208
    %1219 = vmatprep.subr.mxu0 0.0
    %1220 = vmatpush1.xpose.msra.mxu0 %v1211
    %1221 = vmatprep.subr.mxu0 0.0
    %1222 = vmatpush1.xpose.msra.mxu0 0.0
    %1223 = vmatprep.subr.mxu0 0.0
    %1224 = vmatpush1.xpose.msra.mxu0 0.0
    %1225 = vmatprep.subr.mxu0 0.0
    %1226 = vmatpush1.xpose.msra.mxu0 0.0
    %1227 = vmatprep.subr.mxu0 0.0
    %1228 = vmatpush1.xpose.msra.mxu0 0.0
    %1229 = vmatprep.subr.mxu0 0.0
    %1230 = vmatpush1.xpose.msra.mxu0 0.0
    %1231 = vmatprep.subr.mxu0 0.0
    %1232 = vmatpush1.xpose.msra.mxu0 0.0
    %1233 = vmatprep.subr.mxu0 0.0
    %1234 = vmatpush1.xpose.msra.mxu0 0.0
    %1235 = vmatprep.subr.mxu0 0.0
    %1236 = vmatpush1.xpose.msra.mxu0 0.0
    %1237 = vmatprep.subr.mxu0 0.0
    %1238 = vmatpush1.xpose.msra.mxu0 0.0
    %1239 = vmatprep.subr.mxu0 0.0
    %1240 = vmatpush1.xpose.msra.mxu0 0.0
    %1241 = vmatprep.subr.mxu0 0.0
    %1242 = vmatpush1.xpose.msra.mxu0 0.0
    %1243 = vmatprep.subr.mxu0 0.0
    %1244 = vmatpush1.xpose.msra.mxu0 0.0
    %1245 = vmatprep.subr.mxu0 0.0
    %1246 = vmatpush1.xpose.msra.mxu0 0.0
    %1247 = vmatprep.subr.mxu0 0.0
    %1248 = vmatpush1.xpose.msra.mxu0 0.0
    %1249 = vmatprep.subr.mxu0 0.0
    %1250 = vmatpush1.xpose.msra.mxu0 0.0
    %1251 = vmatprep.subr.mxu0 0.0
    %1252 = vmatpush1.xpose.msra.mxu0 0.0
    %1253 = vmatprep.subr.mxu0 0.0
    %1254 = vmatpush1.xpose.msra.mxu0 0.0
    %1255 = vmatprep.subr.mxu0 0.0
    %1256 = vmatpush1.xpose.msra.mxu0 0.0
    %1257 = vmatprep.subr.mxu0 0.0
    %1258 = vmatpush1.xpose.msra.mxu0 0.0
    %1259 = vmatprep.subr.mxu0 0.0
    %1260 = vmatpush1.xpose.msra.mxu0 0.0
    %1261 = vmatprep.subr.mxu0 0.0
    %1262 = vmatpush1.xpose.msra.mxu0 0.0
    %1263 = vmatprep.subr.mxu0 0.0
    %1264 = vmatpush1.xpose.msra.mxu0 0.0
    %1265 = vmatprep.subr.mxu0 0.0
    %1266 = vmatpush1.xpose.msra.mxu0 0.0
    %1267 = vmatprep.subr.mxu0 0.0
    %1268 = vmatpush1.xpose.msra.mxu0 0.0
    %1269 = vmatprep.subr.mxu0 0.0
    %1270 = vmatpush1.xpose.msra.mxu0 0.0
    %1271 = vmatprep.subr.mxu0 0.0
    %1272 = vmatpush1.xpose.msra.mxu0 0.0
    %1273 = vmatprep.subr.mxu0 0.0
    %1274 = vmatpush1.xpose.msra.mxu0 0.0
    %1275 = vmatprep.subr.mxu0 0.0
    %1276 = vmatpush1.xpose.msra.mxu0 0.0
    %1277 = vmatprep.mubr.f32.mxu0 0.0
    %1278 = vmatmul.mubr.f32.gmra.mrb[0].mxu0 %v977
    %v1279 = vpop.f32.mrb[0].mxu0
    %v1280 = vadd.f32 %v1193, %v1279
    %v1281 = vpop.f32.mrb[0].mxu0
    %1282 = vmatprep.mubr.f32.mxu0 0.0
    %1283 = vmatmul.mubr.f32.gmra.mrb[0].mxu0 %v980
    %v1284 = vpop.f32.mrb[0].mxu0
    %v1285 = vadd.f32 %v1194, %v1284
    %v1286 = vpop.f32.mrb[0].mxu0
    %1287 = vmatprep.mubr.f32.mxu0 0.0
    %1288 = vmatmul.mubr.f32.gmra.mrb[0].mxu0 %v983
    %v1289 = vpop.f32.mrb[0].mxu0
    %v1290 = vadd.f32 %v1195, %v1289
    %v1291 = vpop.f32.mrb[0].mxu0
    %1292 = vmatprep.mubr.f32.mxu0 0.0
    %1293 = vmatmul.mubr.f32.gmra.mrb[0].mxu0 %v986
    %v1294 = vpop.f32.mrb[0].mxu0
    %v1295 = vadd.f32 %v1196, %v1294
    %v1296 = vpop.f32.mrb[0].mxu0
    %1297 = vmatprep.mubr.f32.mxu0 0.0
    %1298 = vmatmul.mubr.f32.gmra.mrb[0].mxu0 %v989
    %v1299 = vpop.f32.mrb[0].mxu0
    %v1300 = vadd.f32 %v1197, %v1299
    %v1301 = vpop.f32.mrb[0].mxu0
    %1302 = vmatprep.mubr.f32.mxu0 0.0
    %1303 = vmatmul.mubr.f32.gmra.mrb[0].mxu0 %v992
    %v1304 = vpop.f32.mrb[0].mxu0
    %v1305 = vadd.f32 %v1198, %v1304
    %v1306 = vpop.f32.mrb[0].mxu0
    %1307 = vmatprep.mubr.f32.mxu0 0.0
    %1308 = vmatmul.mubr.f32.gmra.mrb[0].mxu0 %v995
    %v1309 = vpop.f32.mrb[0].mxu0
    %v1310 = vadd.f32 %v1199, %v1309
    %v1311 = vpop.f32.mrb[0].mxu0
    %1312 = vmatprep.mubr.f32.mxu0 0.0
    %1313 = vmatmul.mubr.f32.gmra.mrb[0].mxu0 %v998
    %v1314 = vpop.f32.mrb[0].mxu0
    %v1315 = vadd.f32 %v1200, %v1314
    %v1316 = vpop.f32.mrb[0].mxu0
    %1317 = vdwg.mxu0
    %v1318 = vsel %vm52, %v1280, -inf
    %1319 = vmax.xlane.f32.xlu0 %v1318
    %v1320 = vpop.xlane.xlu0 %1319
    %v1321 = vsel %vm52, %v1285, -inf
    %1322 = vmax.xlane.f32.xlu0 %v1321
    %v1323 = vpop.xlane.xlu0 %1322
    %v1324 = vsel %vm52, %v1290, -inf
    %1325 = vmax.xlane.f32.xlu0 %v1324
    %v1326 = vpop.xlane.xlu0 %1325
    %v1327 = vsel %vm52, %v1295, -inf
    %1328 = vmax.xlane.f32.xlu0 %v1327
    %v1329 = vpop.xlane.xlu0 %1328
    %v1330 = vsel %vm52, %v1300, -inf
    %1331 = vmax.xlane.f32.xlu0 %v1330
    %v1332 = vpop.xlane.xlu0 %1331
    %v1333 = vsel %vm52, %v1305, -inf
    %1334 = vmax.xlane.f32.xlu0 %v1333
    %v1335 = vpop.xlane.xlu0 %1334
    %v1336 = vsel %vm52, %v1310, -inf
    %1337 = vmax.xlane.f32.xlu0 %v1336
    %v1338 = vpop.xlane.xlu0 %1337
    %v1339 = vsel %vm52, %v1315, -inf
    %1340 = vmax.xlane.f32.xlu0 %v1339
    %v1341 = vpop.xlane.xlu0 %1340
    %v1342 = vsub.f32 %v1280, %v1320
    %v1343 = vsub.f32 %v1285, %v1323
    %v1344 = vsub.f32 %v1290, %v1326
    %v1345 = vsub.f32 %v1295, %v1329
    %v1346 = vsub.f32 %v1300, %v1332
    %v1347 = vsub.f32 %v1305, %v1335
    %v1348 = vsub.f32 %v1310, %v1338
    %v1349 = vsub.f32 %v1315, %v1341
    %v1350 = vmul.f32 %v1342, 1.442695
    %v1351 = vpow.pop %v1350
    %v1352 = vmul.f32 %v1343, 1.442695
    %v1353 = vpow.pop %v1352
    %v1354 = vmul.f32 %v1344, 1.442695
    %v1355 = vpow.pop %v1354
    %v1356 = vmul.f32 %v1345, 1.442695
    %v1357 = vpow.pop %v1356
    %v1358 = vmul.f32 %v1346, 1.442695
    %v1359 = vpow.pop %v1358
    %v1360 = vmul.f32 %v1347, 1.442695
    %v1361 = vpow.pop %v1360
    %v1362 = vmul.f32 %v1348, 1.442695
    %v1363 = vpow.pop %v1362
    %v1364 = vmul.f32 %v1349, 1.442695
    %v1365 = vpow.pop %v1364
    %v1366 = vsel %vm52, %v1351, 0.0
    %1367 = vadd.xlane.f32.xlu0 %v1366
    %v1368 = vpop.xlane.xlu0 %1367
    %v1369 = vsel %vm52, %v1353, 0.0
    %1370 = vadd.xlane.f32.xlu0 %v1369
    %v1371 = vpop.xlane.xlu0 %1370
    %v1372 = vsel %vm52, %v1355, 0.0
    %1373 = vadd.xlane.f32.xlu0 %v1372
    %v1374 = vpop.xlane.xlu0 %1373
    %v1375 = vsel %vm52, %v1357, 0.0
    %1376 = vadd.xlane.f32.xlu0 %v1375
    %v1377 = vpop.xlane.xlu0 %1376
    %v1378 = vsel %vm52, %v1359, 0.0
    %1379 = vadd.xlane.f32.xlu0 %v1378
    %v1380 = vpop.xlane.xlu0 %1379
    %v1381 = vsel %vm52, %v1361, 0.0
    %1382 = vadd.xlane.f32.xlu0 %v1381
    %v1383 = vpop.xlane.xlu0 %1382
    %v1384 = vsel %vm52, %v1363, 0.0
    %1385 = vadd.xlane.f32.xlu0 %v1384
    %v1386 = vpop.xlane.xlu0 %1385
    %v1387 = vsel %vm52, %v1365, 0.0
    %1388 = vadd.xlane.f32.xlu0 %v1387
    %v1389 = vpop.xlane.xlu0 %1388
    %v1390 = vrcp.pop %v1368
    %v1391 = vrcp.pop %v1371
    %v1392 = vrcp.pop %v1374
    %v1393 = vrcp.pop %v1377
    %v1394 = vrcp.pop %v1380
    %v1395 = vrcp.pop %v1383
    %v1396 = vrcp.pop %v1386
    %v1397 = vrcp.pop %v1389
    %v1398 = vmul.f32 %v1351, %v1390
    %v1399 = vmul.f32 %v1353, %v1391
    %v1400 = vmul.f32 %v1355, %v1392
    %v1401 = vmul.f32 %v1357, %v1393
    %v1402 = vmul.f32 %v1359, %v1394
    %v1403 = vmul.f32 %v1361, %v1395
    %v1404 = vmul.f32 %v1363, %v1396
    %v1405 = vmul.f32 %v1365, %v1397
    %v1406 = vand.u32 2147483647, %v1178
    %v1407 = vand.u32 2147483647, %v1180
    %v1408 = vand.u32 2147483647, %v1182
    %v1409 = vand.u32 2147483647, %v1184
    %v1410 = vand.u32 2147483647, %v1186
    %v1411 = vand.u32 2147483647, %v1188
    %v1412 = vand.u32 2147483647, %v1190
    %v1413 = vand.u32 2147483647, %v1192
    %v1414 = vsel %vm791, %v1406, 0.0
    %1415 = vadd.xlane.f32.xlu0 %v1414
    %v1416 = vpop.xlane.xlu0 %1415
    %v1417 = vsel %vm791, %v1407, 0.0
    %1418 = vadd.xlane.f32.xlu0 %v1417
    %v1419 = vpop.xlane.xlu0 %1418
    %v1420 = vsel %vm791, %v1408, 0.0
    %1421 = vadd.xlane.f32.xlu0 %v1420
    %v1422 = vpop.xlane.xlu0 %1421
    %v1423 = vsel %vm791, %v1409, 0.0
    %1424 = vadd.xlane.f32.xlu0 %v1423
    %v1425 = vpop.xlane.xlu0 %1424
    %v1426 = vsel %vm791, %v1410, 0.0
    %1427 = vadd.xlane.f32.xlu0 %v1426
    %v1428 = vpop.xlane.xlu0 %1427
    %v1429 = vsel %vm791, %v1411, 0.0
    %1430 = vadd.xlane.f32.xlu0 %v1429
    %v1431 = vpop.xlane.xlu0 %1430
    %v1432 = vsel %vm791, %v1412, 0.0
    %1433 = vadd.xlane.f32.xlu0 %v1432
    %v1434 = vpop.xlane.xlu0 %1433
    %v1435 = vsel %vm791, %v1413, 0.0
    %1436 = vadd.xlane.f32.xlu0 %v1435
    %v1437 = vpop.xlane.xlu0 %1436
    %v1438 = vmax.f32 %v1416, %v1428
    %v1439 = vmax.f32 %v1419, %v1431
    %v1440 = vmax.f32 %v1422, %v1434
    %v1441 = vmax.f32 %v1425, %v1437
    %v1442 = vmax.f32 %v1438, %v1439
    %v1443 = vmax.f32 %v1440, %v1441
    %v1444 = vmax.f32 %v1442, %v1443
    %v1445 = vrot.slane %v1444, 4
    %v1446 = vmax.f32 %v1444, %v1445
    %v1447 = vrot.slane %v1446, 2
    %v1448 = vmax.f32 %v1446, %v1447
    %v1449 = vrot.slane %v1448, 1
    %v1450 = vmax.f32 %v1448, %v1449
    %s1451 = vtos %v1450
    %v1452 = vadd.f32 %v1414, %v1417
    %v1453 = vadd.f32 %v1452, %v1420
    %v1454 = vadd.f32 %v1453, %v1423
    %v1455 = vadd.f32 %v1454, %v1426
    %v1456 = vadd.f32 %v1455, %v1429
    %v1457 = vadd.f32 %v1456, %v1432
    %v1458 = vadd.f32 %v1457, %v1435
    %v1459 = vrot.slane %v1458, 4
    %v1460 = vadd.f32 %v1458, %v1459
    %v1461 = vrot.slane %v1460, 2
    %v1462 = vadd.f32 %v1460, %v1461
    %v1463 = vrot.slane %v1462, 1
    %v1464 = vadd.f32 %v1462, %v1463
    %v1465 = vsel %vm791, %v1464, -inf
    %1466 = vmax.xlane.f32.xlu0 %v1465
    %v1467 = vpop.xlane.xlu0 %1466
    %s1468 = vtos %v1467
    %s1469 = smul.f32 %s1451, %s1468
    %v1470 = vstv %s1469
    %v1471 = vrcp.pop %v1470
    %s1472 = vtos %v1471
    %v1473 = vld [vmem:[%s11] sm:$0xff]
    %v1474 = vld [vmem:[%s11 + $0x8] sm:$0xff]
    %v1475 = vld [vmem:[%s11 + $0x10] sm:$0xff]
    %v1476 = vld [vmem:[%s11 + $0x18] sm:$0xff]
    %v1477 = vld [vmem:[%s11 + $0x20] sm:$0xff]
    %v1478 = vld [vmem:[%s11 + $0x28] sm:$0xff]
    %v1479 = vld [vmem:[%s11 + $0x30] sm:$0xff]
    %v1480 = vld [vmem:[%s11 + $0x38] sm:$0xff]
    %1481 = vxpose.xlu0.b32.start [1/16] %v1178, 128
    %1482 = vxpose.xlu0.b32.cont [2/16] %v1180, 128
    %1483 = vxpose.xlu0.b32.cont [3/16] %v1182, 128
    %1484 = vxpose.xlu0.b32.cont [4/16] %v1184, 128
    %1485 = vxpose.xlu0.b32.cont [5/16] %v1186, 128
    %1486 = vxpose.xlu0.b32.cont [6/16] %v1188, 128
    %1487 = vxpose.xlu0.b32.cont [7/16] %v1190, 128
    %1488 = vxpose.xlu0.b32.cont [8/16] %v1192, 128
    %1489 = vxpose.xlu0.b32.cont [9/16] 0.0, 128
    %1490 = vxpose.xlu0.b32.cont [10/16] 0.0, 128
    %1491 = vxpose.xlu0.b32.cont [11/16] 0.0, 128
    %1492 = vxpose.xlu0.b32.cont [12/16] 0.0, 128
    %1493 = vxpose.xlu0.b32.cont [13/16] 0.0, 128
    %1494 = vxpose.xlu0.b32.cont [14/16] 0.0, 128
    %1495 = vxpose.xlu0.b32.cont [15/16] 0.0, 128
    %1496 = vxpose.xlu0.b32.end [16/16] 0.0, 128
    %v1497 = vpop.trf.xlu0
    %v1498 = vpop.trf.xlu0
    %v1499 = vpop.trf.xlu0
    %v1500 = vpop.trf.xlu0
    %v1501 = vpop.trf.xlu0
    %v1502 = vpop.trf.xlu0
    %v1503 = vpop.trf.xlu0
    %v1504 = vpop.trf.xlu0
    %v1505 = vpop.trf.xlu0
    %v1506 = vpop.trf.xlu0
    %v1507 = vpop.trf.xlu0
    %v1508 = vpop.trf.xlu0
    %v1509 = vpop.trf.xlu0
    %v1510 = vpop.trf.xlu0
    %v1511 = vpop.trf.xlu0
    %v1512 = vpop.trf.xlu0
    %v1513 = vstv %s1472
    %v1514 = vmul.f32 %v1497, %v1513
    %v1515 = vmul.f32 %v1498, %v1513
    %v1516 = vmul.f32 %v1499, %v1513
    %v1517 = vmul.f32 %v1500, %v1513
    %v1518 = vmul.f32 %v1501, %v1513
    %v1519 = vmul.f32 %v1502, %v1513
    %v1520 = vmul.f32 %v1503, %v1513
    %v1521 = vmul.f32 %v1504, %v1513
    %v1523 = vsel %vm791, %v1178, 0
    %v1526 = vsel %vm791, %v1180, 0
    %v1529 = vsel %vm791, %v1182, 0
    %v1532 = vsel %vm791, %v1184, 0
    %v1535 = vsel %vm791, %v1186, 0
    %v1538 = vsel %vm791, %v1188, 0
    %v1541 = vsel %vm791, %v1190, 0
    %v1544 = vsel %vm791, %v1192, 0
    %1546 = vmatprep.subr.mxu0 0.0
    %1547 = vmatpush1.msra.mxu0 %v1514
    %1548 = vmatprep.subr.mxu0 0.0
    %1549 = vmatpush1.msra.mxu0 %v1515
    %1550 = vmatprep.subr.mxu0 0.0
    %1551 = vmatpush1.msra.mxu0 %v1516
    %1552 = vmatprep.subr.mxu0 0.0
    %1553 = vmatpush1.msra.mxu0 %v1517
    %1554 = vmatprep.subr.mxu0 0.0
    %1555 = vmatpush1.msra.mxu0 %v1518
    %1556 = vmatprep.subr.mxu0 0.0
    %1557 = vmatpush1.msra.mxu0 %v1519
    %1558 = vmatprep.subr.mxu0 0.0
    %1559 = vmatpush1.msra.mxu0 %v1520
    %1560 = vmatprep.subr.mxu0 0.0
    %1561 = vmatpush1.msra.mxu0 %v1521
    %1562 = vmatprep.subr.mxu0 0.0
    %1563 = vmatpush1.msra.mxu0 0.0
    %1564 = vmatprep.subr.mxu0 0.0
    %1565 = vmatpush1.msra.mxu0 0.0
    %1566 = vmatprep.subr.mxu0 0.0
    %1567 = vmatpush1.msra.mxu0 0.0
    %1568 = vmatprep.subr.mxu0 0.0
    %1569 = vmatpush1.msra.mxu0 0.0
    %1570 = vmatprep.subr.mxu0 0.0
    %1571 = vmatpush1.msra.mxu0 0.0
    %1572 = vmatprep.subr.mxu0 0.0
    %1573 = vmatpush1.msra.mxu0 0.0
    %1574 = vmatprep.subr.mxu0 0.0
    %1575 = vmatpush1.msra.mxu0 0.0
    %1576 = vmatprep.subr.mxu0 0.0
    %1577 = vmatpush1.msra.mxu0 0.0
    %1578 = vmatprep.subr.mxu0 0.0
    %1579 = vmatpush1.msra.mxu0 0.0
    %1580 = vmatprep.subr.mxu0 0.0
    %1581 = vmatpush1.msra.mxu0 0.0
    %1582 = vmatprep.subr.mxu0 0.0
    %1583 = vmatpush1.msra.mxu0 0.0
    %1584 = vmatprep.subr.mxu0 0.0
    %1585 = vmatpush1.msra.mxu0 0.0
    %1586 = vmatprep.subr.mxu0 0.0
    %1587 = vmatpush1.msra.mxu0 0.0
    %1588 = vmatprep.subr.mxu0 0.0
    %1589 = vmatpush1.msra.mxu0 0.0
    %1590 = vmatprep.subr.mxu0 0.0
    %1591 = vmatpush1.msra.mxu0 0.0
    %1592 = vmatprep.subr.mxu0 0.0
    %1593 = vmatpush1.msra.mxu0 0.0
    %1594 = vmatprep.subr.mxu0 0.0
    %1595 = vmatpush1.msra.mxu0 0.0
    %1596 = vmatprep.subr.mxu0 0.0
    %1597 = vmatpush1.msra.mxu0 0.0
    %1598 = vmatprep.subr.mxu0 0.0
    %1599 = vmatpush1.msra.mxu0 0.0
    %1600 = vmatprep.subr.mxu0 0.0
    %1601 = vmatpush1.msra.mxu0 0.0
    %1602 = vmatprep.subr.mxu0 0.0
    %1603 = vmatpush1.msra.mxu0 0.0
    %1604 = vmatprep.subr.mxu0 0.0
    %1605 = vmatpush1.msra.mxu0 0.0
    %1606 = vmatprep.subr.mxu0 0.0
    %1607 = vmatpush1.msra.mxu0 0.0
    %1608 = vmatprep.subr.mxu0 0.0
    %1609 = vmatpush1.msra.mxu0 0.0
    %1610 = vmatprep.mubr.f32.mxu0 0.0
    %1611 = vmatmul.mubr.f32.gmra.mrb[0].mxu0 %v1523
    %v1612 = vpop.f32.mrb[0].mxu0
    %v1613 = vadd.f32 0.0, %v1612
    %v1614 = vpop.f32.mrb[0].mxu0
    %1615 = vmatprep.mubr.f32.mxu0 0.0
    %1616 = vmatmul.mubr.f32.gmra.mrb[0].mxu0 %v1526
    %v1617 = vpop.f32.mrb[0].mxu0
    %v1618 = vadd.f32 0.0, %v1617
    %v1619 = vpop.f32.mrb[0].mxu0
    %1620 = vmatprep.mubr.f32.mxu0 0.0
    %1621 = vmatmul.mubr.f32.gmra.mrb[0].mxu0 %v1529
    %v1622 = vpop.f32.mrb[0].mxu0
    %v1623 = vadd.f32 0.0, %v1622
    %v1624 = vpop.f32.mrb[0].mxu0
    %1625 = vmatprep.mubr.f32.mxu0 0.0
    %1626 = vmatmul.mubr.f32.gmra.mrb[0].mxu0 %v1532
    %v1627 = vpop.f32.mrb[0].mxu0
    %v1628 = vadd.f32 0.0, %v1627
    %v1629 = vpop.f32.mrb[0].mxu0
    %1630 = vmatprep.mubr.f32.mxu0 0.0
    %1631 = vmatmul.mubr.f32.gmra.mrb[0].mxu0 %v1535
    %v1632 = vpop.f32.mrb[0].mxu0
    %v1633 = vadd.f32 0.0, %v1632
    %v1634 = vpop.f32.mrb[0].mxu0
    %1635 = vmatprep.mubr.f32.mxu0 0.0
    %1636 = vmatmul.mubr.f32.gmra.mrb[0].mxu0 %v1538
    %v1637 = vpop.f32.mrb[0].mxu0
    %v1638 = vadd.f32 0.0, %v1637
    %v1639 = vpop.f32.mrb[0].mxu0
    %1640 = vmatprep.mubr.f32.mxu0 0.0
    %1641 = vmatmul.mubr.f32.gmra.mrb[0].mxu0 %v1541
    %v1642 = vpop.f32.mrb[0].mxu0
    %v1643 = vadd.f32 0.0, %v1642
    %v1644 = vpop.f32.mrb[0].mxu0
    %1645 = vmatprep.mubr.f32.mxu0 0.0
    %1646 = vmatmul.mubr.f32.gmra.mrb[0].mxu0 %v1544
    %v1647 = vpop.f32.mrb[0].mxu0
    %v1648 = vadd.f32 0.0, %v1647
    %v1649 = vpop.f32.mrb[0].mxu0
    %1650 = vdwg.mxu0
    %v1651 = vmul.f32 %v1473, 7.0
    %v1652 = vmul.f32 %v1474, 7.0
    %v1653 = vmul.f32 %v1475, 7.0
    %v1654 = vmul.f32 %v1476, 7.0
    %v1655 = vmul.f32 %v1477, 7.0
    %v1656 = vmul.f32 %v1478, 7.0
    %v1657 = vmul.f32 %v1479, 7.0
    %v1658 = vmul.f32 %v1480, 7.0
    %v1659 = vsub.f32 %v1651, %v1613
    %v1660 = vsub.f32 %v1652, %v1618
    %v1661 = vsub.f32 %v1653, %v1623
    %v1662 = vsub.f32 %v1654, %v1628
    %v1663 = vsub.f32 %v1655, %v1633
    %v1664 = vsub.f32 %v1656, %v1638
    %v1665 = vsub.f32 %v1657, %v1643
    %v1666 = vsub.f32 %v1658, %v1648
    %v1667 = vmul.f32 %v1473, 15.0
    %v1668 = vmul.f32 %v1474, 15.0
    %v1669 = vmul.f32 %v1475, 15.0
    %v1670 = vmul.f32 %v1476, 15.0
    %v1671 = vmul.f32 %v1477, 15.0
    %v1672 = vmul.f32 %v1478, 15.0
    %v1673 = vmul.f32 %v1479, 15.0
    %v1674 = vmul.f32 %v1480, 15.0
    %v1676 = vsel %vm791, %v1613, 0
    %v1679 = vsel %vm791, %v1618, 0
    %v1682 = vsel %vm791, %v1623, 0
    %v1685 = vsel %vm791, %v1628, 0
    %v1688 = vsel %vm791, %v1633, 0
    %v1691 = vsel %vm791, %v1638, 0
    %v1694 = vsel %vm791, %v1643, 0
    %v1697 = vsel %vm791, %v1648, 0
    %1699 = vmatprep.subr.mxu0 0.0
    %1700 = vmatpush1.msra.mxu0 %v1659
    %1701 = vmatprep.subr.mxu0 0.0
    %1702 = vmatpush1.msra.mxu0 %v1660
    %1703 = vmatprep.subr.mxu0 0.0
    %1704 = vmatpush1.msra.mxu0 %v1661
    %1705 = vmatprep.subr.mxu0 0.0
    %1706 = vmatpush1.msra.mxu0 %v1662
    %1707 = vmatprep.subr.mxu0 0.0
    %1708 = vmatpush1.msra.mxu0 %v1663
    %1709 = vmatprep.subr.mxu0 0.0
    %1710 = vmatpush1.msra.mxu0 %v1664
    %1711 = vmatprep.subr.mxu0 0.0
    %1712 = vmatpush1.msra.mxu0 %v1665
    %1713 = vmatprep.subr.mxu0 0.0
    %1714 = vmatpush1.msra.mxu0 %v1666
    %1715 = vmatprep.subr.mxu0 0.0
    %1716 = vmatpush1.msra.mxu0 0.0
    %1717 = vmatprep.subr.mxu0 0.0
    %1718 = vmatpush1.msra.mxu0 0.0
    %1719 = vmatprep.subr.mxu0 0.0
    %1720 = vmatpush1.msra.mxu0 0.0
    %1721 = vmatprep.subr.mxu0 0.0
    %1722 = vmatpush1.msra.mxu0 0.0
    %1723 = vmatprep.subr.mxu0 0.0
    %1724 = vmatpush1.msra.mxu0 0.0
    %1725 = vmatprep.subr.mxu0 0.0
    %1726 = vmatpush1.msra.mxu0 0.0
    %1727 = vmatprep.subr.mxu0 0.0
    %1728 = vmatpush1.msra.mxu0 0.0
    %1729 = vmatprep.subr.mxu0 0.0
    %1730 = vmatpush1.msra.mxu0 0.0
    %1731 = vmatprep.subr.mxu0 0.0
    %1732 = vmatpush1.msra.mxu0 0.0
    %1733 = vmatprep.subr.mxu0 0.0
    %1734 = vmatpush1.msra.mxu0 0.0
    %1735 = vmatprep.subr.mxu0 0.0
    %1736 = vmatpush1.msra.mxu0 0.0
    %1737 = vmatprep.subr.mxu0 0.0
    %1738 = vmatpush1.msra.mxu0 0.0
    %1739 = vmatprep.subr.mxu0 0.0
    %1740 = vmatpush1.msra.mxu0 0.0
    %1741 = vmatprep.subr.mxu0 0.0
    %1742 = vmatpush1.msra.mxu0 0.0
    %1743 = vmatprep.subr.mxu0 0.0
    %1744 = vmatpush1.msra.mxu0 0.0
    %1745 = vmatprep.subr.mxu0 0.0
    %1746 = vmatpush1.msra.mxu0 0.0
    %1747 = vmatprep.subr.mxu0 0.0
    %1748 = vmatpush1.msra.mxu0 0.0
    %1749 = vmatprep.subr.mxu0 0.0
    %1750 = vmatpush1.msra.mxu0 0.0
    %1751 = vmatprep.subr.mxu0 0.0
    %1752 = vmatpush1.msra.mxu0 0.0
    %1753 = vmatprep.subr.mxu0 0.0
    %1754 = vmatpush1.msra.mxu0 0.0
    %1755 = vmatprep.subr.mxu0 0.0
    %1756 = vmatpush1.msra.mxu0 0.0
    %1757 = vmatprep.subr.mxu0 0.0
    %1758 = vmatpush1.msra.mxu0 0.0
    %1759 = vmatprep.subr.mxu0 0.0
    %1760 = vmatpush1.msra.mxu0 0.0
    %1761 = vmatprep.subr.mxu0 0.0
    %1762 = vmatpush1.msra.mxu0 0.0
    %1763 = vmatprep.mubr.f32.mxu0 0.0
    %1764 = vmatmul.mubr.f32.gmra.mrb[0].mxu0 %v1676
    %v1765 = vpop.f32.mrb[0].mxu0
    %v1766 = vadd.f32 0.0, %v1765
    %v1767 = vpop.f32.mrb[0].mxu0
    %1768 = vmatprep.mubr.f32.mxu0 0.0
    %1769 = vmatmul.mubr.f32.gmra.mrb[0].mxu0 %v1679
    %v1770 = vpop.f32.mrb[0].mxu0
    %v1771 = vadd.f32 0.0, %v1770
    %v1772 = vpop.f32.mrb[0].mxu0
    %1773 = vmatprep.mubr.f32.mxu0 0.0
    %1774 = vmatmul.mubr.f32.gmra.mrb[0].mxu0 %v1682
    %v1775 = vpop.f32.mrb[0].mxu0
    %v1776 = vadd.f32 0.0, %v1775
    %v1777 = vpop.f32.mrb[0].mxu0
    %1778 = vmatprep.mubr.f32.mxu0 0.0
    %1779 = vmatmul.mubr.f32.gmra.mrb[0].mxu0 %v1685
    %v1780 = vpop.f32.mrb[0].mxu0
    %v1781 = vadd.f32 0.0, %v1780
    %v1782 = vpop.f32.mrb[0].mxu0
    %1783 = vmatprep.mubr.f32.mxu0 0.0
    %1784 = vmatmul.mubr.f32.gmra.mrb[0].mxu0 %v1688
    %v1785 = vpop.f32.mrb[0].mxu0
    %v1786 = vadd.f32 0.0, %v1785
    %v1787 = vpop.f32.mrb[0].mxu0
    %1788 = vmatprep.mubr.f32.mxu0 0.0
    %1789 = vmatmul.mubr.f32.gmra.mrb[0].mxu0 %v1691
    %v1790 = vpop.f32.mrb[0].mxu0
    %v1791 = vadd.f32 0.0, %v1790
    %v1792 = vpop.f32.mrb[0].mxu0
    %1793 = vmatprep.mubr.f32.mxu0 0.0
    %1794 = vmatmul.mubr.f32.gmra.mrb[0].mxu0 %v1694
    %v1795 = vpop.f32.mrb[0].mxu0
    %v1796 = vadd.f32 0.0, %v1795
    %v1797 = vpop.f32.mrb[0].mxu0
    %1798 = vmatprep.mubr.f32.mxu0 0.0
    %1799 = vmatmul.mubr.f32.gmra.mrb[0].mxu0 %v1697
    %v1800 = vpop.f32.mrb[0].mxu0
    %v1801 = vadd.f32 0.0, %v1800
    %v1802 = vpop.f32.mrb[0].mxu0
    %1803 = vdwg.mxu0
    %v1804 = vsub.f32 %v1667, %v1766
    %v1805 = vsub.f32 %v1668, %v1771
    %v1806 = vsub.f32 %v1669, %v1776
    %v1807 = vsub.f32 %v1670, %v1781
    %v1808 = vsub.f32 %v1671, %v1786
    %v1809 = vsub.f32 %v1672, %v1791
    %v1810 = vsub.f32 %v1673, %v1796
    %v1811 = vsub.f32 %v1674, %v1801
    %v1812 = vmul.f32 %v1473, 13.0
    %v1813 = vmul.f32 %v1474, 13.0
    %v1814 = vmul.f32 %v1475, 13.0
    %v1815 = vmul.f32 %v1476, 13.0
    %v1816 = vmul.f32 %v1477, 13.0
    %v1817 = vmul.f32 %v1478, 13.0
    %v1818 = vmul.f32 %v1479, 13.0
    %v1819 = vmul.f32 %v1480, 13.0
    %1820 = vmatprep.subr.mxu0 0.0
    %1821 = vmatpush1.msra.mxu0 %v1804
    %1822 = vmatprep.subr.mxu0 0.0
    %1823 = vmatpush1.msra.mxu0 %v1805
    %1824 = vmatprep.subr.mxu0 0.0
    %1825 = vmatpush1.msra.mxu0 %v1806
    %1826 = vmatprep.subr.mxu0 0.0
    %1827 = vmatpush1.msra.mxu0 %v1807
    %1828 = vmatprep.subr.mxu0 0.0
    %1829 = vmatpush1.msra.mxu0 %v1808
    %1830 = vmatprep.subr.mxu0 0.0
    %1831 = vmatpush1.msra.mxu0 %v1809
    %1832 = vmatprep.subr.mxu0 0.0
    %1833 = vmatpush1.msra.mxu0 %v1810
    %1834 = vmatprep.subr.mxu0 0.0
    %1835 = vmatpush1.msra.mxu0 %v1811
    %1836 = vmatprep.subr.mxu0 0.0
    %1837 = vmatpush1.msra.mxu0 0.0
    %1838 = vmatprep.subr.mxu0 0.0
    %1839 = vmatpush1.msra.mxu0 0.0
    %1840 = vmatprep.subr.mxu0 0.0
    %1841 = vmatpush1.msra.mxu0 0.0
    %1842 = vmatprep.subr.mxu0 0.0
    %1843 = vmatpush1.msra.mxu0 0.0
    %1844 = vmatprep.subr.mxu0 0.0
    %1845 = vmatpush1.msra.mxu0 0.0
    %1846 = vmatprep.subr.mxu0 0.0
    %1847 = vmatpush1.msra.mxu0 0.0
    %1848 = vmatprep.subr.mxu0 0.0
    %1849 = vmatpush1.msra.mxu0 0.0
    %1850 = vmatprep.subr.mxu0 0.0
    %1851 = vmatpush1.msra.mxu0 0.0
    %1852 = vmatprep.subr.mxu0 0.0
    %1853 = vmatpush1.msra.mxu0 0.0
    %1854 = vmatprep.subr.mxu0 0.0
    %1855 = vmatpush1.msra.mxu0 0.0
    %1856 = vmatprep.subr.mxu0 0.0
    %1857 = vmatpush1.msra.mxu0 0.0
    %1858 = vmatprep.subr.mxu0 0.0
    %1859 = vmatpush1.msra.mxu0 0.0
    %1860 = vmatprep.subr.mxu0 0.0
    %1861 = vmatpush1.msra.mxu0 0.0
    %1862 = vmatprep.subr.mxu0 0.0
    %1863 = vmatpush1.msra.mxu0 0.0
    %1864 = vmatprep.subr.mxu0 0.0
    %1865 = vmatpush1.msra.mxu0 0.0
    %1866 = vmatprep.subr.mxu0 0.0
    %1867 = vmatpush1.msra.mxu0 0.0
    %1868 = vmatprep.subr.mxu0 0.0
    %1869 = vmatpush1.msra.mxu0 0.0
    %1870 = vmatprep.subr.mxu0 0.0
    %1871 = vmatpush1.msra.mxu0 0.0
    %1872 = vmatprep.subr.mxu0 0.0
    %1873 = vmatpush1.msra.mxu0 0.0
    %1874 = vmatprep.subr.mxu0 0.0
    %1875 = vmatpush1.msra.mxu0 0.0
    %1876 = vmatprep.subr.mxu0 0.0
    %1877 = vmatpush1.msra.mxu0 0.0
    %1878 = vmatprep.subr.mxu0 0.0
    %1879 = vmatpush1.msra.mxu0 0.0
    %1880 = vmatprep.subr.mxu0 0.0
    %1881 = vmatpush1.msra.mxu0 0.0
    %1882 = vmatprep.subr.mxu0 0.0
    %1883 = vmatpush1.msra.mxu0 0.0
    %1884 = vmatprep.mubr.f32.mxu0 0.0
    %1885 = vmatmul.mubr.f32.gmra.mrb[0].mxu0 %v1676
    %v1886 = vpop.f32.mrb[0].mxu0
    %v1887 = vadd.f32 0.0, %v1886
    %v1888 = vpop.f32.mrb[0].mxu0
    %1889 = vmatprep.mubr.f32.mxu0 0.0
    %1890 = vmatmul.mubr.f32.gmra.mrb[0].mxu0 %v1679
    %v1891 = vpop.f32.mrb[0].mxu0
    %v1892 = vadd.f32 0.0, %v1891
    %v1893 = vpop.f32.mrb[0].mxu0
    %1894 = vmatprep.mubr.f32.mxu0 0.0
    %1895 = vmatmul.mubr.f32.gmra.mrb[0].mxu0 %v1682
    %v1896 = vpop.f32.mrb[0].mxu0
    %v1897 = vadd.f32 0.0, %v1896
    %v1898 = vpop.f32.mrb[0].mxu0
    %1899 = vmatprep.mubr.f32.mxu0 0.0
    %1900 = vmatmul.mubr.f32.gmra.mrb[0].mxu0 %v1685
    %v1901 = vpop.f32.mrb[0].mxu0
    %v1902 = vadd.f32 0.0, %v1901
    %v1903 = vpop.f32.mrb[0].mxu0
    %1904 = vmatprep.mubr.f32.mxu0 0.0
    %1905 = vmatmul.mubr.f32.gmra.mrb[0].mxu0 %v1688
    %v1906 = vpop.f32.mrb[0].mxu0
    %v1907 = vadd.f32 0.0, %v1906
    %v1908 = vpop.f32.mrb[0].mxu0
    %1909 = vmatprep.mubr.f32.mxu0 0.0
    %1910 = vmatmul.mubr.f32.gmra.mrb[0].mxu0 %v1691
    %v1911 = vpop.f32.mrb[0].mxu0
    %v1912 = vadd.f32 0.0, %v1911
    %v1913 = vpop.f32.mrb[0].mxu0
    %1914 = vmatprep.mubr.f32.mxu0 0.0
    %1915 = vmatmul.mubr.f32.gmra.mrb[0].mxu0 %v1694
    %v1916 = vpop.f32.mrb[0].mxu0
    %v1917 = vadd.f32 0.0, %v1916
    %v1918 = vpop.f32.mrb[0].mxu0
    %1919 = vmatprep.mubr.f32.mxu0 0.0
    %1920 = vmatmul.mubr.f32.gmra.mrb[0].mxu0 %v1697
    %v1921 = vpop.f32.mrb[0].mxu0
    %v1922 = vadd.f32 0.0, %v1921
    %v1923 = vpop.f32.mrb[0].mxu0
    %1924 = vdwg.mxu0
    %v1925 = vsub.f32 %v1812, %v1887
    %v1926 = vsub.f32 %v1813, %v1892
    %v1927 = vsub.f32 %v1814, %v1897
    %v1928 = vsub.f32 %v1815, %v1902
    %v1929 = vsub.f32 %v1816, %v1907
    %v1930 = vsub.f32 %v1817, %v1912
    %v1931 = vsub.f32 %v1818, %v1917
    %v1932 = vsub.f32 %v1819, %v1922
    %v1934 = vsel %vm791, %v1514, 0
    %v1937 = vsel %vm791, %v1515, 0
    %v1940 = vsel %vm791, %v1516, 0
    %v1943 = vsel %vm791, %v1517, 0
    %v1946 = vsel %vm791, %v1518, 0
    %v1949 = vsel %vm791, %v1519, 0
    %v1952 = vsel %vm791, %v1520, 0
    %v1955 = vsel %vm791, %v1521, 0
    %1957 = vmatprep.subr.mxu0 0.0
    %1958 = vmatpush1.msra.mxu0 %v1925
    %1959 = vmatprep.subr.mxu0 0.0
    %1960 = vmatpush1.msra.mxu0 %v1926
    %1961 = vmatprep.subr.mxu0 0.0
    %1962 = vmatpush1.msra.mxu0 %v1927
    %1963 = vmatprep.subr.mxu0 0.0
    %1964 = vmatpush1.msra.mxu0 %v1928
    %1965 = vmatprep.subr.mxu0 0.0
    %1966 = vmatpush1.msra.mxu0 %v1929
    %1967 = vmatprep.subr.mxu0 0.0
    %1968 = vmatpush1.msra.mxu0 %v1930
    %1969 = vmatprep.subr.mxu0 0.0
    %1970 = vmatpush1.msra.mxu0 %v1931
    %1971 = vmatprep.subr.mxu0 0.0
    %1972 = vmatpush1.msra.mxu0 %v1932
    %1973 = vmatprep.subr.mxu0 0.0
    %1974 = vmatpush1.msra.mxu0 0.0
    %1975 = vmatprep.subr.mxu0 0.0
    %1976 = vmatpush1.msra.mxu0 0.0
    %1977 = vmatprep.subr.mxu0 0.0
    %1978 = vmatpush1.msra.mxu0 0.0
    %1979 = vmatprep.subr.mxu0 0.0
    %1980 = vmatpush1.msra.mxu0 0.0
    %1981 = vmatprep.subr.mxu0 0.0
    %1982 = vmatpush1.msra.mxu0 0.0
    %1983 = vmatprep.subr.mxu0 0.0
    %1984 = vmatpush1.msra.mxu0 0.0
    %1985 = vmatprep.subr.mxu0 0.0
    %1986 = vmatpush1.msra.mxu0 0.0
    %1987 = vmatprep.subr.mxu0 0.0
    %1988 = vmatpush1.msra.mxu0 0.0
    %1989 = vmatprep.subr.mxu0 0.0
    %1990 = vmatpush1.msra.mxu0 0.0
    %1991 = vmatprep.subr.mxu0 0.0
    %1992 = vmatpush1.msra.mxu0 0.0
    %1993 = vmatprep.subr.mxu0 0.0
    %1994 = vmatpush1.msra.mxu0 0.0
    %1995 = vmatprep.subr.mxu0 0.0
    %1996 = vmatpush1.msra.mxu0 0.0
    %1997 = vmatprep.subr.mxu0 0.0
    %1998 = vmatpush1.msra.mxu0 0.0
    %1999 = vmatprep.subr.mxu0 0.0
    %2000 = vmatpush1.msra.mxu0 0.0
    %2001 = vmatprep.subr.mxu0 0.0
    %2002 = vmatpush1.msra.mxu0 0.0
    %2003 = vmatprep.subr.mxu0 0.0
    %2004 = vmatpush1.msra.mxu0 0.0
    %2005 = vmatprep.subr.mxu0 0.0
    %2006 = vmatpush1.msra.mxu0 0.0
    %2007 = vmatprep.subr.mxu0 0.0
    %2008 = vmatpush1.msra.mxu0 0.0
    %2009 = vmatprep.subr.mxu0 0.0
    %2010 = vmatpush1.msra.mxu0 0.0
    %2011 = vmatprep.subr.mxu0 0.0
    %2012 = vmatpush1.msra.mxu0 0.0
    %2013 = vmatprep.subr.mxu0 0.0
    %2014 = vmatpush1.msra.mxu0 0.0
    %2015 = vmatprep.subr.mxu0 0.0
    %2016 = vmatpush1.msra.mxu0 0.0
    %2017 = vmatprep.subr.mxu0 0.0
    %2018 = vmatpush1.msra.mxu0 0.0
    %2019 = vmatprep.subr.mxu0 0.0
    %2020 = vmatpush1.msra.mxu0 0.0
    %2021 = vmatprep.mubr.f32.mxu0 0.0
    %2022 = vmatmul.mubr.f32.gmra.mrb[0].mxu0 %v1934
    %v2023 = vpop.f32.mrb[0].mxu0
    %v2024 = vadd.f32 0.0, %v2023
    %v2025 = vpop.f32.mrb[0].mxu0
    %2026 = vmatprep.mubr.f32.mxu0 0.0
    %2027 = vmatmul.mubr.f32.gmra.mrb[0].mxu0 %v1937
    %v2028 = vpop.f32.mrb[0].mxu0
    %v2029 = vadd.f32 0.0, %v2028
    %v2030 = vpop.f32.mrb[0].mxu0
    %2031 = vmatprep.mubr.f32.mxu0 0.0
    %2032 = vmatmul.mubr.f32.gmra.mrb[0].mxu0 %v1940
    %v2033 = vpop.f32.mrb[0].mxu0
    %v2034 = vadd.f32 0.0, %v2033
    %v2035 = vpop.f32.mrb[0].mxu0
    %2036 = vmatprep.mubr.f32.mxu0 0.0
    %2037 = vmatmul.mubr.f32.gmra.mrb[0].mxu0 %v1943
    %v2038 = vpop.f32.mrb[0].mxu0
    %v2039 = vadd.f32 0.0, %v2038
    %v2040 = vpop.f32.mrb[0].mxu0
    %2041 = vmatprep.mubr.f32.mxu0 0.0
    %2042 = vmatmul.mubr.f32.gmra.mrb[0].mxu0 %v1946
    %v2043 = vpop.f32.mrb[0].mxu0
    %v2044 = vadd.f32 0.0, %v2043
    %v2045 = vpop.f32.mrb[0].mxu0
    %2046 = vmatprep.mubr.f32.mxu0 0.0
    %2047 = vmatmul.mubr.f32.gmra.mrb[0].mxu0 %v1949
    %v2048 = vpop.f32.mrb[0].mxu0
    %v2049 = vadd.f32 0.0, %v2048
    %v2050 = vpop.f32.mrb[0].mxu0
    %2051 = vmatprep.mubr.f32.mxu0 0.0
    %2052 = vmatmul.mubr.f32.gmra.mrb[0].mxu0 %v1952
    %v2053 = vpop.f32.mrb[0].mxu0
    %v2054 = vadd.f32 0.0, %v2053
    %v2055 = vpop.f32.mrb[0].mxu0
    %2056 = vmatprep.mubr.f32.mxu0 0.0
    %2057 = vmatmul.mubr.f32.gmra.mrb[0].mxu0 %v1955
    %v2058 = vpop.f32.mrb[0].mxu0
    %v2059 = vadd.f32 0.0, %v2058
    %v2060 = vpop.f32.mrb[0].mxu0
    %2061 = vdwg.mxu0
    %v2062 = vmul.f32 %v2024, 0.25
    %v2063 = vmul.f32 %v2029, 0.25
    %v2064 = vmul.f32 %v2034, 0.25
    %v2065 = vmul.f32 %v2039, 0.25
    %v2066 = vmul.f32 %v2044, 0.25
    %v2067 = vmul.f32 %v2049, 0.25
    %v2068 = vmul.f32 %v2054, 0.25
    %v2069 = vmul.f32 %v2059, 0.25
    %2070 = vmatprep.subr.mxu0 0.0
    %2071 = vmatpush1.msra.mxu0 %v2062
    %2072 = vmatprep.subr.mxu0 0.0
    %2073 = vmatpush1.msra.mxu0 %v2063
    %2074 = vmatprep.subr.mxu0 0.0
    %2075 = vmatpush1.msra.mxu0 %v2064
    %2076 = vmatprep.subr.mxu0 0.0
    %2077 = vmatpush1.msra.mxu0 %v2065
    %2078 = vmatprep.subr.mxu0 0.0
    %2079 = vmatpush1.msra.mxu0 %v2066
    %2080 = vmatprep.subr.mxu0 0.0
    %2081 = vmatpush1.msra.mxu0 %v2067
    %2082 = vmatprep.subr.mxu0 0.0
    %2083 = vmatpush1.msra.mxu0 %v2068
    %2084 = vmatprep.subr.mxu0 0.0
    %2085 = vmatpush1.msra.mxu0 %v2069
    %2086 = vmatprep.subr.mxu0 0.0
    %2087 = vmatpush1.msra.mxu0 0.0
    %2088 = vmatprep.subr.mxu0 0.0
    %2089 = vmatpush1.msra.mxu0 0.0
    %2090 = vmatprep.subr.mxu0 0.0
    %2091 = vmatpush1.msra.mxu0 0.0
    %2092 = vmatprep.subr.mxu0 0.0
    %2093 = vmatpush1.msra.mxu0 0.0
    %2094 = vmatprep.subr.mxu0 0.0
    %2095 = vmatpush1.msra.mxu0 0.0
    %2096 = vmatprep.subr.mxu0 0.0
    %2097 = vmatpush1.msra.mxu0 0.0
    %2098 = vmatprep.subr.mxu0 0.0
    %2099 = vmatpush1.msra.mxu0 0.0
    %2100 = vmatprep.subr.mxu0 0.0
    %2101 = vmatpush1.msra.mxu0 0.0
    %2102 = vmatprep.subr.mxu0 0.0
    %2103 = vmatpush1.msra.mxu0 0.0
    %2104 = vmatprep.subr.mxu0 0.0
    %2105 = vmatpush1.msra.mxu0 0.0
    %2106 = vmatprep.subr.mxu0 0.0
    %2107 = vmatpush1.msra.mxu0 0.0
    %2108 = vmatprep.subr.mxu0 0.0
    %2109 = vmatpush1.msra.mxu0 0.0
    %2110 = vmatprep.subr.mxu0 0.0
    %2111 = vmatpush1.msra.mxu0 0.0
    %2112 = vmatprep.subr.mxu0 0.0
    %2113 = vmatpush1.msra.mxu0 0.0
    %2114 = vmatprep.subr.mxu0 0.0
    %2115 = vmatpush1.msra.mxu0 0.0
    %2116 = vmatprep.subr.mxu0 0.0
    %2117 = vmatpush1.msra.mxu0 0.0
    %2118 = vmatprep.subr.mxu0 0.0
    %2119 = vmatpush1.msra.mxu0 0.0
    %2120 = vmatprep.subr.mxu0 0.0
    %2121 = vmatpush1.msra.mxu0 0.0
    %2122 = vmatprep.subr.mxu0 0.0
    %2123 = vmatpush1.msra.mxu0 0.0
    %2124 = vmatprep.subr.mxu0 0.0
    %2125 = vmatpush1.msra.mxu0 0.0
    %2126 = vmatprep.subr.mxu0 0.0
    %2127 = vmatpush1.msra.mxu0 0.0
    %2128 = vmatprep.subr.mxu0 0.0
    %2129 = vmatpush1.msra.mxu0 0.0
    %2130 = vmatprep.subr.mxu0 0.0
    %2131 = vmatpush1.msra.mxu0 0.0
    %2132 = vmatprep.subr.mxu0 0.0
    %2133 = vmatpush1.msra.mxu0 0.0
    %2134 = vmatprep.mubr.f32.mxu0 0.0
    %2135 = vmatmul.mubr.f32.gmra.mrb[0].mxu0 %v1523
    %v2136 = vpop.f32.mrb[0].mxu0
    %v2137 = vadd.f32 0.0, %v2136
    %v2138 = vpop.f32.mrb[0].mxu0
    %2139 = vmatprep.mubr.f32.mxu0 0.0
    %2140 = vmatmul.mubr.f32.gmra.mrb[0].mxu0 %v1526
    %v2141 = vpop.f32.mrb[0].mxu0
    %v2142 = vadd.f32 0.0, %v2141
    %v2143 = vpop.f32.mrb[0].mxu0
    %2144 = vmatprep.mubr.f32.mxu0 0.0
    %2145 = vmatmul.mubr.f32.gmra.mrb[0].mxu0 %v1529
    %v2146 = vpop.f32.mrb[0].mxu0
    %v2147 = vadd.f32 0.0, %v2146
    %v2148 = vpop.f32.mrb[0].mxu0
    %2149 = vmatprep.mubr.f32.mxu0 0.0
    %2150 = vmatmul.mubr.f32.gmra.mrb[0].mxu0 %v1532
    %v2151 = vpop.f32.mrb[0].mxu0
    %v2152 = vadd.f32 0.0, %v2151
    %v2153 = vpop.f32.mrb[0].mxu0
    %2154 = vmatprep.mubr.f32.mxu0 0.0
    %2155 = vmatmul.mubr.f32.gmra.mrb[0].mxu0 %v1535
    %v2156 = vpop.f32.mrb[0].mxu0
    %v2157 = vadd.f32 0.0, %v2156
    %v2158 = vpop.f32.mrb[0].mxu0
    %2159 = vmatprep.mubr.f32.mxu0 0.0
    %2160 = vmatmul.mubr.f32.gmra.mrb[0].mxu0 %v1538
    %v2161 = vpop.f32.mrb[0].mxu0
    %v2162 = vadd.f32 0.0, %v2161
    %v2163 = vpop.f32.mrb[0].mxu0
    %2164 = vmatprep.mubr.f32.mxu0 0.0
    %2165 = vmatmul.mubr.f32.gmra.mrb[0].mxu0 %v1541
    %v2166 = vpop.f32.mrb[0].mxu0
    %v2167 = vadd.f32 0.0, %v2166
    %v2168 = vpop.f32.mrb[0].mxu0
    %2169 = vmatprep.mubr.f32.mxu0 0.0
    %2170 = vmatmul.mubr.f32.gmra.mrb[0].mxu0 %v1544
    %v2171 = vpop.f32.mrb[0].mxu0
    %v2172 = vadd.f32 0.0, %v2171
    %v2173 = vpop.f32.mrb[0].mxu0
    %2174 = vdwg.mxu0
    %v2175 = vsub.f32 %v1651, %v2137
    %v2176 = vsub.f32 %v1652, %v2142
    %v2177 = vsub.f32 %v1653, %v2147
    %v2178 = vsub.f32 %v1654, %v2152
    %v2179 = vsub.f32 %v1655, %v2157
    %v2180 = vsub.f32 %v1656, %v2162
    %v2181 = vsub.f32 %v1657, %v2167
    %v2182 = vsub.f32 %v1658, %v2172
    %v2184 = vsel %vm791, %v2137, 0
    %v2187 = vsel %vm791, %v2142, 0
    %v2190 = vsel %vm791, %v2147, 0
    %v2193 = vsel %vm791, %v2152, 0
    %v2196 = vsel %vm791, %v2157, 0
    %v2199 = vsel %vm791, %v2162, 0
    %v2202 = vsel %vm791, %v2167, 0
    %v2205 = vsel %vm791, %v2172, 0
    %2207 = vmatprep.subr.mxu0 0.0
    %2208 = vmatpush1.msra.mxu0 %v2175
    %2209 = vmatprep.subr.mxu0 0.0
    %2210 = vmatpush1.msra.mxu0 %v2176
    %2211 = vmatprep.subr.mxu0 0.0
    %2212 = vmatpush1.msra.mxu0 %v2177
    %2213 = vmatprep.subr.mxu0 0.0
    %2214 = vmatpush1.msra.mxu0 %v2178
    %2215 = vmatprep.subr.mxu0 0.0
    %2216 = vmatpush1.msra.mxu0 %v2179
    %2217 = vmatprep.subr.mxu0 0.0
    %2218 = vmatpush1.msra.mxu0 %v2180
    %2219 = vmatprep.subr.mxu0 0.0
    %2220 = vmatpush1.msra.mxu0 %v2181
    %2221 = vmatprep.subr.mxu0 0.0
    %2222 = vmatpush1.msra.mxu0 %v2182
    %2223 = vmatprep.subr.mxu0 0.0
    %2224 = vmatpush1.msra.mxu0 0.0
    %2225 = vmatprep.subr.mxu0 0.0
    %2226 = vmatpush1.msra.mxu0 0.0
    %2227 = vmatprep.subr.mxu0 0.0
    %2228 = vmatpush1.msra.mxu0 0.0
    %2229 = vmatprep.subr.mxu0 0.0
    %2230 = vmatpush1.msra.mxu0 0.0
    %2231 = vmatprep.subr.mxu0 0.0
    %2232 = vmatpush1.msra.mxu0 0.0
    %2233 = vmatprep.subr.mxu0 0.0
    %2234 = vmatpush1.msra.mxu0 0.0
    %2235 = vmatprep.subr.mxu0 0.0
    %2236 = vmatpush1.msra.mxu0 0.0
    %2237 = vmatprep.subr.mxu0 0.0
    %2238 = vmatpush1.msra.mxu0 0.0
    %2239 = vmatprep.subr.mxu0 0.0
    %2240 = vmatpush1.msra.mxu0 0.0
    %2241 = vmatprep.subr.mxu0 0.0
    %2242 = vmatpush1.msra.mxu0 0.0
    %2243 = vmatprep.subr.mxu0 0.0
    %2244 = vmatpush1.msra.mxu0 0.0
    %2245 = vmatprep.subr.mxu0 0.0
    %2246 = vmatpush1.msra.mxu0 0.0
    %2247 = vmatprep.subr.mxu0 0.0
    %2248 = vmatpush1.msra.mxu0 0.0
    %2249 = vmatprep.subr.mxu0 0.0
    %2250 = vmatpush1.msra.mxu0 0.0
    %2251 = vmatprep.subr.mxu0 0.0
    %2252 = vmatpush1.msra.mxu0 0.0
    %2253 = vmatprep.subr.mxu0 0.0
    %2254 = vmatpush1.msra.mxu0 0.0
    %2255 = vmatprep.subr.mxu0 0.0
    %2256 = vmatpush1.msra.mxu0 0.0
    %2257 = vmatprep.subr.mxu0 0.0
    %2258 = vmatpush1.msra.mxu0 0.0
    %2259 = vmatprep.subr.mxu0 0.0
    %2260 = vmatpush1.msra.mxu0 0.0
    %2261 = vmatprep.subr.mxu0 0.0
    %2262 = vmatpush1.msra.mxu0 0.0
    %2263 = vmatprep.subr.mxu0 0.0
    %2264 = vmatpush1.msra.mxu0 0.0
    %2265 = vmatprep.subr.mxu0 0.0
    %2266 = vmatpush1.msra.mxu0 0.0
    %2267 = vmatprep.subr.mxu0 0.0
    %2268 = vmatpush1.msra.mxu0 0.0
    %2269 = vmatprep.subr.mxu0 0.0
    %2270 = vmatpush1.msra.mxu0 0.0
    %2271 = vmatprep.mubr.f32.mxu0 0.0
    %2272 = vmatmul.mubr.f32.gmra.mrb[0].mxu0 %v2184
    %v2273 = vpop.f32.mrb[0].mxu0
    %v2274 = vadd.f32 0.0, %v2273
    %v2275 = vpop.f32.mrb[0].mxu0
    %2276 = vmatprep.mubr.f32.mxu0 0.0
    %2277 = vmatmul.mubr.f32.gmra.mrb[0].mxu0 %v2187
    %v2278 = vpop.f32.mrb[0].mxu0
    %v2279 = vadd.f32 0.0, %v2278
    %v2280 = vpop.f32.mrb[0].mxu0
    %2281 = vmatprep.mubr.f32.mxu0 0.0
    %2282 = vmatmul.mubr.f32.gmra.mrb[0].mxu0 %v2190
    %v2283 = vpop.f32.mrb[0].mxu0
    %v2284 = vadd.f32 0.0, %v2283
    %v2285 = vpop.f32.mrb[0].mxu0
    %2286 = vmatprep.mubr.f32.mxu0 0.0
    %2287 = vmatmul.mubr.f32.gmra.mrb[0].mxu0 %v2193
    %v2288 = vpop.f32.mrb[0].mxu0
    %v2289 = vadd.f32 0.0, %v2288
    %v2290 = vpop.f32.mrb[0].mxu0
    %2291 = vmatprep.mubr.f32.mxu0 0.0
    %2292 = vmatmul.mubr.f32.gmra.mrb[0].mxu0 %v2196
    %v2293 = vpop.f32.mrb[0].mxu0
    %v2294 = vadd.f32 0.0, %v2293
    %v2295 = vpop.f32.mrb[0].mxu0
    %2296 = vmatprep.mubr.f32.mxu0 0.0
    %2297 = vmatmul.mubr.f32.gmra.mrb[0].mxu0 %v2199
    %v2298 = vpop.f32.mrb[0].mxu0
    %v2299 = vadd.f32 0.0, %v2298
    %v2300 = vpop.f32.mrb[0].mxu0
    %2301 = vmatprep.mubr.f32.mxu0 0.0
    %2302 = vmatmul.mubr.f32.gmra.mrb[0].mxu0 %v2202
    %v2303 = vpop.f32.mrb[0].mxu0
    %v2304 = vadd.f32 0.0, %v2303
    %v2305 = vpop.f32.mrb[0].mxu0
    %2306 = vmatprep.mubr.f32.mxu0 0.0
    %2307 = vmatmul.mubr.f32.gmra.mrb[0].mxu0 %v2205
    %v2308 = vpop.f32.mrb[0].mxu0
    %v2309 = vadd.f32 0.0, %v2308
    %v2310 = vpop.f32.mrb[0].mxu0
    %2311 = vdwg.mxu0
    %v2312 = vsub.f32 %v1667, %v2274
    %v2313 = vsub.f32 %v1668, %v2279
    %v2314 = vsub.f32 %v1669, %v2284
    %v2315 = vsub.f32 %v1670, %v2289
    %v2316 = vsub.f32 %v1671, %v2294
    %v2317 = vsub.f32 %v1672, %v2299
    %v2318 = vsub.f32 %v1673, %v2304
    %v2319 = vsub.f32 %v1674, %v2309
    %2320 = vmatprep.subr.mxu0 0.0
    %2321 = vmatpush1.msra.mxu0 %v2312
    %2322 = vmatprep.subr.mxu0 0.0
    %2323 = vmatpush1.msra.mxu0 %v2313
    %2324 = vmatprep.subr.mxu0 0.0
    %2325 = vmatpush1.msra.mxu0 %v2314
    %2326 = vmatprep.subr.mxu0 0.0
    %2327 = vmatpush1.msra.mxu0 %v2315
    %2328 = vmatprep.subr.mxu0 0.0
    %2329 = vmatpush1.msra.mxu0 %v2316
    %2330 = vmatprep.subr.mxu0 0.0
    %2331 = vmatpush1.msra.mxu0 %v2317
    %2332 = vmatprep.subr.mxu0 0.0
    %2333 = vmatpush1.msra.mxu0 %v2318
    %2334 = vmatprep.subr.mxu0 0.0
    %2335 = vmatpush1.msra.mxu0 %v2319
    %2336 = vmatprep.subr.mxu0 0.0
    %2337 = vmatpush1.msra.mxu0 0.0
    %2338 = vmatprep.subr.mxu0 0.0
    %2339 = vmatpush1.msra.mxu0 0.0
    %2340 = vmatprep.subr.mxu0 0.0
    %2341 = vmatpush1.msra.mxu0 0.0
    %2342 = vmatprep.subr.mxu0 0.0
    %2343 = vmatpush1.msra.mxu0 0.0
    %2344 = vmatprep.subr.mxu0 0.0
    %2345 = vmatpush1.msra.mxu0 0.0
    %2346 = vmatprep.subr.mxu0 0.0
    %2347 = vmatpush1.msra.mxu0 0.0
    %2348 = vmatprep.subr.mxu0 0.0
    %2349 = vmatpush1.msra.mxu0 0.0
    %2350 = vmatprep.subr.mxu0 0.0
    %2351 = vmatpush1.msra.mxu0 0.0
    %2352 = vmatprep.subr.mxu0 0.0
    %2353 = vmatpush1.msra.mxu0 0.0
    %2354 = vmatprep.subr.mxu0 0.0
    %2355 = vmatpush1.msra.mxu0 0.0
    %2356 = vmatprep.subr.mxu0 0.0
    %2357 = vmatpush1.msra.mxu0 0.0
    %2358 = vmatprep.subr.mxu0 0.0
    %2359 = vmatpush1.msra.mxu0 0.0
    %2360 = vmatprep.subr.mxu0 0.0
    %2361 = vmatpush1.msra.mxu0 0.0
    %2362 = vmatprep.subr.mxu0 0.0
    %2363 = vmatpush1.msra.mxu0 0.0
    %2364 = vmatprep.subr.mxu0 0.0
    %2365 = vmatpush1.msra.mxu0 0.0
    %2366 = vmatprep.subr.mxu0 0.0
    %2367 = vmatpush1.msra.mxu0 0.0
    %2368 = vmatprep.subr.mxu0 0.0
    %2369 = vmatpush1.msra.mxu0 0.0
    %2370 = vmatprep.subr.mxu0 0.0
    %2371 = vmatpush1.msra.mxu0 0.0
    %2372 = vmatprep.subr.mxu0 0.0
    %2373 = vmatpush1.msra.mxu0 0.0
    %2374 = vmatprep.subr.mxu0 0.0
    %2375 = vmatpush1.msra.mxu0 0.0
    %2376 = vmatprep.subr.mxu0 0.0
    %2377 = vmatpush1.msra.mxu0 0.0
    %2378 = vmatprep.subr.mxu0 0.0
    %2379 = vmatpush1.msra.mxu0 0.0
    %2380 = vmatprep.subr.mxu0 0.0
    %2381 = vmatpush1.msra.mxu0 0.0
    %2382 = vmatprep.subr.mxu0 0.0
    %2383 = vmatpush1.msra.mxu0 0.0
    %2384 = vmatprep.mubr.f32.mxu0 0.0
    %2385 = vmatmul.mubr.f32.gmra.mrb[0].mxu0 %v2184
    %v2386 = vpop.f32.mrb[0].mxu0
    %v2387 = vadd.f32 0.0, %v2386
    %v2388 = vpop.f32.mrb[0].mxu0
    %2389 = vmatprep.mubr.f32.mxu0 0.0
    %2390 = vmatmul.mubr.f32.gmra.mrb[0].mxu0 %v2187
    %v2391 = vpop.f32.mrb[0].mxu0
    %v2392 = vadd.f32 0.0, %v2391
    %v2393 = vpop.f32.mrb[0].mxu0
    %2394 = vmatprep.mubr.f32.mxu0 0.0
    %2395 = vmatmul.mubr.f32.gmra.mrb[0].mxu0 %v2190
    %v2396 = vpop.f32.mrb[0].mxu0
    %v2397 = vadd.f32 0.0, %v2396
    %v2398 = vpop.f32.mrb[0].mxu0
    %2399 = vmatprep.mubr.f32.mxu0 0.0
    %2400 = vmatmul.mubr.f32.gmra.mrb[0].mxu0 %v2193
    %v2401 = vpop.f32.mrb[0].mxu0
    %v2402 = vadd.f32 0.0, %v2401
    %v2403 = vpop.f32.mrb[0].mxu0
    %2404 = vmatprep.mubr.f32.mxu0 0.0
    %2405 = vmatmul.mubr.f32.gmra.mrb[0].mxu0 %v2196
    %v2406 = vpop.f32.mrb[0].mxu0
    %v2407 = vadd.f32 0.0, %v2406
    %v2408 = vpop.f32.mrb[0].mxu0
    %2409 = vmatprep.mubr.f32.mxu0 0.0
    %2410 = vmatmul.mubr.f32.gmra.mrb[0].mxu0 %v2199
    %v2411 = vpop.f32.mrb[0].mxu0
    %v2412 = vadd.f32 0.0, %v2411
    %v2413 = vpop.f32.mrb[0].mxu0
    %2414 = vmatprep.mubr.f32.mxu0 0.0
    %2415 = vmatmul.mubr.f32.gmra.mrb[0].mxu0 %v2202
    %v2416 = vpop.f32.mrb[0].mxu0
    %v2417 = vadd.f32 0.0, %v2416
    %v2418 = vpop.f32.mrb[0].mxu0
    %2419 = vmatprep.mubr.f32.mxu0 0.0
    %2420 = vmatmul.mubr.f32.gmra.mrb[0].mxu0 %v2205
    %v2421 = vpop.f32.mrb[0].mxu0
    %v2422 = vadd.f32 0.0, %v2421
    %v2423 = vpop.f32.mrb[0].mxu0
    %2424 = vdwg.mxu0
    %v2425 = vsub.f32 %v1812, %v2387
    %v2426 = vsub.f32 %v1813, %v2392
    %v2427 = vsub.f32 %v1814, %v2397
    %v2428 = vsub.f32 %v1815, %v2402
    %v2429 = vsub.f32 %v1816, %v2407
    %v2430 = vsub.f32 %v1817, %v2412
    %v2431 = vsub.f32 %v1818, %v2417
    %v2432 = vsub.f32 %v1819, %v2422
    %v2434 = vsel %vm791, %v2062, 0
    %v2437 = vsel %vm791, %v2063, 0
    %v2440 = vsel %vm791, %v2064, 0
    %v2443 = vsel %vm791, %v2065, 0
    %v2446 = vsel %vm791, %v2066, 0
    %v2449 = vsel %vm791, %v2067, 0
    %v2452 = vsel %vm791, %v2068, 0
    %v2455 = vsel %vm791, %v2069, 0
    %2457 = vmatprep.subr.mxu0 0.0
    %2458 = vmatpush1.msra.mxu0 %v2425
    %2459 = vmatprep.subr.mxu0 0.0
    %2460 = vmatpush1.msra.mxu0 %v2426
    %2461 = vmatprep.subr.mxu0 0.0
    %2462 = vmatpush1.msra.mxu0 %v2427
    %2463 = vmatprep.subr.mxu0 0.0
    %2464 = vmatpush1.msra.mxu0 %v2428
    %2465 = vmatprep.subr.mxu0 0.0
    %2466 = vmatpush1.msra.mxu0 %v2429
    %2467 = vmatprep.subr.mxu0 0.0
    %2468 = vmatpush1.msra.mxu0 %v2430
    %2469 = vmatprep.subr.mxu0 0.0
    %2470 = vmatpush1.msra.mxu0 %v2431
    %2471 = vmatprep.subr.mxu0 0.0
    %2472 = vmatpush1.msra.mxu0 %v2432
    %2473 = vmatprep.subr.mxu0 0.0
    %2474 = vmatpush1.msra.mxu0 0.0
    %2475 = vmatprep.subr.mxu0 0.0
    %2476 = vmatpush1.msra.mxu0 0.0
    %2477 = vmatprep.subr.mxu0 0.0
    %2478 = vmatpush1.msra.mxu0 0.0
    %2479 = vmatprep.subr.mxu0 0.0
    %2480 = vmatpush1.msra.mxu0 0.0
    %2481 = vmatprep.subr.mxu0 0.0
    %2482 = vmatpush1.msra.mxu0 0.0
    %2483 = vmatprep.subr.mxu0 0.0
    %2484 = vmatpush1.msra.mxu0 0.0
    %2485 = vmatprep.subr.mxu0 0.0
    %2486 = vmatpush1.msra.mxu0 0.0
    %2487 = vmatprep.subr.mxu0 0.0
    %2488 = vmatpush1.msra.mxu0 0.0
    %2489 = vmatprep.subr.mxu0 0.0
    %2490 = vmatpush1.msra.mxu0 0.0
    %2491 = vmatprep.subr.mxu0 0.0
    %2492 = vmatpush1.msra.mxu0 0.0
    %2493 = vmatprep.subr.mxu0 0.0
    %2494 = vmatpush1.msra.mxu0 0.0
    %2495 = vmatprep.subr.mxu0 0.0
    %2496 = vmatpush1.msra.mxu0 0.0
    %2497 = vmatprep.subr.mxu0 0.0
    %2498 = vmatpush1.msra.mxu0 0.0
    %2499 = vmatprep.subr.mxu0 0.0
    %2500 = vmatpush1.msra.mxu0 0.0
    %2501 = vmatprep.subr.mxu0 0.0
    %2502 = vmatpush1.msra.mxu0 0.0
    %2503 = vmatprep.subr.mxu0 0.0
    %2504 = vmatpush1.msra.mxu0 0.0
    %2505 = vmatprep.subr.mxu0 0.0
    %2506 = vmatpush1.msra.mxu0 0.0
    %2507 = vmatprep.subr.mxu0 0.0
    %2508 = vmatpush1.msra.mxu0 0.0
    %2509 = vmatprep.subr.mxu0 0.0
    %2510 = vmatpush1.msra.mxu0 0.0
    %2511 = vmatprep.subr.mxu0 0.0
    %2512 = vmatpush1.msra.mxu0 0.0
    %2513 = vmatprep.subr.mxu0 0.0
    %2514 = vmatpush1.msra.mxu0 0.0
    %2515 = vmatprep.subr.mxu0 0.0
    %2516 = vmatpush1.msra.mxu0 0.0
    %2517 = vmatprep.subr.mxu0 0.0
    %2518 = vmatpush1.msra.mxu0 0.0
    %2519 = vmatprep.subr.mxu0 0.0
    %2520 = vmatpush1.msra.mxu0 0.0
    %2521 = vmatprep.mubr.f32.mxu0 0.0
    %2522 = vmatmul.mubr.f32.gmra.mrb[0].mxu0 %v2434
    %v2523 = vpop.f32.mrb[0].mxu0
    %v2524 = vadd.f32 0.0, %v2523
    %v2525 = vpop.f32.mrb[0].mxu0
    %2526 = vmatprep.mubr.f32.mxu0 0.0
    %2527 = vmatmul.mubr.f32.gmra.mrb[0].mxu0 %v2437
    %v2528 = vpop.f32.mrb[0].mxu0
    %v2529 = vadd.f32 0.0, %v2528
    %v2530 = vpop.f32.mrb[0].mxu0
    %2531 = vmatprep.mubr.f32.mxu0 0.0
    %2532 = vmatmul.mubr.f32.gmra.mrb[0].mxu0 %v2440
    %v2533 = vpop.f32.mrb[0].mxu0
    %v2534 = vadd.f32 0.0, %v2533
    %v2535 = vpop.f32.mrb[0].mxu0
    %2536 = vmatprep.mubr.f32.mxu0 0.0
    %2537 = vmatmul.mubr.f32.gmra.mrb[0].mxu0 %v2443
    %v2538 = vpop.f32.mrb[0].mxu0
    %v2539 = vadd.f32 0.0, %v2538
    %v2540 = vpop.f32.mrb[0].mxu0
    %2541 = vmatprep.mubr.f32.mxu0 0.0
    %2542 = vmatmul.mubr.f32.gmra.mrb[0].mxu0 %v2446
    %v2543 = vpop.f32.mrb[0].mxu0
    %v2544 = vadd.f32 0.0, %v2543
    %v2545 = vpop.f32.mrb[0].mxu0
    %2546 = vmatprep.mubr.f32.mxu0 0.0
    %2547 = vmatmul.mubr.f32.gmra.mrb[0].mxu0 %v2449
    %v2548 = vpop.f32.mrb[0].mxu0
    %v2549 = vadd.f32 0.0, %v2548
    %v2550 = vpop.f32.mrb[0].mxu0
    %2551 = vmatprep.mubr.f32.mxu0 0.0
    %2552 = vmatmul.mubr.f32.gmra.mrb[0].mxu0 %v2452
    %v2553 = vpop.f32.mrb[0].mxu0
    %v2554 = vadd.f32 0.0, %v2553
    %v2555 = vpop.f32.mrb[0].mxu0
    %2556 = vmatprep.mubr.f32.mxu0 0.0
    %2557 = vmatmul.mubr.f32.gmra.mrb[0].mxu0 %v2455
    %v2558 = vpop.f32.mrb[0].mxu0
    %v2559 = vadd.f32 0.0, %v2558
    %v2560 = vpop.f32.mrb[0].mxu0
    %2561 = vdwg.mxu0
    %v2562 = vmul.f32 %v2524, 0.25
    %v2563 = vmul.f32 %v2529, 0.25
    %v2564 = vmul.f32 %v2534, 0.25
    %v2565 = vmul.f32 %v2539, 0.25
    %v2566 = vmul.f32 %v2544, 0.25
    %v2567 = vmul.f32 %v2549, 0.25
    %v2568 = vmul.f32 %v2554, 0.25
    %v2569 = vmul.f32 %v2559, 0.25
    %2570 = vmatprep.subr.mxu0 0.0
    %2571 = vmatpush1.msra.mxu0 %v2562
    %2572 = vmatprep.subr.mxu0 0.0
    %2573 = vmatpush1.msra.mxu0 %v2563
    %2574 = vmatprep.subr.mxu0 0.0
    %2575 = vmatpush1.msra.mxu0 %v2564
    %2576 = vmatprep.subr.mxu0 0.0
    %2577 = vmatpush1.msra.mxu0 %v2565
    %2578 = vmatprep.subr.mxu0 0.0
    %2579 = vmatpush1.msra.mxu0 %v2566
    %2580 = vmatprep.subr.mxu0 0.0
    %2581 = vmatpush1.msra.mxu0 %v2567
    %2582 = vmatprep.subr.mxu0 0.0
    %2583 = vmatpush1.msra.mxu0 %v2568
    %2584 = vmatprep.subr.mxu0 0.0
    %2585 = vmatpush1.msra.mxu0 %v2569
    %2586 = vmatprep.subr.mxu0 0.0
    %2587 = vmatpush1.msra.mxu0 0.0
    %2588 = vmatprep.subr.mxu0 0.0
    %2589 = vmatpush1.msra.mxu0 0.0
    %2590 = vmatprep.subr.mxu0 0.0
    %2591 = vmatpush1.msra.mxu0 0.0
    %2592 = vmatprep.subr.mxu0 0.0
    %2593 = vmatpush1.msra.mxu0 0.0
    %2594 = vmatprep.subr.mxu0 0.0
    %2595 = vmatpush1.msra.mxu0 0.0
    %2596 = vmatprep.subr.mxu0 0.0
    %2597 = vmatpush1.msra.mxu0 0.0
    %2598 = vmatprep.subr.mxu0 0.0
    %2599 = vmatpush1.msra.mxu0 0.0
    %2600 = vmatprep.subr.mxu0 0.0
    %2601 = vmatpush1.msra.mxu0 0.0
    %2602 = vmatprep.subr.mxu0 0.0
    %2603 = vmatpush1.msra.mxu0 0.0
    %2604 = vmatprep.subr.mxu0 0.0
    %2605 = vmatpush1.msra.mxu0 0.0
    %2606 = vmatprep.subr.mxu0 0.0
    %2607 = vmatpush1.msra.mxu0 0.0
    %2608 = vmatprep.subr.mxu0 0.0
    %2609 = vmatpush1.msra.mxu0 0.0
    %2610 = vmatprep.subr.mxu0 0.0
    %2611 = vmatpush1.msra.mxu0 0.0
    %2612 = vmatprep.subr.mxu0 0.0
    %2613 = vmatpush1.msra.mxu0 0.0
    %2614 = vmatprep.subr.mxu0 0.0
    %2615 = vmatpush1.msra.mxu0 0.0
    %2616 = vmatprep.subr.mxu0 0.0
    %2617 = vmatpush1.msra.mxu0 0.0
    %2618 = vmatprep.subr.mxu0 0.0
    %2619 = vmatpush1.msra.mxu0 0.0
    %2620 = vmatprep.subr.mxu0 0.0
    %2621 = vmatpush1.msra.mxu0 0.0
    %2622 = vmatprep.subr.mxu0 0.0
    %2623 = vmatpush1.msra.mxu0 0.0
    %2624 = vmatprep.subr.mxu0 0.0
    %2625 = vmatpush1.msra.mxu0 0.0
    %2626 = vmatprep.subr.mxu0 0.0
    %2627 = vmatpush1.msra.mxu0 0.0
    %2628 = vmatprep.subr.mxu0 0.0
    %2629 = vmatpush1.msra.mxu0 0.0
    %2630 = vmatprep.subr.mxu0 0.0
    %2631 = vmatpush1.msra.mxu0 0.0
    %2632 = vmatprep.subr.mxu0 0.0
    %2633 = vmatpush1.msra.mxu0 0.0
    %2634 = vmatprep.mubr.f32.mxu0 0.0
    %2635 = vmatmul.mubr.f32.gmra.mrb[0].mxu0 %v1523
    %v2636 = vpop.f32.mrb[0].mxu0
    %v2637 = vadd.f32 0.0, %v2636
    %v2638 = vpop.f32.mrb[0].mxu0
    %2639 = vmatprep.mubr.f32.mxu0 0.0
    %2640 = vmatmul.mubr.f32.gmra.mrb[0].mxu0 %v1526
    %v2641 = vpop.f32.mrb[0].mxu0
    %v2642 = vadd.f32 0.0, %v2641
    %v2643 = vpop.f32.mrb[0].mxu0
    %2644 = vmatprep.mubr.f32.mxu0 0.0
    %2645 = vmatmul.mubr.f32.gmra.mrb[0].mxu0 %v1529
    %v2646 = vpop.f32.mrb[0].mxu0
    %v2647 = vadd.f32 0.0, %v2646
    %v2648 = vpop.f32.mrb[0].mxu0
    %2649 = vmatprep.mubr.f32.mxu0 0.0
    %2650 = vmatmul.mubr.f32.gmra.mrb[0].mxu0 %v1532
    %v2651 = vpop.f32.mrb[0].mxu0
    %v2652 = vadd.f32 0.0, %v2651
    %v2653 = vpop.f32.mrb[0].mxu0
    %2654 = vmatprep.mubr.f32.mxu0 0.0
    %2655 = vmatmul.mubr.f32.gmra.mrb[0].mxu0 %v1535
    %v2656 = vpop.f32.mrb[0].mxu0
    %v2657 = vadd.f32 0.0, %v2656
    %v2658 = vpop.f32.mrb[0].mxu0
    %2659 = vmatprep.mubr.f32.mxu0 0.0
    %2660 = vmatmul.mubr.f32.gmra.mrb[0].mxu0 %v1538
    %v2661 = vpop.f32.mrb[0].mxu0
    %v2662 = vadd.f32 0.0, %v2661
    %v2663 = vpop.f32.mrb[0].mxu0
    %2664 = vmatprep.mubr.f32.mxu0 0.0
    %2665 = vmatmul.mubr.f32.gmra.mrb[0].mxu0 %v1541
    %v2666 = vpop.f32.mrb[0].mxu0
    %v2667 = vadd.f32 0.0, %v2666
    %v2668 = vpop.f32.mrb[0].mxu0
    %2669 = vmatprep.mubr.f32.mxu0 0.0
    %2670 = vmatmul.mubr.f32.gmra.mrb[0].mxu0 %v1544
    %v2671 = vpop.f32.mrb[0].mxu0
    %v2672 = vadd.f32 0.0, %v2671
    %v2673 = vpop.f32.mrb[0].mxu0
    %2674 = vdwg.mxu0
    %v2675 = vsub.f32 %v1651, %v2637
    %v2676 = vsub.f32 %v1652, %v2642
    %v2677 = vsub.f32 %v1653, %v2647
    %v2678 = vsub.f32 %v1654, %v2652
    %v2679 = vsub.f32 %v1655, %v2657
    %v2680 = vsub.f32 %v1656, %v2662
    %v2681 = vsub.f32 %v1657, %v2667
    %v2682 = vsub.f32 %v1658, %v2672
    %v2684 = vsel %vm791, %v2637, 0
    %v2687 = vsel %vm791, %v2642, 0
    %v2690 = vsel %vm791, %v2647, 0
    %v2693 = vsel %vm791, %v2652, 0
    %v2696 = vsel %vm791, %v2657, 0
    %v2699 = vsel %vm791, %v2662, 0
    %v2702 = vsel %vm791, %v2667, 0
    %v2705 = vsel %vm791, %v2672, 0
    %2707 = vmatprep.subr.mxu0 0.0
    %2708 = vmatpush1.msra.mxu0 %v2675
    %2709 = vmatprep.subr.mxu0 0.0
    %2710 = vmatpush1.msra.mxu0 %v2676
    %2711 = vmatprep.subr.mxu0 0.0
    %2712 = vmatpush1.msra.mxu0 %v2677
    %2713 = vmatprep.subr.mxu0 0.0
    %2714 = vmatpush1.msra.mxu0 %v2678
    %2715 = vmatprep.subr.mxu0 0.0
    %2716 = vmatpush1.msra.mxu0 %v2679
    %2717 = vmatprep.subr.mxu0 0.0
    %2718 = vmatpush1.msra.mxu0 %v2680
    %2719 = vmatprep.subr.mxu0 0.0
    %2720 = vmatpush1.msra.mxu0 %v2681
    %2721 = vmatprep.subr.mxu0 0.0
    %2722 = vmatpush1.msra.mxu0 %v2682
    %2723 = vmatprep.subr.mxu0 0.0
    %2724 = vmatpush1.msra.mxu0 0.0
    %2725 = vmatprep.subr.mxu0 0.0
    %2726 = vmatpush1.msra.mxu0 0.0
    %2727 = vmatprep.subr.mxu0 0.0
    %2728 = vmatpush1.msra.mxu0 0.0
    %2729 = vmatprep.subr.mxu0 0.0
    %2730 = vmatpush1.msra.mxu0 0.0
    %2731 = vmatprep.subr.mxu0 0.0
    %2732 = vmatpush1.msra.mxu0 0.0
    %2733 = vmatprep.subr.mxu0 0.0
    %2734 = vmatpush1.msra.mxu0 0.0
    %2735 = vmatprep.subr.mxu0 0.0
    %2736 = vmatpush1.msra.mxu0 0.0
    %2737 = vmatprep.subr.mxu0 0.0
    %2738 = vmatpush1.msra.mxu0 0.0
    %2739 = vmatprep.subr.mxu0 0.0
    %2740 = vmatpush1.msra.mxu0 0.0
    %2741 = vmatprep.subr.mxu0 0.0
    %2742 = vmatpush1.msra.mxu0 0.0
    %2743 = vmatprep.subr.mxu0 0.0
    %2744 = vmatpush1.msra.mxu0 0.0
    %2745 = vmatprep.subr.mxu0 0.0
    %2746 = vmatpush1.msra.mxu0 0.0
    %2747 = vmatprep.subr.mxu0 0.0
    %2748 = vmatpush1.msra.mxu0 0.0
    %2749 = vmatprep.subr.mxu0 0.0
    %2750 = vmatpush1.msra.mxu0 0.0
    %2751 = vmatprep.subr.mxu0 0.0
    %2752 = vmatpush1.msra.mxu0 0.0
    %2753 = vmatprep.subr.mxu0 0.0
    %2754 = vmatpush1.msra.mxu0 0.0
    %2755 = vmatprep.subr.mxu0 0.0
    %2756 = vmatpush1.msra.mxu0 0.0
    %2757 = vmatprep.subr.mxu0 0.0
    %2758 = vmatpush1.msra.mxu0 0.0
    %2759 = vmatprep.subr.mxu0 0.0
    %2760 = vmatpush1.msra.mxu0 0.0
    %2761 = vmatprep.subr.mxu0 0.0
    %2762 = vmatpush1.msra.mxu0 0.0
    %2763 = vmatprep.subr.mxu0 0.0
    %2764 = vmatpush1.msra.mxu0 0.0
    %2765 = vmatprep.subr.mxu0 0.0
    %2766 = vmatpush1.msra.mxu0 0.0
    %2767 = vmatprep.subr.mxu0 0.0
    %2768 = vmatpush1.msra.mxu0 0.0
    %2769 = vmatprep.subr.mxu0 0.0
    %2770 = vmatpush1.msra.mxu0 0.0
    %2771 = vmatprep.mubr.f32.mxu0 0.0
    %2772 = vmatmul.mubr.f32.gmra.mrb[0].mxu0 %v2684
    %v2773 = vpop.f32.mrb[0].mxu0
    %v2774 = vadd.f32 0.0, %v2773
    %v2775 = vpop.f32.mrb[0].mxu0
    %2776 = vmatprep.mubr.f32.mxu0 0.0
    %2777 = vmatmul.mubr.f32.gmra.mrb[0].mxu0 %v2687
    %v2778 = vpop.f32.mrb[0].mxu0
    %v2779 = vadd.f32 0.0, %v2778
    %v2780 = vpop.f32.mrb[0].mxu0
    %2781 = vmatprep.mubr.f32.mxu0 0.0
    %2782 = vmatmul.mubr.f32.gmra.mrb[0].mxu0 %v2690
    %v2783 = vpop.f32.mrb[0].mxu0
    %v2784 = vadd.f32 0.0, %v2783
    %v2785 = vpop.f32.mrb[0].mxu0
    %2786 = vmatprep.mubr.f32.mxu0 0.0
    %2787 = vmatmul.mubr.f32.gmra.mrb[0].mxu0 %v2693
    %v2788 = vpop.f32.mrb[0].mxu0
    %v2789 = vadd.f32 0.0, %v2788
    %v2790 = vpop.f32.mrb[0].mxu0
    %2791 = vmatprep.mubr.f32.mxu0 0.0
    %2792 = vmatmul.mubr.f32.gmra.mrb[0].mxu0 %v2696
    %v2793 = vpop.f32.mrb[0].mxu0
    %v2794 = vadd.f32 0.0, %v2793
    %v2795 = vpop.f32.mrb[0].mxu0
    %2796 = vmatprep.mubr.f32.mxu0 0.0
    %2797 = vmatmul.mubr.f32.gmra.mrb[0].mxu0 %v2699
    %v2798 = vpop.f32.mrb[0].mxu0
    %v2799 = vadd.f32 0.0, %v2798
    %v2800 = vpop.f32.mrb[0].mxu0
    %2801 = vmatprep.mubr.f32.mxu0 0.0
    %2802 = vmatmul.mubr.f32.gmra.mrb[0].mxu0 %v2702
    %v2803 = vpop.f32.mrb[0].mxu0
    %v2804 = vadd.f32 0.0, %v2803
    %v2805 = vpop.f32.mrb[0].mxu0
    %2806 = vmatprep.mubr.f32.mxu0 0.0
    %2807 = vmatmul.mubr.f32.gmra.mrb[0].mxu0 %v2705
    %v2808 = vpop.f32.mrb[0].mxu0
    %v2809 = vadd.f32 0.0, %v2808
    %v2810 = vpop.f32.mrb[0].mxu0
    %2811 = vdwg.mxu0
    %v2812 = vsub.f32 %v1667, %v2774
    %v2813 = vsub.f32 %v1668, %v2779
    %v2814 = vsub.f32 %v1669, %v2784
    %v2815 = vsub.f32 %v1670, %v2789
    %v2816 = vsub.f32 %v1671, %v2794
    %v2817 = vsub.f32 %v1672, %v2799
    %v2818 = vsub.f32 %v1673, %v2804
    %v2819 = vsub.f32 %v1674, %v2809
    %2820 = vmatprep.subr.mxu0 0.0
    %2821 = vmatpush1.msra.mxu0 %v2812
    %2822 = vmatprep.subr.mxu0 0.0
    %2823 = vmatpush1.msra.mxu0 %v2813
    %2824 = vmatprep.subr.mxu0 0.0
    %2825 = vmatpush1.msra.mxu0 %v2814
    %2826 = vmatprep.subr.mxu0 0.0
    %2827 = vmatpush1.msra.mxu0 %v2815
    %2828 = vmatprep.subr.mxu0 0.0
    %2829 = vmatpush1.msra.mxu0 %v2816
    %2830 = vmatprep.subr.mxu0 0.0
    %2831 = vmatpush1.msra.mxu0 %v2817
    %2832 = vmatprep.subr.mxu0 0.0
    %2833 = vmatpush1.msra.mxu0 %v2818
    %2834 = vmatprep.subr.mxu0 0.0
    %2835 = vmatpush1.msra.mxu0 %v2819
    %2836 = vmatprep.subr.mxu0 0.0
    %2837 = vmatpush1.msra.mxu0 0.0
    %2838 = vmatprep.subr.mxu0 0.0
    %2839 = vmatpush1.msra.mxu0 0.0
    %2840 = vmatprep.subr.mxu0 0.0
    %2841 = vmatpush1.msra.mxu0 0.0
    %2842 = vmatprep.subr.mxu0 0.0
    %2843 = vmatpush1.msra.mxu0 0.0
    %2844 = vmatprep.subr.mxu0 0.0
    %2845 = vmatpush1.msra.mxu0 0.0
    %2846 = vmatprep.subr.mxu0 0.0
    %2847 = vmatpush1.msra.mxu0 0.0
    %2848 = vmatprep.subr.mxu0 0.0
    %2849 = vmatpush1.msra.mxu0 0.0
    %2850 = vmatprep.subr.mxu0 0.0
    %2851 = vmatpush1.msra.mxu0 0.0
    %2852 = vmatprep.subr.mxu0 0.0
    %2853 = vmatpush1.msra.mxu0 0.0
    %2854 = vmatprep.subr.mxu0 0.0
    %2855 = vmatpush1.msra.mxu0 0.0
    %2856 = vmatprep.subr.mxu0 0.0
    %2857 = vmatpush1.msra.mxu0 0.0
    %2858 = vmatprep.subr.mxu0 0.0
    %2859 = vmatpush1.msra.mxu0 0.0
    %2860 = vmatprep.subr.mxu0 0.0
    %2861 = vmatpush1.msra.mxu0 0.0
    %2862 = vmatprep.subr.mxu0 0.0
    %2863 = vmatpush1.msra.mxu0 0.0
    %2864 = vmatprep.subr.mxu0 0.0
    %2865 = vmatpush1.msra.mxu0 0.0
    %2866 = vmatprep.subr.mxu0 0.0
    %2867 = vmatpush1.msra.mxu0 0.0
    %2868 = vmatprep.subr.mxu0 0.0
    %2869 = vmatpush1.msra.mxu0 0.0
    %2870 = vmatprep.subr.mxu0 0.0
    %2871 = vmatpush1.msra.mxu0 0.0
    %2872 = vmatprep.subr.mxu0 0.0
    %2873 = vmatpush1.msra.mxu0 0.0
    %2874 = vmatprep.subr.mxu0 0.0
    %2875 = vmatpush1.msra.mxu0 0.0
    %2876 = vmatprep.subr.mxu0 0.0
    %2877 = vmatpush1.msra.mxu0 0.0
    %2878 = vmatprep.subr.mxu0 0.0
    %2879 = vmatpush1.msra.mxu0 0.0
    %2880 = vmatprep.subr.mxu0 0.0
    %2881 = vmatpush1.msra.mxu0 0.0
    %2882 = vmatprep.subr.mxu0 0.0
    %2883 = vmatpush1.msra.mxu0 0.0
    %2884 = vmatprep.mubr.f32.mxu0 0.0
    %2885 = vmatmul.mubr.f32.gmra.mrb[0].mxu0 %v2684
    %v2886 = vpop.f32.mrb[0].mxu0
    %v2887 = vadd.f32 0.0, %v2886
    %v2888 = vpop.f32.mrb[0].mxu0
    %2889 = vmatprep.mubr.f32.mxu0 0.0
    %2890 = vmatmul.mubr.f32.gmra.mrb[0].mxu0 %v2687
    %v2891 = vpop.f32.mrb[0].mxu0
    %v2892 = vadd.f32 0.0, %v2891
    %v2893 = vpop.f32.mrb[0].mxu0
    %2894 = vmatprep.mubr.f32.mxu0 0.0
    %2895 = vmatmul.mubr.f32.gmra.mrb[0].mxu0 %v2690
    %v2896 = vpop.f32.mrb[0].mxu0
    %v2897 = vadd.f32 0.0, %v2896
    %v2898 = vpop.f32.mrb[0].mxu0
    %2899 = vmatprep.mubr.f32.mxu0 0.0
    %2900 = vmatmul.mubr.f32.gmra.mrb[0].mxu0 %v2693
    %v2901 = vpop.f32.mrb[0].mxu0
    %v2902 = vadd.f32 0.0, %v2901
    %v2903 = vpop.f32.mrb[0].mxu0
    %2904 = vmatprep.mubr.f32.mxu0 0.0
    %2905 = vmatmul.mubr.f32.gmra.mrb[0].mxu0 %v2696
    %v2906 = vpop.f32.mrb[0].mxu0
    %v2907 = vadd.f32 0.0, %v2906
    %v2908 = vpop.f32.mrb[0].mxu0
    %2909 = vmatprep.mubr.f32.mxu0 0.0
    %2910 = vmatmul.mubr.f32.gmra.mrb[0].mxu0 %v2699
    %v2911 = vpop.f32.mrb[0].mxu0
    %v2912 = vadd.f32 0.0, %v2911
    %v2913 = vpop.f32.mrb[0].mxu0
    %2914 = vmatprep.mubr.f32.mxu0 0.0
    %2915 = vmatmul.mubr.f32.gmra.mrb[0].mxu0 %v2702
    %v2916 = vpop.f32.mrb[0].mxu0
    %v2917 = vadd.f32 0.0, %v2916
    %v2918 = vpop.f32.mrb[0].mxu0
    %2919 = vmatprep.mubr.f32.mxu0 0.0
    %2920 = vmatmul.mubr.f32.gmra.mrb[0].mxu0 %v2705
    %v2921 = vpop.f32.mrb[0].mxu0
    %v2922 = vadd.f32 0.0, %v2921
    %v2923 = vpop.f32.mrb[0].mxu0
    %2924 = vdwg.mxu0
    %v2925 = vsub.f32 %v1812, %v2887
    %v2926 = vsub.f32 %v1813, %v2892
    %v2927 = vsub.f32 %v1814, %v2897
    %v2928 = vsub.f32 %v1815, %v2902
    %v2929 = vsub.f32 %v1816, %v2907
    %v2930 = vsub.f32 %v1817, %v2912
    %v2931 = vsub.f32 %v1818, %v2917
    %v2932 = vsub.f32 %v1819, %v2922
    %v2934 = vsel %vm791, %v2562, 0
    %v2937 = vsel %vm791, %v2563, 0
    %v2940 = vsel %vm791, %v2564, 0
    %v2943 = vsel %vm791, %v2565, 0
    %v2946 = vsel %vm791, %v2566, 0
    %v2949 = vsel %vm791, %v2567, 0
    %v2952 = vsel %vm791, %v2568, 0
    %v2955 = vsel %vm791, %v2569, 0
    %2957 = vmatprep.subr.mxu0 0.0
    %2958 = vmatpush1.msra.mxu0 %v2925
    %2959 = vmatprep.subr.mxu0 0.0
    %2960 = vmatpush1.msra.mxu0 %v2926
    %2961 = vmatprep.subr.mxu0 0.0
    %2962 = vmatpush1.msra.mxu0 %v2927
    %2963 = vmatprep.subr.mxu0 0.0
    %2964 = vmatpush1.msra.mxu0 %v2928
    %2965 = vmatprep.subr.mxu0 0.0
    %2966 = vmatpush1.msra.mxu0 %v2929
    %2967 = vmatprep.subr.mxu0 0.0
    %2968 = vmatpush1.msra.mxu0 %v2930
    %2969 = vmatprep.subr.mxu0 0.0
    %2970 = vmatpush1.msra.mxu0 %v2931
    %2971 = vmatprep.subr.mxu0 0.0
    %2972 = vmatpush1.msra.mxu0 %v2932
    %2973 = vmatprep.subr.mxu0 0.0
    %2974 = vmatpush1.msra.mxu0 0.0
    %2975 = vmatprep.subr.mxu0 0.0
    %2976 = vmatpush1.msra.mxu0 0.0
    %2977 = vmatprep.subr.mxu0 0.0
    %2978 = vmatpush1.msra.mxu0 0.0
    %2979 = vmatprep.subr.mxu0 0.0
    %2980 = vmatpush1.msra.mxu0 0.0
    %2981 = vmatprep.subr.mxu0 0.0
    %2982 = vmatpush1.msra.mxu0 0.0
    %2983 = vmatprep.subr.mxu0 0.0
    %2984 = vmatpush1.msra.mxu0 0.0
    %2985 = vmatprep.subr.mxu0 0.0
    %2986 = vmatpush1.msra.mxu0 0.0
    %2987 = vmatprep.subr.mxu0 0.0
    %2988 = vmatpush1.msra.mxu0 0.0
    %2989 = vmatprep.subr.mxu0 0.0
    %2990 = vmatpush1.msra.mxu0 0.0
    %2991 = vmatprep.subr.mxu0 0.0
    %2992 = vmatpush1.msra.mxu0 0.0
    %2993 = vmatprep.subr.mxu0 0.0
    %2994 = vmatpush1.msra.mxu0 0.0
    %2995 = vmatprep.subr.mxu0 0.0
    %2996 = vmatpush1.msra.mxu0 0.0
    %2997 = vmatprep.subr.mxu0 0.0
    %2998 = vmatpush1.msra.mxu0 0.0
    %2999 = vmatprep.subr.mxu0 0.0
    %3000 = vmatpush1.msra.mxu0 0.0
    %3001 = vmatprep.subr.mxu0 0.0
    %3002 = vmatpush1.msra.mxu0 0.0
    %3003 = vmatprep.subr.mxu0 0.0
    %3004 = vmatpush1.msra.mxu0 0.0
    %3005 = vmatprep.subr.mxu0 0.0
    %3006 = vmatpush1.msra.mxu0 0.0
    %3007 = vmatprep.subr.mxu0 0.0
    %3008 = vmatpush1.msra.mxu0 0.0
    %3009 = vmatprep.subr.mxu0 0.0
    %3010 = vmatpush1.msra.mxu0 0.0
    %3011 = vmatprep.subr.mxu0 0.0
    %3012 = vmatpush1.msra.mxu0 0.0
    %3013 = vmatprep.subr.mxu0 0.0
    %3014 = vmatpush1.msra.mxu0 0.0
    %3015 = vmatprep.subr.mxu0 0.0
    %3016 = vmatpush1.msra.mxu0 0.0
    %3017 = vmatprep.subr.mxu0 0.0
    %3018 = vmatpush1.msra.mxu0 0.0
    %3019 = vmatprep.subr.mxu0 0.0
    %3020 = vmatpush1.msra.mxu0 0.0
    %3021 = vmatprep.mubr.f32.mxu0 0.0
    %3022 = vmatmul.mubr.f32.gmra.mrb[0].mxu0 %v2934
    %v3023 = vpop.f32.mrb[0].mxu0
    %v3024 = vadd.f32 0.0, %v3023
    %v3025 = vpop.f32.mrb[0].mxu0
    %3026 = vmatprep.mubr.f32.mxu0 0.0
    %3027 = vmatmul.mubr.f32.gmra.mrb[0].mxu0 %v2937
    %v3028 = vpop.f32.mrb[0].mxu0
    %v3029 = vadd.f32 0.0, %v3028
    %v3030 = vpop.f32.mrb[0].mxu0
    %3031 = vmatprep.mubr.f32.mxu0 0.0
    %3032 = vmatmul.mubr.f32.gmra.mrb[0].mxu0 %v2940
    %v3033 = vpop.f32.mrb[0].mxu0
    %v3034 = vadd.f32 0.0, %v3033
    %v3035 = vpop.f32.mrb[0].mxu0
    %3036 = vmatprep.mubr.f32.mxu0 0.0
    %3037 = vmatmul.mubr.f32.gmra.mrb[0].mxu0 %v2943
    %v3038 = vpop.f32.mrb[0].mxu0
    %v3039 = vadd.f32 0.0, %v3038
    %v3040 = vpop.f32.mrb[0].mxu0
    %3041 = vmatprep.mubr.f32.mxu0 0.0
    %3042 = vmatmul.mubr.f32.gmra.mrb[0].mxu0 %v2946
    %v3043 = vpop.f32.mrb[0].mxu0
    %v3044 = vadd.f32 0.0, %v3043
    %v3045 = vpop.f32.mrb[0].mxu0
    %3046 = vmatprep.mubr.f32.mxu0 0.0
    %3047 = vmatmul.mubr.f32.gmra.mrb[0].mxu0 %v2949
    %v3048 = vpop.f32.mrb[0].mxu0
    %v3049 = vadd.f32 0.0, %v3048
    %v3050 = vpop.f32.mrb[0].mxu0
    %3051 = vmatprep.mubr.f32.mxu0 0.0
    %3052 = vmatmul.mubr.f32.gmra.mrb[0].mxu0 %v2952
    %v3053 = vpop.f32.mrb[0].mxu0
    %v3054 = vadd.f32 0.0, %v3053
    %v3055 = vpop.f32.mrb[0].mxu0
    %3056 = vmatprep.mubr.f32.mxu0 0.0
    %3057 = vmatmul.mubr.f32.gmra.mrb[0].mxu0 %v2955
    %v3058 = vpop.f32.mrb[0].mxu0
    %v3059 = vadd.f32 0.0, %v3058
    %v3060 = vpop.f32.mrb[0].mxu0
    %3061 = vdwg.mxu0
    %v3062 = vmul.f32 %v3024, 0.25
    %v3063 = vmul.f32 %v3029, 0.25
    %v3064 = vmul.f32 %v3034, 0.25
    %v3065 = vmul.f32 %v3039, 0.25
    %v3066 = vmul.f32 %v3044, 0.25
    %v3067 = vmul.f32 %v3049, 0.25
    %v3068 = vmul.f32 %v3054, 0.25
    %v3069 = vmul.f32 %v3059, 0.25
    %3070 = vmatprep.subr.mxu0 0.0
    %3071 = vmatpush1.msra.mxu0 %v3062
    %3072 = vmatprep.subr.mxu0 0.0
    %3073 = vmatpush1.msra.mxu0 %v3063
    %3074 = vmatprep.subr.mxu0 0.0
    %3075 = vmatpush1.msra.mxu0 %v3064
    %3076 = vmatprep.subr.mxu0 0.0
    %3077 = vmatpush1.msra.mxu0 %v3065
    %3078 = vmatprep.subr.mxu0 0.0
    %3079 = vmatpush1.msra.mxu0 %v3066
    %3080 = vmatprep.subr.mxu0 0.0
    %3081 = vmatpush1.msra.mxu0 %v3067
    %3082 = vmatprep.subr.mxu0 0.0
    %3083 = vmatpush1.msra.mxu0 %v3068
    %3084 = vmatprep.subr.mxu0 0.0
    %3085 = vmatpush1.msra.mxu0 %v3069
    %3086 = vmatprep.subr.mxu0 0.0
    %3087 = vmatpush1.msra.mxu0 0.0
    %3088 = vmatprep.subr.mxu0 0.0
    %3089 = vmatpush1.msra.mxu0 0.0
    %3090 = vmatprep.subr.mxu0 0.0
    %3091 = vmatpush1.msra.mxu0 0.0
    %3092 = vmatprep.subr.mxu0 0.0
    %3093 = vmatpush1.msra.mxu0 0.0
    %3094 = vmatprep.subr.mxu0 0.0
    %3095 = vmatpush1.msra.mxu0 0.0
    %3096 = vmatprep.subr.mxu0 0.0
    %3097 = vmatpush1.msra.mxu0 0.0
    %3098 = vmatprep.subr.mxu0 0.0
    %3099 = vmatpush1.msra.mxu0 0.0
    %3100 = vmatprep.subr.mxu0 0.0
    %3101 = vmatpush1.msra.mxu0 0.0
    %3102 = vmatprep.subr.mxu0 0.0
    %3103 = vmatpush1.msra.mxu0 0.0
    %3104 = vmatprep.subr.mxu0 0.0
    %3105 = vmatpush1.msra.mxu0 0.0
    %3106 = vmatprep.subr.mxu0 0.0
    %3107 = vmatpush1.msra.mxu0 0.0
    %3108 = vmatprep.subr.mxu0 0.0
    %3109 = vmatpush1.msra.mxu0 0.0
    %3110 = vmatprep.subr.mxu0 0.0
    %3111 = vmatpush1.msra.mxu0 0.0
    %3112 = vmatprep.subr.mxu0 0.0
    %3113 = vmatpush1.msra.mxu0 0.0
    %3114 = vmatprep.subr.mxu0 0.0
    %3115 = vmatpush1.msra.mxu0 0.0
    %3116 = vmatprep.subr.mxu0 0.0
    %3117 = vmatpush1.msra.mxu0 0.0
    %3118 = vmatprep.subr.mxu0 0.0
    %3119 = vmatpush1.msra.mxu0 0.0
    %3120 = vmatprep.subr.mxu0 0.0
    %3121 = vmatpush1.msra.mxu0 0.0
    %3122 = vmatprep.subr.mxu0 0.0
    %3123 = vmatpush1.msra.mxu0 0.0
    %3124 = vmatprep.subr.mxu0 0.0
    %3125 = vmatpush1.msra.mxu0 0.0
    %3126 = vmatprep.subr.mxu0 0.0
    %3127 = vmatpush1.msra.mxu0 0.0
    %3128 = vmatprep.subr.mxu0 0.0
    %3129 = vmatpush1.msra.mxu0 0.0
    %3130 = vmatprep.subr.mxu0 0.0
    %3131 = vmatpush1.msra.mxu0 0.0
    %3132 = vmatprep.subr.mxu0 0.0
    %3133 = vmatpush1.msra.mxu0 0.0
    %3134 = vmatprep.mubr.f32.mxu0 0.0
    %3135 = vmatmul.mubr.f32.gmra.mrb[0].mxu0 %v1523
    %v3136 = vpop.f32.mrb[0].mxu0
    %v3137 = vadd.f32 0.0, %v3136
    %v3138 = vpop.f32.mrb[0].mxu0
    %3139 = vmatprep.mubr.f32.mxu0 0.0
    %3140 = vmatmul.mubr.f32.gmra.mrb[0].mxu0 %v1526
    %v3141 = vpop.f32.mrb[0].mxu0
    %v3142 = vadd.f32 0.0, %v3141
    %v3143 = vpop.f32.mrb[0].mxu0
    %3144 = vmatprep.mubr.f32.mxu0 0.0
    %3145 = vmatmul.mubr.f32.gmra.mrb[0].mxu0 %v1529
    %v3146 = vpop.f32.mrb[0].mxu0
    %v3147 = vadd.f32 0.0, %v3146
    %v3148 = vpop.f32.mrb[0].mxu0
    %3149 = vmatprep.mubr.f32.mxu0 0.0
    %3150 = vmatmul.mubr.f32.gmra.mrb[0].mxu0 %v1532
    %v3151 = vpop.f32.mrb[0].mxu0
    %v3152 = vadd.f32 0.0, %v3151
    %v3153 = vpop.f32.mrb[0].mxu0
    %3154 = vmatprep.mubr.f32.mxu0 0.0
    %3155 = vmatmul.mubr.f32.gmra.mrb[0].mxu0 %v1535
    %v3156 = vpop.f32.mrb[0].mxu0
    %v3157 = vadd.f32 0.0, %v3156
    %v3158 = vpop.f32.mrb[0].mxu0
    %3159 = vmatprep.mubr.f32.mxu0 0.0
    %3160 = vmatmul.mubr.f32.gmra.mrb[0].mxu0 %v1538
    %v3161 = vpop.f32.mrb[0].mxu0
    %v3162 = vadd.f32 0.0, %v3161
    %v3163 = vpop.f32.mrb[0].mxu0
    %3164 = vmatprep.mubr.f32.mxu0 0.0
    %3165 = vmatmul.mubr.f32.gmra.mrb[0].mxu0 %v1541
    %v3166 = vpop.f32.mrb[0].mxu0
    %v3167 = vadd.f32 0.0, %v3166
    %v3168 = vpop.f32.mrb[0].mxu0
    %3169 = vmatprep.mubr.f32.mxu0 0.0
    %3170 = vmatmul.mubr.f32.gmra.mrb[0].mxu0 %v1544
    %v3171 = vpop.f32.mrb[0].mxu0
    %v3172 = vadd.f32 0.0, %v3171
    %v3173 = vpop.f32.mrb[0].mxu0
    %3174 = vdwg.mxu0
    %v3175 = vsub.f32 %v1651, %v3137
    %v3176 = vsub.f32 %v1652, %v3142
    %v3177 = vsub.f32 %v1653, %v3147
    %v3178 = vsub.f32 %v1654, %v3152
    %v3179 = vsub.f32 %v1655, %v3157
    %v3180 = vsub.f32 %v1656, %v3162
    %v3181 = vsub.f32 %v1657, %v3167
    %v3182 = vsub.f32 %v1658, %v3172
    %v3184 = vsel %vm791, %v3137, 0
    %v3187 = vsel %vm791, %v3142, 0
    %v3190 = vsel %vm791, %v3147, 0
    %v3193 = vsel %vm791, %v3152, 0
    %v3196 = vsel %vm791, %v3157, 0
    %v3199 = vsel %vm791, %v3162, 0
    %v3202 = vsel %vm791, %v3167, 0
    %v3205 = vsel %vm791, %v3172, 0
    %3207 = vmatprep.subr.mxu0 0.0
    %3208 = vmatpush1.msra.mxu0 %v3175
    %3209 = vmatprep.subr.mxu0 0.0
    %3210 = vmatpush1.msra.mxu0 %v3176
    %3211 = vmatprep.subr.mxu0 0.0
    %3212 = vmatpush1.msra.mxu0 %v3177
    %3213 = vmatprep.subr.mxu0 0.0
    %3214 = vmatpush1.msra.mxu0 %v3178
    %3215 = vmatprep.subr.mxu0 0.0
    %3216 = vmatpush1.msra.mxu0 %v3179
    %3217 = vmatprep.subr.mxu0 0.0
    %3218 = vmatpush1.msra.mxu0 %v3180
    %3219 = vmatprep.subr.mxu0 0.0
    %3220 = vmatpush1.msra.mxu0 %v3181
    %3221 = vmatprep.subr.mxu0 0.0
    %3222 = vmatpush1.msra.mxu0 %v3182
    %3223 = vmatprep.subr.mxu0 0.0
    %3224 = vmatpush1.msra.mxu0 0.0
    %3225 = vmatprep.subr.mxu0 0.0
    %3226 = vmatpush1.msra.mxu0 0.0
    %3227 = vmatprep.subr.mxu0 0.0
    %3228 = vmatpush1.msra.mxu0 0.0
    %3229 = vmatprep.subr.mxu0 0.0
    %3230 = vmatpush1.msra.mxu0 0.0
    %3231 = vmatprep.subr.mxu0 0.0
    %3232 = vmatpush1.msra.mxu0 0.0
    %3233 = vmatprep.subr.mxu0 0.0
    %3234 = vmatpush1.msra.mxu0 0.0
    %3235 = vmatprep.subr.mxu0 0.0
    %3236 = vmatpush1.msra.mxu0 0.0
    %3237 = vmatprep.subr.mxu0 0.0
    %3238 = vmatpush1.msra.mxu0 0.0
    %3239 = vmatprep.subr.mxu0 0.0
    %3240 = vmatpush1.msra.mxu0 0.0
    %3241 = vmatprep.subr.mxu0 0.0
    %3242 = vmatpush1.msra.mxu0 0.0
    %3243 = vmatprep.subr.mxu0 0.0
    %3244 = vmatpush1.msra.mxu0 0.0
    %3245 = vmatprep.subr.mxu0 0.0
    %3246 = vmatpush1.msra.mxu0 0.0
    %3247 = vmatprep.subr.mxu0 0.0
    %3248 = vmatpush1.msra.mxu0 0.0
    %3249 = vmatprep.subr.mxu0 0.0
    %3250 = vmatpush1.msra.mxu0 0.0
    %3251 = vmatprep.subr.mxu0 0.0
    %3252 = vmatpush1.msra.mxu0 0.0
    %3253 = vmatprep.subr.mxu0 0.0
    %3254 = vmatpush1.msra.mxu0 0.0
    %3255 = vmatprep.subr.mxu0 0.0
    %3256 = vmatpush1.msra.mxu0 0.0
    %3257 = vmatprep.subr.mxu0 0.0
    %3258 = vmatpush1.msra.mxu0 0.0
    %3259 = vmatprep.subr.mxu0 0.0
    %3260 = vmatpush1.msra.mxu0 0.0
    %3261 = vmatprep.subr.mxu0 0.0
    %3262 = vmatpush1.msra.mxu0 0.0
    %3263 = vmatprep.subr.mxu0 0.0
    %3264 = vmatpush1.msra.mxu0 0.0
    %3265 = vmatprep.subr.mxu0 0.0
    %3266 = vmatpush1.msra.mxu0 0.0
    %3267 = vmatprep.subr.mxu0 0.0
    %3268 = vmatpush1.msra.mxu0 0.0
    %3269 = vmatprep.subr.mxu0 0.0
    %3270 = vmatpush1.msra.mxu0 0.0
    %3271 = vmatprep.mubr.f32.mxu0 0.0
    %3272 = vmatmul.mubr.f32.gmra.mrb[0].mxu0 %v3184
    %v3273 = vpop.f32.mrb[0].mxu0
    %v3274 = vadd.f32 0.0, %v3273
    %v3275 = vpop.f32.mrb[0].mxu0
    %3276 = vmatprep.mubr.f32.mxu0 0.0
    %3277 = vmatmul.mubr.f32.gmra.mrb[0].mxu0 %v3187
    %v3278 = vpop.f32.mrb[0].mxu0
    %v3279 = vadd.f32 0.0, %v3278
    %v3280 = vpop.f32.mrb[0].mxu0
    %3281 = vmatprep.mubr.f32.mxu0 0.0
    %3282 = vmatmul.mubr.f32.gmra.mrb[0].mxu0 %v3190
    %v3283 = vpop.f32.mrb[0].mxu0
    %v3284 = vadd.f32 0.0, %v3283
    %v3285 = vpop.f32.mrb[0].mxu0
    %3286 = vmatprep.mubr.f32.mxu0 0.0
    %3287 = vmatmul.mubr.f32.gmra.mrb[0].mxu0 %v3193
    %v3288 = vpop.f32.mrb[0].mxu0
    %v3289 = vadd.f32 0.0, %v3288
    %v3290 = vpop.f32.mrb[0].mxu0
    %3291 = vmatprep.mubr.f32.mxu0 0.0
    %3292 = vmatmul.mubr.f32.gmra.mrb[0].mxu0 %v3196
    %v3293 = vpop.f32.mrb[0].mxu0
    %v3294 = vadd.f32 0.0, %v3293
    %v3295 = vpop.f32.mrb[0].mxu0
    %3296 = vmatprep.mubr.f32.mxu0 0.0
    %3297 = vmatmul.mubr.f32.gmra.mrb[0].mxu0 %v3199
    %v3298 = vpop.f32.mrb[0].mxu0
    %v3299 = vadd.f32 0.0, %v3298
    %v3300 = vpop.f32.mrb[0].mxu0
    %3301 = vmatprep.mubr.f32.mxu0 0.0
    %3302 = vmatmul.mubr.f32.gmra.mrb[0].mxu0 %v3202
    %v3303 = vpop.f32.mrb[0].mxu0
    %v3304 = vadd.f32 0.0, %v3303
    %v3305 = vpop.f32.mrb[0].mxu0
    %3306 = vmatprep.mubr.f32.mxu0 0.0
    %3307 = vmatmul.mubr.f32.gmra.mrb[0].mxu0 %v3205
    %v3308 = vpop.f32.mrb[0].mxu0
    %v3309 = vadd.f32 0.0, %v3308
    %v3310 = vpop.f32.mrb[0].mxu0
    %3311 = vdwg.mxu0
    %v3312 = vsub.f32 %v1667, %v3274
    %v3313 = vsub.f32 %v1668, %v3279
    %v3314 = vsub.f32 %v1669, %v3284
    %v3315 = vsub.f32 %v1670, %v3289
    %v3316 = vsub.f32 %v1671, %v3294
    %v3317 = vsub.f32 %v1672, %v3299
    %v3318 = vsub.f32 %v1673, %v3304
    %v3319 = vsub.f32 %v1674, %v3309
    %3320 = vmatprep.subr.mxu0 0.0
    %3321 = vmatpush1.msra.mxu0 %v3312
    %3322 = vmatprep.subr.mxu0 0.0
    %3323 = vmatpush1.msra.mxu0 %v3313
    %3324 = vmatprep.subr.mxu0 0.0
    %3325 = vmatpush1.msra.mxu0 %v3314
    %3326 = vmatprep.subr.mxu0 0.0
    %3327 = vmatpush1.msra.mxu0 %v3315
    %3328 = vmatprep.subr.mxu0 0.0
    %3329 = vmatpush1.msra.mxu0 %v3316
    %3330 = vmatprep.subr.mxu0 0.0
    %3331 = vmatpush1.msra.mxu0 %v3317
    %3332 = vmatprep.subr.mxu0 0.0
    %3333 = vmatpush1.msra.mxu0 %v3318
    %3334 = vmatprep.subr.mxu0 0.0
    %3335 = vmatpush1.msra.mxu0 %v3319
    %3336 = vmatprep.subr.mxu0 0.0
    %3337 = vmatpush1.msra.mxu0 0.0
    %3338 = vmatprep.subr.mxu0 0.0
    %3339 = vmatpush1.msra.mxu0 0.0
    %3340 = vmatprep.subr.mxu0 0.0
    %3341 = vmatpush1.msra.mxu0 0.0
    %3342 = vmatprep.subr.mxu0 0.0
    %3343 = vmatpush1.msra.mxu0 0.0
    %3344 = vmatprep.subr.mxu0 0.0
    %3345 = vmatpush1.msra.mxu0 0.0
    %3346 = vmatprep.subr.mxu0 0.0
    %3347 = vmatpush1.msra.mxu0 0.0
    %3348 = vmatprep.subr.mxu0 0.0
    %3349 = vmatpush1.msra.mxu0 0.0
    %3350 = vmatprep.subr.mxu0 0.0
    %3351 = vmatpush1.msra.mxu0 0.0
    %3352 = vmatprep.subr.mxu0 0.0
    %3353 = vmatpush1.msra.mxu0 0.0
    %3354 = vmatprep.subr.mxu0 0.0
    %3355 = vmatpush1.msra.mxu0 0.0
    %3356 = vmatprep.subr.mxu0 0.0
    %3357 = vmatpush1.msra.mxu0 0.0
    %3358 = vmatprep.subr.mxu0 0.0
    %3359 = vmatpush1.msra.mxu0 0.0
    %3360 = vmatprep.subr.mxu0 0.0
    %3361 = vmatpush1.msra.mxu0 0.0
    %3362 = vmatprep.subr.mxu0 0.0
    %3363 = vmatpush1.msra.mxu0 0.0
    %3364 = vmatprep.subr.mxu0 0.0
    %3365 = vmatpush1.msra.mxu0 0.0
    %3366 = vmatprep.subr.mxu0 0.0
    %3367 = vmatpush1.msra.mxu0 0.0
    %3368 = vmatprep.subr.mxu0 0.0
    %3369 = vmatpush1.msra.mxu0 0.0
    %3370 = vmatprep.subr.mxu0 0.0
    %3371 = vmatpush1.msra.mxu0 0.0
    %3372 = vmatprep.subr.mxu0 0.0
    %3373 = vmatpush1.msra.mxu0 0.0
    %3374 = vmatprep.subr.mxu0 0.0
    %3375 = vmatpush1.msra.mxu0 0.0
    %3376 = vmatprep.subr.mxu0 0.0
    %3377 = vmatpush1.msra.mxu0 0.0
    %3378 = vmatprep.subr.mxu0 0.0
    %3379 = vmatpush1.msra.mxu0 0.0
    %3380 = vmatprep.subr.mxu0 0.0
    %3381 = vmatpush1.msra.mxu0 0.0
    %3382 = vmatprep.subr.mxu0 0.0
    %3383 = vmatpush1.msra.mxu0 0.0
    %3384 = vmatprep.mubr.f32.mxu0 0.0
    %3385 = vmatmul.mubr.f32.gmra.mrb[0].mxu0 %v3184
    %v3386 = vpop.f32.mrb[0].mxu0
    %v3387 = vadd.f32 0.0, %v3386
    %v3388 = vpop.f32.mrb[0].mxu0
    %3389 = vmatprep.mubr.f32.mxu0 0.0
    %3390 = vmatmul.mubr.f32.gmra.mrb[0].mxu0 %v3187
    %v3391 = vpop.f32.mrb[0].mxu0
    %v3392 = vadd.f32 0.0, %v3391
    %v3393 = vpop.f32.mrb[0].mxu0
    %3394 = vmatprep.mubr.f32.mxu0 0.0
    %3395 = vmatmul.mubr.f32.gmra.mrb[0].mxu0 %v3190
    %v3396 = vpop.f32.mrb[0].mxu0
    %v3397 = vadd.f32 0.0, %v3396
    %v3398 = vpop.f32.mrb[0].mxu0
    %3399 = vmatprep.mubr.f32.mxu0 0.0
    %3400 = vmatmul.mubr.f32.gmra.mrb[0].mxu0 %v3193
    %v3401 = vpop.f32.mrb[0].mxu0
    %v3402 = vadd.f32 0.0, %v3401
    %v3403 = vpop.f32.mrb[0].mxu0
    %3404 = vmatprep.mubr.f32.mxu0 0.0
    %3405 = vmatmul.mubr.f32.gmra.mrb[0].mxu0 %v3196
    %v3406 = vpop.f32.mrb[0].mxu0
    %v3407 = vadd.f32 0.0, %v3406
    %v3408 = vpop.f32.mrb[0].mxu0
    %3409 = vmatprep.mubr.f32.mxu0 0.0
    %3410 = vmatmul.mubr.f32.gmra.mrb[0].mxu0 %v3199
    %v3411 = vpop.f32.mrb[0].mxu0
    %v3412 = vadd.f32 0.0, %v3411
    %v3413 = vpop.f32.mrb[0].mxu0
    %3414 = vmatprep.mubr.f32.mxu0 0.0
    %3415 = vmatmul.mubr.f32.gmra.mrb[0].mxu0 %v3202
    %v3416 = vpop.f32.mrb[0].mxu0
    %v3417 = vadd.f32 0.0, %v3416
    %v3418 = vpop.f32.mrb[0].mxu0
    %3419 = vmatprep.mubr.f32.mxu0 0.0
    %3420 = vmatmul.mubr.f32.gmra.mrb[0].mxu0 %v3205
    %v3421 = vpop.f32.mrb[0].mxu0
    %v3422 = vadd.f32 0.0, %v3421
    %v3423 = vpop.f32.mrb[0].mxu0
    %3424 = vdwg.mxu0
    %v3425 = vsub.f32 %v1812, %v3387
    %v3426 = vsub.f32 %v1813, %v3392
    %v3427 = vsub.f32 %v1814, %v3397
    %v3428 = vsub.f32 %v1815, %v3402
    %v3429 = vsub.f32 %v1816, %v3407
    %v3430 = vsub.f32 %v1817, %v3412
    %v3431 = vsub.f32 %v1818, %v3417
    %v3432 = vsub.f32 %v1819, %v3422
    %v3434 = vsel %vm791, %v3062, 0
    %v3437 = vsel %vm791, %v3063, 0
    %v3440 = vsel %vm791, %v3064, 0
    %v3443 = vsel %vm791, %v3065, 0
    %v3446 = vsel %vm791, %v3066, 0
    %v3449 = vsel %vm791, %v3067, 0
    %v3452 = vsel %vm791, %v3068, 0
    %v3455 = vsel %vm791, %v3069, 0
    %3457 = vmatprep.subr.mxu0 0.0
    %3458 = vmatpush1.msra.mxu0 %v3425
    %3459 = vmatprep.subr.mxu0 0.0
    %3460 = vmatpush1.msra.mxu0 %v3426
    %3461 = vmatprep.subr.mxu0 0.0
    %3462 = vmatpush1.msra.mxu0 %v3427
    %3463 = vmatprep.subr.mxu0 0.0
    %3464 = vmatpush1.msra.mxu0 %v3428
    %3465 = vmatprep.subr.mxu0 0.0
    %3466 = vmatpush1.msra.mxu0 %v3429
    %3467 = vmatprep.subr.mxu0 0.0
    %3468 = vmatpush1.msra.mxu0 %v3430
    %3469 = vmatprep.subr.mxu0 0.0
    %3470 = vmatpush1.msra.mxu0 %v3431
    %3471 = vmatprep.subr.mxu0 0.0
    %3472 = vmatpush1.msra.mxu0 %v3432
    %3473 = vmatprep.subr.mxu0 0.0
    %3474 = vmatpush1.msra.mxu0 0.0
    %3475 = vmatprep.subr.mxu0 0.0
    %3476 = vmatpush1.msra.mxu0 0.0
    %3477 = vmatprep.subr.mxu0 0.0
    %3478 = vmatpush1.msra.mxu0 0.0
    %3479 = vmatprep.subr.mxu0 0.0
    %3480 = vmatpush1.msra.mxu0 0.0
    %3481 = vmatprep.subr.mxu0 0.0
    %3482 = vmatpush1.msra.mxu0 0.0
    %3483 = vmatprep.subr.mxu0 0.0
    %3484 = vmatpush1.msra.mxu0 0.0
    %3485 = vmatprep.subr.mxu0 0.0
    %3486 = vmatpush1.msra.mxu0 0.0
    %3487 = vmatprep.subr.mxu0 0.0
    %3488 = vmatpush1.msra.mxu0 0.0
    %3489 = vmatprep.subr.mxu0 0.0
    %3490 = vmatpush1.msra.mxu0 0.0
    %3491 = vmatprep.subr.mxu0 0.0
    %3492 = vmatpush1.msra.mxu0 0.0
    %3493 = vmatprep.subr.mxu0 0.0
    %3494 = vmatpush1.msra.mxu0 0.0
    %3495 = vmatprep.subr.mxu0 0.0
    %3496 = vmatpush1.msra.mxu0 0.0
    %3497 = vmatprep.subr.mxu0 0.0
    %3498 = vmatpush1.msra.mxu0 0.0
    %3499 = vmatprep.subr.mxu0 0.0
    %3500 = vmatpush1.msra.mxu0 0.0
    %3501 = vmatprep.subr.mxu0 0.0
    %3502 = vmatpush1.msra.mxu0 0.0
    %3503 = vmatprep.subr.mxu0 0.0
    %3504 = vmatpush1.msra.mxu0 0.0
    %3505 = vmatprep.subr.mxu0 0.0
    %3506 = vmatpush1.msra.mxu0 0.0
    %3507 = vmatprep.subr.mxu0 0.0
    %3508 = vmatpush1.msra.mxu0 0.0
    %3509 = vmatprep.subr.mxu0 0.0
    %3510 = vmatpush1.msra.mxu0 0.0
    %3511 = vmatprep.subr.mxu0 0.0
    %3512 = vmatpush1.msra.mxu0 0.0
    %3513 = vmatprep.subr.mxu0 0.0
    %3514 = vmatpush1.msra.mxu0 0.0
    %3515 = vmatprep.subr.mxu0 0.0
    %3516 = vmatpush1.msra.mxu0 0.0
    %3517 = vmatprep.subr.mxu0 0.0
    %3518 = vmatpush1.msra.mxu0 0.0
    %3519 = vmatprep.subr.mxu0 0.0
    %3520 = vmatpush1.msra.mxu0 0.0
    %3521 = vmatprep.mubr.f32.mxu0 0.0
    %3522 = vmatmul.mubr.f32.gmra.mrb[0].mxu0 %v3434
    %v3523 = vpop.f32.mrb[0].mxu0
    %v3524 = vadd.f32 0.0, %v3523
    %v3525 = vpop.f32.mrb[0].mxu0
    %3526 = vmatprep.mubr.f32.mxu0 0.0
    %3527 = vmatmul.mubr.f32.gmra.mrb[0].mxu0 %v3437
    %v3528 = vpop.f32.mrb[0].mxu0
    %v3529 = vadd.f32 0.0, %v3528
    %v3530 = vpop.f32.mrb[0].mxu0
    %3531 = vmatprep.mubr.f32.mxu0 0.0
    %3532 = vmatmul.mubr.f32.gmra.mrb[0].mxu0 %v3440
    %v3533 = vpop.f32.mrb[0].mxu0
    %v3534 = vadd.f32 0.0, %v3533
    %v3535 = vpop.f32.mrb[0].mxu0
    %3536 = vmatprep.mubr.f32.mxu0 0.0
    %3537 = vmatmul.mubr.f32.gmra.mrb[0].mxu0 %v3443
    %v3538 = vpop.f32.mrb[0].mxu0
    %v3539 = vadd.f32 0.0, %v3538
    %v3540 = vpop.f32.mrb[0].mxu0
    %3541 = vmatprep.mubr.f32.mxu0 0.0
    %3542 = vmatmul.mubr.f32.gmra.mrb[0].mxu0 %v3446
    %v3543 = vpop.f32.mrb[0].mxu0
    %v3544 = vadd.f32 0.0, %v3543
    %v3545 = vpop.f32.mrb[0].mxu0
    %3546 = vmatprep.mubr.f32.mxu0 0.0
    %3547 = vmatmul.mubr.f32.gmra.mrb[0].mxu0 %v3449
    %v3548 = vpop.f32.mrb[0].mxu0
    %v3549 = vadd.f32 0.0, %v3548
    %v3550 = vpop.f32.mrb[0].mxu0
    %3551 = vmatprep.mubr.f32.mxu0 0.0
    %3552 = vmatmul.mubr.f32.gmra.mrb[0].mxu0 %v3452
    %v3553 = vpop.f32.mrb[0].mxu0
    %v3554 = vadd.f32 0.0, %v3553
    %v3555 = vpop.f32.mrb[0].mxu0
    %3556 = vmatprep.mubr.f32.mxu0 0.0
    %3557 = vmatmul.mubr.f32.gmra.mrb[0].mxu0 %v3455
    %v3558 = vpop.f32.mrb[0].mxu0
    %v3559 = vadd.f32 0.0, %v3558
    %v3560 = vpop.f32.mrb[0].mxu0
    %3561 = vdwg.mxu0
    %v3562 = vmul.f32 %v3524, 0.25
    %v3563 = vmul.f32 %v3529, 0.25
    %v3564 = vmul.f32 %v3534, 0.25
    %v3565 = vmul.f32 %v3539, 0.25
    %v3566 = vmul.f32 %v3544, 0.25
    %v3567 = vmul.f32 %v3549, 0.25
    %v3568 = vmul.f32 %v3554, 0.25
    %v3569 = vmul.f32 %v3559, 0.25
    %3570 = vmatprep.subr.mxu0 0.0
    %3571 = vmatpush1.msra.mxu0 %v3562
    %3572 = vmatprep.subr.mxu0 0.0
    %3573 = vmatpush1.msra.mxu0 %v3563
    %3574 = vmatprep.subr.mxu0 0.0
    %3575 = vmatpush1.msra.mxu0 %v3564
    %3576 = vmatprep.subr.mxu0 0.0
    %3577 = vmatpush1.msra.mxu0 %v3565
    %3578 = vmatprep.subr.mxu0 0.0
    %3579 = vmatpush1.msra.mxu0 %v3566
    %3580 = vmatprep.subr.mxu0 0.0
    %3581 = vmatpush1.msra.mxu0 %v3567
    %3582 = vmatprep.subr.mxu0 0.0
    %3583 = vmatpush1.msra.mxu0 %v3568
    %3584 = vmatprep.subr.mxu0 0.0
    %3585 = vmatpush1.msra.mxu0 %v3569
    %3586 = vmatprep.subr.mxu0 0.0
    %3587 = vmatpush1.msra.mxu0 0.0
    %3588 = vmatprep.subr.mxu0 0.0
    %3589 = vmatpush1.msra.mxu0 0.0
    %3590 = vmatprep.subr.mxu0 0.0
    %3591 = vmatpush1.msra.mxu0 0.0
    %3592 = vmatprep.subr.mxu0 0.0
    %3593 = vmatpush1.msra.mxu0 0.0
    %3594 = vmatprep.subr.mxu0 0.0
    %3595 = vmatpush1.msra.mxu0 0.0
    %3596 = vmatprep.subr.mxu0 0.0
    %3597 = vmatpush1.msra.mxu0 0.0
    %3598 = vmatprep.subr.mxu0 0.0
    %3599 = vmatpush1.msra.mxu0 0.0
    %3600 = vmatprep.subr.mxu0 0.0
    %3601 = vmatpush1.msra.mxu0 0.0
    %3602 = vmatprep.subr.mxu0 0.0
    %3603 = vmatpush1.msra.mxu0 0.0
    %3604 = vmatprep.subr.mxu0 0.0
    %3605 = vmatpush1.msra.mxu0 0.0
    %3606 = vmatprep.subr.mxu0 0.0
    %3607 = vmatpush1.msra.mxu0 0.0
    %3608 = vmatprep.subr.mxu0 0.0
    %3609 = vmatpush1.msra.mxu0 0.0
    %3610 = vmatprep.subr.mxu0 0.0
    %3611 = vmatpush1.msra.mxu0 0.0
    %3612 = vmatprep.subr.mxu0 0.0
    %3613 = vmatpush1.msra.mxu0 0.0
    %3614 = vmatprep.subr.mxu0 0.0
    %3615 = vmatpush1.msra.mxu0 0.0
    %3616 = vmatprep.subr.mxu0 0.0
    %3617 = vmatpush1.msra.mxu0 0.0
    %3618 = vmatprep.subr.mxu0 0.0
    %3619 = vmatpush1.msra.mxu0 0.0
    %3620 = vmatprep.subr.mxu0 0.0
    %3621 = vmatpush1.msra.mxu0 0.0
    %3622 = vmatprep.subr.mxu0 0.0
    %3623 = vmatpush1.msra.mxu0 0.0
    %3624 = vmatprep.subr.mxu0 0.0
    %3625 = vmatpush1.msra.mxu0 0.0
    %3626 = vmatprep.subr.mxu0 0.0
    %3627 = vmatpush1.msra.mxu0 0.0
    %3628 = vmatprep.subr.mxu0 0.0
    %3629 = vmatpush1.msra.mxu0 0.0
    %3630 = vmatprep.subr.mxu0 0.0
    %3631 = vmatpush1.msra.mxu0 0.0
    %3632 = vmatprep.subr.mxu0 0.0
    %3633 = vmatpush1.msra.mxu0 0.0
    %3634 = vmatprep.mubr.f32.mxu0 0.0
    %3635 = vmatmul.mubr.f32.gmra.mrb[0].mxu0 %v1523
    %v3636 = vpop.f32.mrb[0].mxu0
    %v3637 = vadd.f32 0.0, %v3636
    %v3638 = vpop.f32.mrb[0].mxu0
    %3639 = vmatprep.mubr.f32.mxu0 0.0
    %3640 = vmatmul.mubr.f32.gmra.mrb[0].mxu0 %v1526
    %v3641 = vpop.f32.mrb[0].mxu0
    %v3642 = vadd.f32 0.0, %v3641
    %v3643 = vpop.f32.mrb[0].mxu0
    %3644 = vmatprep.mubr.f32.mxu0 0.0
    %3645 = vmatmul.mubr.f32.gmra.mrb[0].mxu0 %v1529
    %v3646 = vpop.f32.mrb[0].mxu0
    %v3647 = vadd.f32 0.0, %v3646
    %v3648 = vpop.f32.mrb[0].mxu0
    %3649 = vmatprep.mubr.f32.mxu0 0.0
    %3650 = vmatmul.mubr.f32.gmra.mrb[0].mxu0 %v1532
    %v3651 = vpop.f32.mrb[0].mxu0
    %v3652 = vadd.f32 0.0, %v3651
    %v3653 = vpop.f32.mrb[0].mxu0
    %3654 = vmatprep.mubr.f32.mxu0 0.0
    %3655 = vmatmul.mubr.f32.gmra.mrb[0].mxu0 %v1535
    %v3656 = vpop.f32.mrb[0].mxu0
    %v3657 = vadd.f32 0.0, %v3656
    %v3658 = vpop.f32.mrb[0].mxu0
    %3659 = vmatprep.mubr.f32.mxu0 0.0
    %3660 = vmatmul.mubr.f32.gmra.mrb[0].mxu0 %v1538
    %v3661 = vpop.f32.mrb[0].mxu0
    %v3662 = vadd.f32 0.0, %v3661
    %v3663 = vpop.f32.mrb[0].mxu0
    %3664 = vmatprep.mubr.f32.mxu0 0.0
    %3665 = vmatmul.mubr.f32.gmra.mrb[0].mxu0 %v1541
    %v3666 = vpop.f32.mrb[0].mxu0
    %v3667 = vadd.f32 0.0, %v3666
    %v3668 = vpop.f32.mrb[0].mxu0
    %3669 = vmatprep.mubr.f32.mxu0 0.0
    %3670 = vmatmul.mubr.f32.gmra.mrb[0].mxu0 %v1544
    %v3671 = vpop.f32.mrb[0].mxu0
    %v3672 = vadd.f32 0.0, %v3671
    %v3673 = vpop.f32.mrb[0].mxu0
    %3674 = vdwg.mxu0
    %v3675 = vsub.f32 %v1651, %v3637
    %v3676 = vsub.f32 %v1652, %v3642
    %v3677 = vsub.f32 %v1653, %v3647
    %v3678 = vsub.f32 %v1654, %v3652
    %v3679 = vsub.f32 %v1655, %v3657
    %v3680 = vsub.f32 %v1656, %v3662
    %v3681 = vsub.f32 %v1657, %v3667
    %v3682 = vsub.f32 %v1658, %v3672
    %v3684 = vsel %vm791, %v3637, 0
    %v3687 = vsel %vm791, %v3642, 0
    %v3690 = vsel %vm791, %v3647, 0
    %v3693 = vsel %vm791, %v3652, 0
    %v3696 = vsel %vm791, %v3657, 0
    %v3699 = vsel %vm791, %v3662, 0
    %v3702 = vsel %vm791, %v3667, 0
    %v3705 = vsel %vm791, %v3672, 0
    %3707 = vmatprep.subr.mxu0 0.0
    %3708 = vmatpush1.msra.mxu0 %v3675
    %3709 = vmatprep.subr.mxu0 0.0
    %3710 = vmatpush1.msra.mxu0 %v3676
    %3711 = vmatprep.subr.mxu0 0.0
    %3712 = vmatpush1.msra.mxu0 %v3677
    %3713 = vmatprep.subr.mxu0 0.0
    %3714 = vmatpush1.msra.mxu0 %v3678
    %3715 = vmatprep.subr.mxu0 0.0
    %3716 = vmatpush1.msra.mxu0 %v3679
    %3717 = vmatprep.subr.mxu0 0.0
    %3718 = vmatpush1.msra.mxu0 %v3680
    %3719 = vmatprep.subr.mxu0 0.0
    %3720 = vmatpush1.msra.mxu0 %v3681
    %3721 = vmatprep.subr.mxu0 0.0
    %3722 = vmatpush1.msra.mxu0 %v3682
    %3723 = vmatprep.subr.mxu0 0.0
    %3724 = vmatpush1.msra.mxu0 0.0
    %3725 = vmatprep.subr.mxu0 0.0
    %3726 = vmatpush1.msra.mxu0 0.0
    %3727 = vmatprep.subr.mxu0 0.0
    %3728 = vmatpush1.msra.mxu0 0.0
    %3729 = vmatprep.subr.mxu0 0.0
    %3730 = vmatpush1.msra.mxu0 0.0
    %3731 = vmatprep.subr.mxu0 0.0
    %3732 = vmatpush1.msra.mxu0 0.0
    %3733 = vmatprep.subr.mxu0 0.0
    %3734 = vmatpush1.msra.mxu0 0.0
    %3735 = vmatprep.subr.mxu0 0.0
    %3736 = vmatpush1.msra.mxu0 0.0
    %3737 = vmatprep.subr.mxu0 0.0
    %3738 = vmatpush1.msra.mxu0 0.0
    %3739 = vmatprep.subr.mxu0 0.0
    %3740 = vmatpush1.msra.mxu0 0.0
    %3741 = vmatprep.subr.mxu0 0.0
    %3742 = vmatpush1.msra.mxu0 0.0
    %3743 = vmatprep.subr.mxu0 0.0
    %3744 = vmatpush1.msra.mxu0 0.0
    %3745 = vmatprep.subr.mxu0 0.0
    %3746 = vmatpush1.msra.mxu0 0.0
    %3747 = vmatprep.subr.mxu0 0.0
    %3748 = vmatpush1.msra.mxu0 0.0
    %3749 = vmatprep.subr.mxu0 0.0
    %3750 = vmatpush1.msra.mxu0 0.0
    %3751 = vmatprep.subr.mxu0 0.0
    %3752 = vmatpush1.msra.mxu0 0.0
    %3753 = vmatprep.subr.mxu0 0.0
    %3754 = vmatpush1.msra.mxu0 0.0
    %3755 = vmatprep.subr.mxu0 0.0
    %3756 = vmatpush1.msra.mxu0 0.0
    %3757 = vmatprep.subr.mxu0 0.0
    %3758 = vmatpush1.msra.mxu0 0.0
    %3759 = vmatprep.subr.mxu0 0.0
    %3760 = vmatpush1.msra.mxu0 0.0
    %3761 = vmatprep.subr.mxu0 0.0
    %3762 = vmatpush1.msra.mxu0 0.0
    %3763 = vmatprep.subr.mxu0 0.0
    %3764 = vmatpush1.msra.mxu0 0.0
    %3765 = vmatprep.subr.mxu0 0.0
    %3766 = vmatpush1.msra.mxu0 0.0
    %3767 = vmatprep.subr.mxu0 0.0
    %3768 = vmatpush1.msra.mxu0 0.0
    %3769 = vmatprep.subr.mxu0 0.0
    %3770 = vmatpush1.msra.mxu0 0.0
    %3771 = vmatprep.mubr.f32.mxu0 0.0
    %3772 = vmatmul.mubr.f32.gmra.mrb[0].mxu0 %v3684
    %v3773 = vpop.f32.mrb[0].mxu0
    %v3774 = vadd.f32 0.0, %v3773
    %v3775 = vpop.f32.mrb[0].mxu0
    %3776 = vmatprep.mubr.f32.mxu0 0.0
    %3777 = vmatmul.mubr.f32.gmra.mrb[0].mxu0 %v3687
    %v3778 = vpop.f32.mrb[0].mxu0
    %v3779 = vadd.f32 0.0, %v3778
    %v3780 = vpop.f32.mrb[0].mxu0
    %3781 = vmatprep.mubr.f32.mxu0 0.0
    %3782 = vmatmul.mubr.f32.gmra.mrb[0].mxu0 %v3690
    %v3783 = vpop.f32.mrb[0].mxu0
    %v3784 = vadd.f32 0.0, %v3783
    %v3785 = vpop.f32.mrb[0].mxu0
    %3786 = vmatprep.mubr.f32.mxu0 0.0
    %3787 = vmatmul.mubr.f32.gmra.mrb[0].mxu0 %v3693
    %v3788 = vpop.f32.mrb[0].mxu0
    %v3789 = vadd.f32 0.0, %v3788
    %v3790 = vpop.f32.mrb[0].mxu0
    %3791 = vmatprep.mubr.f32.mxu0 0.0
    %3792 = vmatmul.mubr.f32.gmra.mrb[0].mxu0 %v3696
    %v3793 = vpop.f32.mrb[0].mxu0
    %v3794 = vadd.f32 0.0, %v3793
    %v3795 = vpop.f32.mrb[0].mxu0
    %3796 = vmatprep.mubr.f32.mxu0 0.0
    %3797 = vmatmul.mubr.f32.gmra.mrb[0].mxu0 %v3699
    %v3798 = vpop.f32.mrb[0].mxu0
    %v3799 = vadd.f32 0.0, %v3798
    %v3800 = vpop.f32.mrb[0].mxu0
    %3801 = vmatprep.mubr.f32.mxu0 0.0
    %3802 = vmatmul.mubr.f32.gmra.mrb[0].mxu0 %v3702
    %v3803 = vpop.f32.mrb[0].mxu0
    %v3804 = vadd.f32 0.0, %v3803
    %v3805 = vpop.f32.mrb[0].mxu0
    %3806 = vmatprep.mubr.f32.mxu0 0.0
    %3807 = vmatmul.mubr.f32.gmra.mrb[0].mxu0 %v3705
    %v3808 = vpop.f32.mrb[0].mxu0
    %v3809 = vadd.f32 0.0, %v3808
    %v3810 = vpop.f32.mrb[0].mxu0
    %3811 = vdwg.mxu0
    %v3812 = vsub.f32 %v1667, %v3774
    %v3813 = vsub.f32 %v1668, %v3779
    %v3814 = vsub.f32 %v1669, %v3784
    %v3815 = vsub.f32 %v1670, %v3789
    %v3816 = vsub.f32 %v1671, %v3794
    %v3817 = vsub.f32 %v1672, %v3799
    %v3818 = vsub.f32 %v1673, %v3804
    %v3819 = vsub.f32 %v1674, %v3809
    %3820 = vmatprep.subr.mxu0 0.0
    %3821 = vmatpush1.msra.mxu0 %v3812
    %3822 = vmatprep.subr.mxu0 0.0
    %3823 = vmatpush1.msra.mxu0 %v3813
    %3824 = vmatprep.subr.mxu0 0.0
    %3825 = vmatpush1.msra.mxu0 %v3814
    %3826 = vmatprep.subr.mxu0 0.0
    %3827 = vmatpush1.msra.mxu0 %v3815
    %3828 = vmatprep.subr.mxu0 0.0
    %3829 = vmatpush1.msra.mxu0 %v3816
    %3830 = vmatprep.subr.mxu0 0.0
    %3831 = vmatpush1.msra.mxu0 %v3817
    %3832 = vmatprep.subr.mxu0 0.0
    %3833 = vmatpush1.msra.mxu0 %v3818
    %3834 = vmatprep.subr.mxu0 0.0
    %3835 = vmatpush1.msra.mxu0 %v3819
    %3836 = vmatprep.subr.mxu0 0.0
    %3837 = vmatpush1.msra.mxu0 0.0
    %3838 = vmatprep.subr.mxu0 0.0
    %3839 = vmatpush1.msra.mxu0 0.0
    %3840 = vmatprep.subr.mxu0 0.0
    %3841 = vmatpush1.msra.mxu0 0.0
    %3842 = vmatprep.subr.mxu0 0.0
    %3843 = vmatpush1.msra.mxu0 0.0
    %3844 = vmatprep.subr.mxu0 0.0
    %3845 = vmatpush1.msra.mxu0 0.0
    %3846 = vmatprep.subr.mxu0 0.0
    %3847 = vmatpush1.msra.mxu0 0.0
    %3848 = vmatprep.subr.mxu0 0.0
    %3849 = vmatpush1.msra.mxu0 0.0
    %3850 = vmatprep.subr.mxu0 0.0
    %3851 = vmatpush1.msra.mxu0 0.0
    %3852 = vmatprep.subr.mxu0 0.0
    %3853 = vmatpush1.msra.mxu0 0.0
    %3854 = vmatprep.subr.mxu0 0.0
    %3855 = vmatpush1.msra.mxu0 0.0
    %3856 = vmatprep.subr.mxu0 0.0
    %3857 = vmatpush1.msra.mxu0 0.0
    %3858 = vmatprep.subr.mxu0 0.0
    %3859 = vmatpush1.msra.mxu0 0.0
    %3860 = vmatprep.subr.mxu0 0.0
    %3861 = vmatpush1.msra.mxu0 0.0
    %3862 = vmatprep.subr.mxu0 0.0
    %3863 = vmatpush1.msra.mxu0 0.0
    %3864 = vmatprep.subr.mxu0 0.0
    %3865 = vmatpush1.msra.mxu0 0.0
    %3866 = vmatprep.subr.mxu0 0.0
    %3867 = vmatpush1.msra.mxu0 0.0
    %3868 = vmatprep.subr.mxu0 0.0
    %3869 = vmatpush1.msra.mxu0 0.0
    %3870 = vmatprep.subr.mxu0 0.0
    %3871 = vmatpush1.msra.mxu0 0.0
    %3872 = vmatprep.subr.mxu0 0.0
    %3873 = vmatpush1.msra.mxu0 0.0
    %3874 = vmatprep.subr.mxu0 0.0
    %3875 = vmatpush1.msra.mxu0 0.0
    %3876 = vmatprep.subr.mxu0 0.0
    %3877 = vmatpush1.msra.mxu0 0.0
    %3878 = vmatprep.subr.mxu0 0.0
    %3879 = vmatpush1.msra.mxu0 0.0
    %3880 = vmatprep.subr.mxu0 0.0
    %3881 = vmatpush1.msra.mxu0 0.0
    %3882 = vmatprep.subr.mxu0 0.0
    %3883 = vmatpush1.msra.mxu0 0.0
    %3884 = vmatprep.mubr.f32.mxu0 0.0
    %3885 = vmatmul.mubr.f32.gmra.mrb[0].mxu0 %v3684
    %v3886 = vpop.f32.mrb[0].mxu0
    %v3887 = vadd.f32 0.0, %v3886
    %v3888 = vpop.f32.mrb[0].mxu0
    %3889 = vmatprep.mubr.f32.mxu0 0.0
    %3890 = vmatmul.mubr.f32.gmra.mrb[0].mxu0 %v3687
    %v3891 = vpop.f32.mrb[0].mxu0
    %v3892 = vadd.f32 0.0, %v3891
    %v3893 = vpop.f32.mrb[0].mxu0
    %3894 = vmatprep.mubr.f32.mxu0 0.0
    %3895 = vmatmul.mubr.f32.gmra.mrb[0].mxu0 %v3690
    %v3896 = vpop.f32.mrb[0].mxu0
    %v3897 = vadd.f32 0.0, %v3896
    %v3898 = vpop.f32.mrb[0].mxu0
    %3899 = vmatprep.mubr.f32.mxu0 0.0
    %3900 = vmatmul.mubr.f32.gmra.mrb[0].mxu0 %v3693
    %v3901 = vpop.f32.mrb[0].mxu0
    %v3902 = vadd.f32 0.0, %v3901
    %v3903 = vpop.f32.mrb[0].mxu0
    %3904 = vmatprep.mubr.f32.mxu0 0.0
    %3905 = vmatmul.mubr.f32.gmra.mrb[0].mxu0 %v3696
    %v3906 = vpop.f32.mrb[0].mxu0
    %v3907 = vadd.f32 0.0, %v3906
    %v3908 = vpop.f32.mrb[0].mxu0
    %3909 = vmatprep.mubr.f32.mxu0 0.0
    %3910 = vmatmul.mubr.f32.gmra.mrb[0].mxu0 %v3699
    %v3911 = vpop.f32.mrb[0].mxu0
    %v3912 = vadd.f32 0.0, %v3911
    %v3913 = vpop.f32.mrb[0].mxu0
    %3914 = vmatprep.mubr.f32.mxu0 0.0
    %3915 = vmatmul.mubr.f32.gmra.mrb[0].mxu0 %v3702
    %v3916 = vpop.f32.mrb[0].mxu0
    %v3917 = vadd.f32 0.0, %v3916
    %v3918 = vpop.f32.mrb[0].mxu0
    %3919 = vmatprep.mubr.f32.mxu0 0.0
    %3920 = vmatmul.mubr.f32.gmra.mrb[0].mxu0 %v3705
    %v3921 = vpop.f32.mrb[0].mxu0
    %v3922 = vadd.f32 0.0, %v3921
    %v3923 = vpop.f32.mrb[0].mxu0
    %3924 = vdwg.mxu0
    %v3925 = vsub.f32 %v1812, %v3887
    %v3926 = vsub.f32 %v1813, %v3892
    %v3927 = vsub.f32 %v1814, %v3897
    %v3928 = vsub.f32 %v1815, %v3902
    %v3929 = vsub.f32 %v1816, %v3907
    %v3930 = vsub.f32 %v1817, %v3912
    %v3931 = vsub.f32 %v1818, %v3917
    %v3932 = vsub.f32 %v1819, %v3922
    %v3934 = vsel %vm791, %v3562, 0
    %v3937 = vsel %vm791, %v3563, 0
    %v3940 = vsel %vm791, %v3564, 0
    %v3943 = vsel %vm791, %v3565, 0
    %v3946 = vsel %vm791, %v3566, 0
    %v3949 = vsel %vm791, %v3567, 0
    %v3952 = vsel %vm791, %v3568, 0
    %v3955 = vsel %vm791, %v3569, 0
    %3957 = vmatprep.subr.mxu0 0.0
    %3958 = vmatpush1.msra.mxu0 %v3925
    %3959 = vmatprep.subr.mxu0 0.0
    %3960 = vmatpush1.msra.mxu0 %v3926
    %3961 = vmatprep.subr.mxu0 0.0
    %3962 = vmatpush1.msra.mxu0 %v3927
    %3963 = vmatprep.subr.mxu0 0.0
    %3964 = vmatpush1.msra.mxu0 %v3928
    %3965 = vmatprep.subr.mxu0 0.0
    %3966 = vmatpush1.msra.mxu0 %v3929
    %3967 = vmatprep.subr.mxu0 0.0
    %3968 = vmatpush1.msra.mxu0 %v3930
    %3969 = vmatprep.subr.mxu0 0.0
    %3970 = vmatpush1.msra.mxu0 %v3931
    %3971 = vmatprep.subr.mxu0 0.0
    %3972 = vmatpush1.msra.mxu0 %v3932
    %3973 = vmatprep.subr.mxu0 0.0
    %3974 = vmatpush1.msra.mxu0 0.0
    %3975 = vmatprep.subr.mxu0 0.0
    %3976 = vmatpush1.msra.mxu0 0.0
    %3977 = vmatprep.subr.mxu0 0.0
    %3978 = vmatpush1.msra.mxu0 0.0
    %3979 = vmatprep.subr.mxu0 0.0
    %3980 = vmatpush1.msra.mxu0 0.0
    %3981 = vmatprep.subr.mxu0 0.0
    %3982 = vmatpush1.msra.mxu0 0.0
    %3983 = vmatprep.subr.mxu0 0.0
    %3984 = vmatpush1.msra.mxu0 0.0
    %3985 = vmatprep.subr.mxu0 0.0
    %3986 = vmatpush1.msra.mxu0 0.0
    %3987 = vmatprep.subr.mxu0 0.0
    %3988 = vmatpush1.msra.mxu0 0.0
    %3989 = vmatprep.subr.mxu0 0.0
    %3990 = vmatpush1.msra.mxu0 0.0
    %3991 = vmatprep.subr.mxu0 0.0
    %3992 = vmatpush1.msra.mxu0 0.0
    %3993 = vmatprep.subr.mxu0 0.0
    %3994 = vmatpush1.msra.mxu0 0.0
    %3995 = vmatprep.subr.mxu0 0.0
    %3996 = vmatpush1.msra.mxu0 0.0
    %3997 = vmatprep.subr.mxu0 0.0
    %3998 = vmatpush1.msra.mxu0 0.0
    %3999 = vmatprep.subr.mxu0 0.0
    %4000 = vmatpush1.msra.mxu0 0.0
    %4001 = vmatprep.subr.mxu0 0.0
    %4002 = vmatpush1.msra.mxu0 0.0
    %4003 = vmatprep.subr.mxu0 0.0
    %4004 = vmatpush1.msra.mxu0 0.0
    %4005 = vmatprep.subr.mxu0 0.0
    %4006 = vmatpush1.msra.mxu0 0.0
    %4007 = vmatprep.subr.mxu0 0.0
    %4008 = vmatpush1.msra.mxu0 0.0
    %4009 = vmatprep.subr.mxu0 0.0
    %4010 = vmatpush1.msra.mxu0 0.0
    %4011 = vmatprep.subr.mxu0 0.0
    %4012 = vmatpush1.msra.mxu0 0.0
    %4013 = vmatprep.subr.mxu0 0.0
    %4014 = vmatpush1.msra.mxu0 0.0
    %4015 = vmatprep.subr.mxu0 0.0
    %4016 = vmatpush1.msra.mxu0 0.0
    %4017 = vmatprep.subr.mxu0 0.0
    %4018 = vmatpush1.msra.mxu0 0.0
    %4019 = vmatprep.subr.mxu0 0.0
    %4020 = vmatpush1.msra.mxu0 0.0
    %4021 = vmatprep.mubr.f32.mxu0 0.0
    %4022 = vmatmul.mubr.f32.gmra.mrb[0].mxu0 %v3934
    %v4023 = vpop.f32.mrb[0].mxu0
    %v4024 = vadd.f32 0.0, %v4023
    %v4025 = vpop.f32.mrb[0].mxu0
    %4026 = vmatprep.mubr.f32.mxu0 0.0
    %4027 = vmatmul.mubr.f32.gmra.mrb[0].mxu0 %v3937
    %v4028 = vpop.f32.mrb[0].mxu0
    %v4029 = vadd.f32 0.0, %v4028
    %v4030 = vpop.f32.mrb[0].mxu0
    %4031 = vmatprep.mubr.f32.mxu0 0.0
    %4032 = vmatmul.mubr.f32.gmra.mrb[0].mxu0 %v3940
    %v4033 = vpop.f32.mrb[0].mxu0
    %v4034 = vadd.f32 0.0, %v4033
    %v4035 = vpop.f32.mrb[0].mxu0
    %4036 = vmatprep.mubr.f32.mxu0 0.0
    %4037 = vmatmul.mubr.f32.gmra.mrb[0].mxu0 %v3943
    %v4038 = vpop.f32.mrb[0].mxu0
    %v4039 = vadd.f32 0.0, %v4038
    %v4040 = vpop.f32.mrb[0].mxu0
    %4041 = vmatprep.mubr.f32.mxu0 0.0
    %4042 = vmatmul.mubr.f32.gmra.mrb[0].mxu0 %v3946
    %v4043 = vpop.f32.mrb[0].mxu0
    %v4044 = vadd.f32 0.0, %v4043
    %v4045 = vpop.f32.mrb[0].mxu0
    %4046 = vmatprep.mubr.f32.mxu0 0.0
    %4047 = vmatmul.mubr.f32.gmra.mrb[0].mxu0 %v3949
    %v4048 = vpop.f32.mrb[0].mxu0
    %v4049 = vadd.f32 0.0, %v4048
    %v4050 = vpop.f32.mrb[0].mxu0
    %4051 = vmatprep.mubr.f32.mxu0 0.0
    %4052 = vmatmul.mubr.f32.gmra.mrb[0].mxu0 %v3952
    %v4053 = vpop.f32.mrb[0].mxu0
    %v4054 = vadd.f32 0.0, %v4053
    %v4055 = vpop.f32.mrb[0].mxu0
    %4056 = vmatprep.mubr.f32.mxu0 0.0
    %4057 = vmatmul.mubr.f32.gmra.mrb[0].mxu0 %v3955
    %v4058 = vpop.f32.mrb[0].mxu0
    %v4059 = vadd.f32 0.0, %v4058
    %v4060 = vpop.f32.mrb[0].mxu0
    %4061 = vdwg.mxu0
    %v4062 = vmul.f32 %v4024, 0.25
    %v4063 = vmul.f32 %v4029, 0.25
    %v4064 = vmul.f32 %v4034, 0.25
    %v4065 = vmul.f32 %v4039, 0.25
    %v4066 = vmul.f32 %v4044, 0.25
    %v4067 = vmul.f32 %v4049, 0.25
    %v4068 = vmul.f32 %v4054, 0.25
    %v4069 = vmul.f32 %v4059, 0.25
    %4070 = vmatprep.subr.mxu0 0.0
    %4071 = vmatpush1.msra.mxu0 %v4062
    %4072 = vmatprep.subr.mxu0 0.0
    %4073 = vmatpush1.msra.mxu0 %v4063
    %4074 = vmatprep.subr.mxu0 0.0
    %4075 = vmatpush1.msra.mxu0 %v4064
    %4076 = vmatprep.subr.mxu0 0.0
    %4077 = vmatpush1.msra.mxu0 %v4065
    %4078 = vmatprep.subr.mxu0 0.0
    %4079 = vmatpush1.msra.mxu0 %v4066
    %4080 = vmatprep.subr.mxu0 0.0
    %4081 = vmatpush1.msra.mxu0 %v4067
    %4082 = vmatprep.subr.mxu0 0.0
    %4083 = vmatpush1.msra.mxu0 %v4068
    %4084 = vmatprep.subr.mxu0 0.0
    %4085 = vmatpush1.msra.mxu0 %v4069
    %4086 = vmatprep.subr.mxu0 0.0
    %4087 = vmatpush1.msra.mxu0 0.0
    %4088 = vmatprep.subr.mxu0 0.0
    %4089 = vmatpush1.msra.mxu0 0.0
    %4090 = vmatprep.subr.mxu0 0.0
    %4091 = vmatpush1.msra.mxu0 0.0
    %4092 = vmatprep.subr.mxu0 0.0
    %4093 = vmatpush1.msra.mxu0 0.0
    %4094 = vmatprep.subr.mxu0 0.0
    %4095 = vmatpush1.msra.mxu0 0.0
    %4096 = vmatprep.subr.mxu0 0.0
    %4097 = vmatpush1.msra.mxu0 0.0
    %4098 = vmatprep.subr.mxu0 0.0
    %4099 = vmatpush1.msra.mxu0 0.0
    %4100 = vmatprep.subr.mxu0 0.0
    %4101 = vmatpush1.msra.mxu0 0.0
    %4102 = vmatprep.subr.mxu0 0.0
    %4103 = vmatpush1.msra.mxu0 0.0
    %4104 = vmatprep.subr.mxu0 0.0
    %4105 = vmatpush1.msra.mxu0 0.0
    %4106 = vmatprep.subr.mxu0 0.0
    %4107 = vmatpush1.msra.mxu0 0.0
    %4108 = vmatprep.subr.mxu0 0.0
    %4109 = vmatpush1.msra.mxu0 0.0
    %4110 = vmatprep.subr.mxu0 0.0
    %4111 = vmatpush1.msra.mxu0 0.0
    %4112 = vmatprep.subr.mxu0 0.0
    %4113 = vmatpush1.msra.mxu0 0.0
    %4114 = vmatprep.subr.mxu0 0.0
    %4115 = vmatpush1.msra.mxu0 0.0
    %4116 = vmatprep.subr.mxu0 0.0
    %4117 = vmatpush1.msra.mxu0 0.0
    %4118 = vmatprep.subr.mxu0 0.0
    %4119 = vmatpush1.msra.mxu0 0.0
    %4120 = vmatprep.subr.mxu0 0.0
    %4121 = vmatpush1.msra.mxu0 0.0
    %4122 = vmatprep.subr.mxu0 0.0
    %4123 = vmatpush1.msra.mxu0 0.0
    %4124 = vmatprep.subr.mxu0 0.0
    %4125 = vmatpush1.msra.mxu0 0.0
    %4126 = vmatprep.subr.mxu0 0.0
    %4127 = vmatpush1.msra.mxu0 0.0
    %4128 = vmatprep.subr.mxu0 0.0
    %4129 = vmatpush1.msra.mxu0 0.0
    %4130 = vmatprep.subr.mxu0 0.0
    %4131 = vmatpush1.msra.mxu0 0.0
    %4132 = vmatprep.subr.mxu0 0.0
    %4133 = vmatpush1.msra.mxu0 0.0
    %4134 = vmatprep.mubr.f32.mxu0 0.0
    %4135 = vmatmul.mubr.f32.gmra.mrb[0].mxu0 %v1523
    %v4136 = vpop.f32.mrb[0].mxu0
    %v4137 = vadd.f32 0.0, %v4136
    %v4138 = vpop.f32.mrb[0].mxu0
    %4139 = vmatprep.mubr.f32.mxu0 0.0
    %4140 = vmatmul.mubr.f32.gmra.mrb[0].mxu0 %v1526
    %v4141 = vpop.f32.mrb[0].mxu0
    %v4142 = vadd.f32 0.0, %v4141
    %v4143 = vpop.f32.mrb[0].mxu0
    %4144 = vmatprep.mubr.f32.mxu0 0.0
    %4145 = vmatmul.mubr.f32.gmra.mrb[0].mxu0 %v1529
    %v4146 = vpop.f32.mrb[0].mxu0
    %v4147 = vadd.f32 0.0, %v4146
    %v4148 = vpop.f32.mrb[0].mxu0
    %4149 = vmatprep.mubr.f32.mxu0 0.0
    %4150 = vmatmul.mubr.f32.gmra.mrb[0].mxu0 %v1532
    %v4151 = vpop.f32.mrb[0].mxu0
    %v4152 = vadd.f32 0.0, %v4151
    %v4153 = vpop.f32.mrb[0].mxu0
    %4154 = vmatprep.mubr.f32.mxu0 0.0
    %4155 = vmatmul.mubr.f32.gmra.mrb[0].mxu0 %v1535
    %v4156 = vpop.f32.mrb[0].mxu0
    %v4157 = vadd.f32 0.0, %v4156
    %v4158 = vpop.f32.mrb[0].mxu0
    %4159 = vmatprep.mubr.f32.mxu0 0.0
    %4160 = vmatmul.mubr.f32.gmra.mrb[0].mxu0 %v1538
    %v4161 = vpop.f32.mrb[0].mxu0
    %v4162 = vadd.f32 0.0, %v4161
    %v4163 = vpop.f32.mrb[0].mxu0
    %4164 = vmatprep.mubr.f32.mxu0 0.0
    %4165 = vmatmul.mubr.f32.gmra.mrb[0].mxu0 %v1541
    %v4166 = vpop.f32.mrb[0].mxu0
    %v4167 = vadd.f32 0.0, %v4166
    %v4168 = vpop.f32.mrb[0].mxu0
    %4169 = vmatprep.mubr.f32.mxu0 0.0
    %4170 = vmatmul.mubr.f32.gmra.mrb[0].mxu0 %v1544
    %v4171 = vpop.f32.mrb[0].mxu0
    %v4172 = vadd.f32 0.0, %v4171
    %v4173 = vpop.f32.mrb[0].mxu0
    %4174 = vdwg.mxu0
    %v4175 = vsub.f32 %v1651, %v4137
    %v4176 = vsub.f32 %v1652, %v4142
    %v4177 = vsub.f32 %v1653, %v4147
    %v4178 = vsub.f32 %v1654, %v4152
    %v4179 = vsub.f32 %v1655, %v4157
    %v4180 = vsub.f32 %v1656, %v4162
    %v4181 = vsub.f32 %v1657, %v4167
    %v4182 = vsub.f32 %v1658, %v4172
    %v4184 = vsel %vm791, %v4137, 0
    %v4187 = vsel %vm791, %v4142, 0
    %v4190 = vsel %vm791, %v4147, 0
    %v4193 = vsel %vm791, %v4152, 0
    %v4196 = vsel %vm791, %v4157, 0
    %v4199 = vsel %vm791, %v4162, 0
    %v4202 = vsel %vm791, %v4167, 0
    %v4205 = vsel %vm791, %v4172, 0
    %4207 = vmatprep.subr.mxu0 0.0
    %4208 = vmatpush1.msra.mxu0 %v4175
    %4209 = vmatprep.subr.mxu0 0.0
    %4210 = vmatpush1.msra.mxu0 %v4176
    %4211 = vmatprep.subr.mxu0 0.0
    %4212 = vmatpush1.msra.mxu0 %v4177
    %4213 = vmatprep.subr.mxu0 0.0
    %4214 = vmatpush1.msra.mxu0 %v4178
    %4215 = vmatprep.subr.mxu0 0.0
    %4216 = vmatpush1.msra.mxu0 %v4179
    %4217 = vmatprep.subr.mxu0 0.0
    %4218 = vmatpush1.msra.mxu0 %v4180
    %4219 = vmatprep.subr.mxu0 0.0
    %4220 = vmatpush1.msra.mxu0 %v4181
    %4221 = vmatprep.subr.mxu0 0.0
    %4222 = vmatpush1.msra.mxu0 %v4182
    %4223 = vmatprep.subr.mxu0 0.0
    %4224 = vmatpush1.msra.mxu0 0.0
    %4225 = vmatprep.subr.mxu0 0.0
    %4226 = vmatpush1.msra.mxu0 0.0
    %4227 = vmatprep.subr.mxu0 0.0
    %4228 = vmatpush1.msra.mxu0 0.0
    %4229 = vmatprep.subr.mxu0 0.0
    %4230 = vmatpush1.msra.mxu0 0.0
    %4231 = vmatprep.subr.mxu0 0.0
    %4232 = vmatpush1.msra.mxu0 0.0
    %4233 = vmatprep.subr.mxu0 0.0
    %4234 = vmatpush1.msra.mxu0 0.0
    %4235 = vmatprep.subr.mxu0 0.0
    %4236 = vmatpush1.msra.mxu0 0.0
    %4237 = vmatprep.subr.mxu0 0.0
    %4238 = vmatpush1.msra.mxu0 0.0
    %4239 = vmatprep.subr.mxu0 0.0
    %4240 = vmatpush1.msra.mxu0 0.0
    %4241 = vmatprep.subr.mxu0 0.0
    %4242 = vmatpush1.msra.mxu0 0.0
    %4243 = vmatprep.subr.mxu0 0.0
    %4244 = vmatpush1.msra.mxu0 0.0
    %4245 = vmatprep.subr.mxu0 0.0
    %4246 = vmatpush1.msra.mxu0 0.0
    %4247 = vmatprep.subr.mxu0 0.0
    %4248 = vmatpush1.msra.mxu0 0.0
    %4249 = vmatprep.subr.mxu0 0.0
    %4250 = vmatpush1.msra.mxu0 0.0
    %4251 = vmatprep.subr.mxu0 0.0
    %4252 = vmatpush1.msra.mxu0 0.0
    %4253 = vmatprep.subr.mxu0 0.0
    %4254 = vmatpush1.msra.mxu0 0.0
    %4255 = vmatprep.subr.mxu0 0.0
    %4256 = vmatpush1.msra.mxu0 0.0
    %4257 = vmatprep.subr.mxu0 0.0
    %4258 = vmatpush1.msra.mxu0 0.0
    %4259 = vmatprep.subr.mxu0 0.0
    %4260 = vmatpush1.msra.mxu0 0.0
    %4261 = vmatprep.subr.mxu0 0.0
    %4262 = vmatpush1.msra.mxu0 0.0
    %4263 = vmatprep.subr.mxu0 0.0
    %4264 = vmatpush1.msra.mxu0 0.0
    %4265 = vmatprep.subr.mxu0 0.0
    %4266 = vmatpush1.msra.mxu0 0.0
    %4267 = vmatprep.subr.mxu0 0.0
    %4268 = vmatpush1.msra.mxu0 0.0
    %4269 = vmatprep.subr.mxu0 0.0
    %4270 = vmatpush1.msra.mxu0 0.0
    %4271 = vmatprep.mubr.f32.mxu0 0.0
    %4272 = vmatmul.mubr.f32.gmra.mrb[0].mxu0 %v4184
    %v4273 = vpop.f32.mrb[0].mxu0
    %v4274 = vadd.f32 0.0, %v4273
    %v4275 = vpop.f32.mrb[0].mxu0
    %4276 = vmatprep.mubr.f32.mxu0 0.0
    %4277 = vmatmul.mubr.f32.gmra.mrb[0].mxu0 %v4187
    %v4278 = vpop.f32.mrb[0].mxu0
    %v4279 = vadd.f32 0.0, %v4278
    %v4280 = vpop.f32.mrb[0].mxu0
    %4281 = vmatprep.mubr.f32.mxu0 0.0
    %4282 = vmatmul.mubr.f32.gmra.mrb[0].mxu0 %v4190
    %v4283 = vpop.f32.mrb[0].mxu0
    %v4284 = vadd.f32 0.0, %v4283
    %v4285 = vpop.f32.mrb[0].mxu0
    %4286 = vmatprep.mubr.f32.mxu0 0.0
    %4287 = vmatmul.mubr.f32.gmra.mrb[0].mxu0 %v4193
    %v4288 = vpop.f32.mrb[0].mxu0
    %v4289 = vadd.f32 0.0, %v4288
    %v4290 = vpop.f32.mrb[0].mxu0
    %4291 = vmatprep.mubr.f32.mxu0 0.0
    %4292 = vmatmul.mubr.f32.gmra.mrb[0].mxu0 %v4196
    %v4293 = vpop.f32.mrb[0].mxu0
    %v4294 = vadd.f32 0.0, %v4293
    %v4295 = vpop.f32.mrb[0].mxu0
    %4296 = vmatprep.mubr.f32.mxu0 0.0
    %4297 = vmatmul.mubr.f32.gmra.mrb[0].mxu0 %v4199
    %v4298 = vpop.f32.mrb[0].mxu0
    %v4299 = vadd.f32 0.0, %v4298
    %v4300 = vpop.f32.mrb[0].mxu0
    %4301 = vmatprep.mubr.f32.mxu0 0.0
    %4302 = vmatmul.mubr.f32.gmra.mrb[0].mxu0 %v4202
    %v4303 = vpop.f32.mrb[0].mxu0
    %v4304 = vadd.f32 0.0, %v4303
    %v4305 = vpop.f32.mrb[0].mxu0
    %4306 = vmatprep.mubr.f32.mxu0 0.0
    %4307 = vmatmul.mubr.f32.gmra.mrb[0].mxu0 %v4205
    %v4308 = vpop.f32.mrb[0].mxu0
    %v4309 = vadd.f32 0.0, %v4308
    %v4310 = vpop.f32.mrb[0].mxu0
    %4311 = vdwg.mxu0
    %v4312 = vsub.f32 %v1667, %v4274
    %v4313 = vsub.f32 %v1668, %v4279
    %v4314 = vsub.f32 %v1669, %v4284
    %v4315 = vsub.f32 %v1670, %v4289
    %v4316 = vsub.f32 %v1671, %v4294
    %v4317 = vsub.f32 %v1672, %v4299
    %v4318 = vsub.f32 %v1673, %v4304
    %v4319 = vsub.f32 %v1674, %v4309
    %4320 = vmatprep.subr.mxu0 0.0
    %4321 = vmatpush1.msra.mxu0 %v4312
    %4322 = vmatprep.subr.mxu0 0.0
    %4323 = vmatpush1.msra.mxu0 %v4313
    %4324 = vmatprep.subr.mxu0 0.0
    %4325 = vmatpush1.msra.mxu0 %v4314
    %4326 = vmatprep.subr.mxu0 0.0
    %4327 = vmatpush1.msra.mxu0 %v4315
    %4328 = vmatprep.subr.mxu0 0.0
    %4329 = vmatpush1.msra.mxu0 %v4316
    %4330 = vmatprep.subr.mxu0 0.0
    %4331 = vmatpush1.msra.mxu0 %v4317
    %4332 = vmatprep.subr.mxu0 0.0
    %4333 = vmatpush1.msra.mxu0 %v4318
    %4334 = vmatprep.subr.mxu0 0.0
    %4335 = vmatpush1.msra.mxu0 %v4319
    %4336 = vmatprep.subr.mxu0 0.0
    %4337 = vmatpush1.msra.mxu0 0.0
    %4338 = vmatprep.subr.mxu0 0.0
    %4339 = vmatpush1.msra.mxu0 0.0
    %4340 = vmatprep.subr.mxu0 0.0
    %4341 = vmatpush1.msra.mxu0 0.0
    %4342 = vmatprep.subr.mxu0 0.0
    %4343 = vmatpush1.msra.mxu0 0.0
    %4344 = vmatprep.subr.mxu0 0.0
    %4345 = vmatpush1.msra.mxu0 0.0
    %4346 = vmatprep.subr.mxu0 0.0
    %4347 = vmatpush1.msra.mxu0 0.0
    %4348 = vmatprep.subr.mxu0 0.0
    %4349 = vmatpush1.msra.mxu0 0.0
    %4350 = vmatprep.subr.mxu0 0.0
    %4351 = vmatpush1.msra.mxu0 0.0
    %4352 = vmatprep.subr.mxu0 0.0
    %4353 = vmatpush1.msra.mxu0 0.0
    %4354 = vmatprep.subr.mxu0 0.0
    %4355 = vmatpush1.msra.mxu0 0.0
    %4356 = vmatprep.subr.mxu0 0.0
    %4357 = vmatpush1.msra.mxu0 0.0
    %4358 = vmatprep.subr.mxu0 0.0
    %4359 = vmatpush1.msra.mxu0 0.0
    %4360 = vmatprep.subr.mxu0 0.0
    %4361 = vmatpush1.msra.mxu0 0.0
    %4362 = vmatprep.subr.mxu0 0.0
    %4363 = vmatpush1.msra.mxu0 0.0
    %4364 = vmatprep.subr.mxu0 0.0
    %4365 = vmatpush1.msra.mxu0 0.0
    %4366 = vmatprep.subr.mxu0 0.0
    %4367 = vmatpush1.msra.mxu0 0.0
    %4368 = vmatprep.subr.mxu0 0.0
    %4369 = vmatpush1.msra.mxu0 0.0
    %4370 = vmatprep.subr.mxu0 0.0
    %4371 = vmatpush1.msra.mxu0 0.0
    %4372 = vmatprep.subr.mxu0 0.0
    %4373 = vmatpush1.msra.mxu0 0.0
    %4374 = vmatprep.subr.mxu0 0.0
    %4375 = vmatpush1.msra.mxu0 0.0
    %4376 = vmatprep.subr.mxu0 0.0
    %4377 = vmatpush1.msra.mxu0 0.0
    %4378 = vmatprep.subr.mxu0 0.0
    %4379 = vmatpush1.msra.mxu0 0.0
    %4380 = vmatprep.subr.mxu0 0.0
    %4381 = vmatpush1.msra.mxu0 0.0
    %4382 = vmatprep.subr.mxu0 0.0
    %4383 = vmatpush1.msra.mxu0 0.0
    %4384 = vmatprep.mubr.f32.mxu0 0.0
    %4385 = vmatmul.mubr.f32.gmra.mrb[0].mxu0 %v4184
    %v4386 = vpop.f32.mrb[0].mxu0
    %v4387 = vadd.f32 0.0, %v4386
    %v4388 = vpop.f32.mrb[0].mxu0
    %4389 = vmatprep.mubr.f32.mxu0 0.0
    %4390 = vmatmul.mubr.f32.gmra.mrb[0].mxu0 %v4187
    %v4391 = vpop.f32.mrb[0].mxu0
    %v4392 = vadd.f32 0.0, %v4391
    %v4393 = vpop.f32.mrb[0].mxu0
    %4394 = vmatprep.mubr.f32.mxu0 0.0
    %4395 = vmatmul.mubr.f32.gmra.mrb[0].mxu0 %v4190
    %v4396 = vpop.f32.mrb[0].mxu0
    %v4397 = vadd.f32 0.0, %v4396
    %v4398 = vpop.f32.mrb[0].mxu0
    %4399 = vmatprep.mubr.f32.mxu0 0.0
    %4400 = vmatmul.mubr.f32.gmra.mrb[0].mxu0 %v4193
    %v4401 = vpop.f32.mrb[0].mxu0
    %v4402 = vadd.f32 0.0, %v4401
    %v4403 = vpop.f32.mrb[0].mxu0
    %4404 = vmatprep.mubr.f32.mxu0 0.0
    %4405 = vmatmul.mubr.f32.gmra.mrb[0].mxu0 %v4196
    %v4406 = vpop.f32.mrb[0].mxu0
    %v4407 = vadd.f32 0.0, %v4406
    %v4408 = vpop.f32.mrb[0].mxu0
    %4409 = vmatprep.mubr.f32.mxu0 0.0
    %4410 = vmatmul.mubr.f32.gmra.mrb[0].mxu0 %v4199
    %v4411 = vpop.f32.mrb[0].mxu0
    %v4412 = vadd.f32 0.0, %v4411
    %v4413 = vpop.f32.mrb[0].mxu0
    %4414 = vmatprep.mubr.f32.mxu0 0.0
    %4415 = vmatmul.mubr.f32.gmra.mrb[0].mxu0 %v4202
    %v4416 = vpop.f32.mrb[0].mxu0
    %v4417 = vadd.f32 0.0, %v4416
    %v4418 = vpop.f32.mrb[0].mxu0
    %4419 = vmatprep.mubr.f32.mxu0 0.0
    %4420 = vmatmul.mubr.f32.gmra.mrb[0].mxu0 %v4205
    %v4421 = vpop.f32.mrb[0].mxu0
    %v4422 = vadd.f32 0.0, %v4421
    %v4423 = vpop.f32.mrb[0].mxu0
    %4424 = vdwg.mxu0
    %v4425 = vsub.f32 %v1812, %v4387
    %v4426 = vsub.f32 %v1813, %v4392
    %v4427 = vsub.f32 %v1814, %v4397
    %v4428 = vsub.f32 %v1815, %v4402
    %v4429 = vsub.f32 %v1816, %v4407
    %v4430 = vsub.f32 %v1817, %v4412
    %v4431 = vsub.f32 %v1818, %v4417
    %v4432 = vsub.f32 %v1819, %v4422
    %v4434 = vsel %vm791, %v4062, 0
    %v4437 = vsel %vm791, %v4063, 0
    %v4440 = vsel %vm791, %v4064, 0
    %v4443 = vsel %vm791, %v4065, 0
    %v4446 = vsel %vm791, %v4066, 0
    %v4449 = vsel %vm791, %v4067, 0
    %v4452 = vsel %vm791, %v4068, 0
    %v4455 = vsel %vm791, %v4069, 0
    %4457 = vmatprep.subr.mxu0 0.0
    %4458 = vmatpush1.msra.mxu0 %v4425
    %4459 = vmatprep.subr.mxu0 0.0
    %4460 = vmatpush1.msra.mxu0 %v4426
    %4461 = vmatprep.subr.mxu0 0.0
    %4462 = vmatpush1.msra.mxu0 %v4427
    %4463 = vmatprep.subr.mxu0 0.0
    %4464 = vmatpush1.msra.mxu0 %v4428
    %4465 = vmatprep.subr.mxu0 0.0
    %4466 = vmatpush1.msra.mxu0 %v4429
    %4467 = vmatprep.subr.mxu0 0.0
    %4468 = vmatpush1.msra.mxu0 %v4430
    %4469 = vmatprep.subr.mxu0 0.0
    %4470 = vmatpush1.msra.mxu0 %v4431
    %4471 = vmatprep.subr.mxu0 0.0
    %4472 = vmatpush1.msra.mxu0 %v4432
    %4473 = vmatprep.subr.mxu0 0.0
    %4474 = vmatpush1.msra.mxu0 0.0
    %4475 = vmatprep.subr.mxu0 0.0
    %4476 = vmatpush1.msra.mxu0 0.0
    %4477 = vmatprep.subr.mxu0 0.0
    %4478 = vmatpush1.msra.mxu0 0.0
    %4479 = vmatprep.subr.mxu0 0.0
    %4480 = vmatpush1.msra.mxu0 0.0
    %4481 = vmatprep.subr.mxu0 0.0
    %4482 = vmatpush1.msra.mxu0 0.0
    %4483 = vmatprep.subr.mxu0 0.0
    %4484 = vmatpush1.msra.mxu0 0.0
    %4485 = vmatprep.subr.mxu0 0.0
    %4486 = vmatpush1.msra.mxu0 0.0
    %4487 = vmatprep.subr.mxu0 0.0
    %4488 = vmatpush1.msra.mxu0 0.0
    %4489 = vmatprep.subr.mxu0 0.0
    %4490 = vmatpush1.msra.mxu0 0.0
    %4491 = vmatprep.subr.mxu0 0.0
    %4492 = vmatpush1.msra.mxu0 0.0
    %4493 = vmatprep.subr.mxu0 0.0
    %4494 = vmatpush1.msra.mxu0 0.0
    %4495 = vmatprep.subr.mxu0 0.0
    %4496 = vmatpush1.msra.mxu0 0.0
    %4497 = vmatprep.subr.mxu0 0.0
    %4498 = vmatpush1.msra.mxu0 0.0
    %4499 = vmatprep.subr.mxu0 0.0
    %4500 = vmatpush1.msra.mxu0 0.0
    %4501 = vmatprep.subr.mxu0 0.0
    %4502 = vmatpush1.msra.mxu0 0.0
    %4503 = vmatprep.subr.mxu0 0.0
    %4504 = vmatpush1.msra.mxu0 0.0
    %4505 = vmatprep.subr.mxu0 0.0
    %4506 = vmatpush1.msra.mxu0 0.0
    %4507 = vmatprep.subr.mxu0 0.0
    %4508 = vmatpush1.msra.mxu0 0.0
    %4509 = vmatprep.subr.mxu0 0.0
    %4510 = vmatpush1.msra.mxu0 0.0
    %4511 = vmatprep.subr.mxu0 0.0
    %4512 = vmatpush1.msra.mxu0 0.0
    %4513 = vmatprep.subr.mxu0 0.0
    %4514 = vmatpush1.msra.mxu0 0.0
    %4515 = vmatprep.subr.mxu0 0.0
    %4516 = vmatpush1.msra.mxu0 0.0
    %4517 = vmatprep.subr.mxu0 0.0
    %4518 = vmatpush1.msra.mxu0 0.0
    %4519 = vmatprep.subr.mxu0 0.0
    %4520 = vmatpush1.msra.mxu0 0.0
    %4521 = vmatprep.mubr.f32.mxu0 0.0
    %4522 = vmatmul.mubr.f32.gmra.mrb[0].mxu0 %v4434
    %v4523 = vpop.f32.mrb[0].mxu0
    %v4524 = vadd.f32 0.0, %v4523
    %v4525 = vpop.f32.mrb[0].mxu0
    %4526 = vmatprep.mubr.f32.mxu0 0.0
    %4527 = vmatmul.mubr.f32.gmra.mrb[0].mxu0 %v4437
    %v4528 = vpop.f32.mrb[0].mxu0
    %v4529 = vadd.f32 0.0, %v4528
    %v4530 = vpop.f32.mrb[0].mxu0
    %4531 = vmatprep.mubr.f32.mxu0 0.0
    %4532 = vmatmul.mubr.f32.gmra.mrb[0].mxu0 %v4440
    %v4533 = vpop.f32.mrb[0].mxu0
    %v4534 = vadd.f32 0.0, %v4533
    %v4535 = vpop.f32.mrb[0].mxu0
    %4536 = vmatprep.mubr.f32.mxu0 0.0
    %4537 = vmatmul.mubr.f32.gmra.mrb[0].mxu0 %v4443
    %v4538 = vpop.f32.mrb[0].mxu0
    %v4539 = vadd.f32 0.0, %v4538
    %v4540 = vpop.f32.mrb[0].mxu0
    %4541 = vmatprep.mubr.f32.mxu0 0.0
    %4542 = vmatmul.mubr.f32.gmra.mrb[0].mxu0 %v4446
    %v4543 = vpop.f32.mrb[0].mxu0
    %v4544 = vadd.f32 0.0, %v4543
    %v4545 = vpop.f32.mrb[0].mxu0
    %4546 = vmatprep.mubr.f32.mxu0 0.0
    %4547 = vmatmul.mubr.f32.gmra.mrb[0].mxu0 %v4449
    %v4548 = vpop.f32.mrb[0].mxu0
    %v4549 = vadd.f32 0.0, %v4548
    %v4550 = vpop.f32.mrb[0].mxu0
    %4551 = vmatprep.mubr.f32.mxu0 0.0
    %4552 = vmatmul.mubr.f32.gmra.mrb[0].mxu0 %v4452
    %v4553 = vpop.f32.mrb[0].mxu0
    %v4554 = vadd.f32 0.0, %v4553
    %v4555 = vpop.f32.mrb[0].mxu0
    %4556 = vmatprep.mubr.f32.mxu0 0.0
    %4557 = vmatmul.mubr.f32.gmra.mrb[0].mxu0 %v4455
    %v4558 = vpop.f32.mrb[0].mxu0
    %v4559 = vadd.f32 0.0, %v4558
    %v4560 = vpop.f32.mrb[0].mxu0
    %4561 = vdwg.mxu0
    %v4562 = vmul.f32 %v4524, 0.25
    %v4563 = vmul.f32 %v4529, 0.25
    %v4564 = vmul.f32 %v4534, 0.25
    %v4565 = vmul.f32 %v4539, 0.25
    %v4566 = vmul.f32 %v4544, 0.25
    %v4567 = vmul.f32 %v4549, 0.25
    %v4568 = vmul.f32 %v4554, 0.25
    %v4569 = vmul.f32 %v4559, 0.25
    %v4571 = vsel %vm791, %v952, 0
    %v4574 = vsel %vm791, %v953, 0
    %v4577 = vsel %vm791, %v954, 0
    %v4580 = vsel %vm791, %v955, 0
    %v4583 = vsel %vm791, %v956, 0
    %v4586 = vsel %vm791, %v957, 0
    %v4589 = vsel %vm791, %v958, 0
    %v4592 = vsel %vm791, %v959, 0
    %v4595 = vsel %vm791, %v960, 0
    %v4598 = vsel %vm791, %v961, 0
    %v4601 = vsel %vm791, %v962, 0
    %v4604 = vsel %vm791, %v963, 0
    %v4607 = vsel %vm791, %v964, 0
    %v4610 = vsel %vm791, %v965, 0
    %v4613 = vsel %vm791, %v966, 0
    %v4616 = vsel %vm791, %v967, 0
    %4618 = vmatprep.subr.mxu0 0.0
    %4619 = vmatpush1.msra.mxu0 %v4562
    %4620 = vmatprep.subr.mxu0 0.0
    %4621 = vmatpush1.msra.mxu0 %v4563
    %4622 = vmatprep.subr.mxu0 0.0
    %4623 = vmatpush1.msra.mxu0 %v4564
    %4624 = vmatprep.subr.mxu0 0.0
    %4625 = vmatpush1.msra.mxu0 %v4565
    %4626 = vmatprep.subr.mxu0 0.0
    %4627 = vmatpush1.msra.mxu0 %v4566
    %4628 = vmatprep.subr.mxu0 0.0
    %4629 = vmatpush1.msra.mxu0 %v4567
    %4630 = vmatprep.subr.mxu0 0.0
    %4631 = vmatpush1.msra.mxu0 %v4568
    %4632 = vmatprep.subr.mxu0 0.0
    %4633 = vmatpush1.msra.mxu0 %v4569
    %4634 = vmatprep.subr.mxu0 0.0
    %4635 = vmatpush1.msra.mxu0 0.0
    %4636 = vmatprep.subr.mxu0 0.0
    %4637 = vmatpush1.msra.mxu0 0.0
    %4638 = vmatprep.subr.mxu0 0.0
    %4639 = vmatpush1.msra.mxu0 0.0
    %4640 = vmatprep.subr.mxu0 0.0
    %4641 = vmatpush1.msra.mxu0 0.0
    %4642 = vmatprep.subr.mxu0 0.0
    %4643 = vmatpush1.msra.mxu0 0.0
    %4644 = vmatprep.subr.mxu0 0.0
    %4645 = vmatpush1.msra.mxu0 0.0
    %4646 = vmatprep.subr.mxu0 0.0
    %4647 = vmatpush1.msra.mxu0 0.0
    %4648 = vmatprep.subr.mxu0 0.0
    %4649 = vmatpush1.msra.mxu0 0.0
    %4650 = vmatprep.subr.mxu0 0.0
    %4651 = vmatpush1.msra.mxu0 0.0
    %4652 = vmatprep.subr.mxu0 0.0
    %4653 = vmatpush1.msra.mxu0 0.0
    %4654 = vmatprep.subr.mxu0 0.0
    %4655 = vmatpush1.msra.mxu0 0.0
    %4656 = vmatprep.subr.mxu0 0.0
    %4657 = vmatpush1.msra.mxu0 0.0
    %4658 = vmatprep.subr.mxu0 0.0
    %4659 = vmatpush1.msra.mxu0 0.0
    %4660 = vmatprep.subr.mxu0 0.0
    %4661 = vmatpush1.msra.mxu0 0.0
    %4662 = vmatprep.subr.mxu0 0.0
    %4663 = vmatpush1.msra.mxu0 0.0
    %4664 = vmatprep.subr.mxu0 0.0
    %4665 = vmatpush1.msra.mxu0 0.0
    %4666 = vmatprep.subr.mxu0 0.0
    %4667 = vmatpush1.msra.mxu0 0.0
    %4668 = vmatprep.subr.mxu0 0.0
    %4669 = vmatpush1.msra.mxu0 0.0
    %4670 = vmatprep.subr.mxu0 0.0
    %4671 = vmatpush1.msra.mxu0 0.0
    %4672 = vmatprep.subr.mxu0 0.0
    %4673 = vmatpush1.msra.mxu0 0.0
    %4674 = vmatprep.subr.mxu0 0.0
    %4675 = vmatpush1.msra.mxu0 0.0
    %4676 = vmatprep.subr.mxu0 0.0
    %4677 = vmatpush1.msra.mxu0 0.0
    %4678 = vmatprep.subr.mxu0 0.0
    %4679 = vmatpush1.msra.mxu0 0.0
    %4680 = vmatprep.subr.mxu0 0.0
    %4681 = vmatpush1.msra.mxu0 0.0
    %4682 = vmatprep.mubr.f32.mxu0 0.0
    %4683 = vmatmul.mubr.f32.gmra.mrb[0].mxu0 %v4571
    %v4684 = vpop.f32.mrb[0].mxu0
    %v4685 = vadd.f32 0.0, %v4684
    %v4686 = vpop.f32.mrb[0].mxu0
    %4687 = vmatprep.mubr.f32.mxu0 0.0
    %4688 = vmatmul.mubr.f32.gmra.mrb[0].mxu0 %v4574
    %v4689 = vpop.f32.mrb[0].mxu0
    %v4690 = vadd.f32 0.0, %v4689
    %v4691 = vpop.f32.mrb[0].mxu0
    %4692 = vmatprep.mubr.f32.mxu0 0.0
    %4693 = vmatmul.mubr.f32.gmra.mrb[0].mxu0 %v4577
    %v4694 = vpop.f32.mrb[0].mxu0
    %v4695 = vadd.f32 0.0, %v4694
    %v4696 = vpop.f32.mrb[0].mxu0
    %4697 = vmatprep.mubr.f32.mxu0 0.0
    %4698 = vmatmul.mubr.f32.gmra.mrb[0].mxu0 %v4580
    %v4699 = vpop.f32.mrb[0].mxu0
    %v4700 = vadd.f32 0.0, %v4699
    %v4701 = vpop.f32.mrb[0].mxu0
    %4702 = vmatprep.mubr.f32.mxu0 0.0
    %4703 = vmatmul.mubr.f32.gmra.mrb[0].mxu0 %v4583
    %v4704 = vpop.f32.mrb[0].mxu0
    %v4705 = vadd.f32 0.0, %v4704
    %v4706 = vpop.f32.mrb[0].mxu0
    %4707 = vmatprep.mubr.f32.mxu0 0.0
    %4708 = vmatmul.mubr.f32.gmra.mrb[0].mxu0 %v4586
    %v4709 = vpop.f32.mrb[0].mxu0
    %v4710 = vadd.f32 0.0, %v4709
    %v4711 = vpop.f32.mrb[0].mxu0
    %4712 = vmatprep.mubr.f32.mxu0 0.0
    %4713 = vmatmul.mubr.f32.gmra.mrb[0].mxu0 %v4589
    %v4714 = vpop.f32.mrb[0].mxu0
    %v4715 = vadd.f32 0.0, %v4714
    %v4716 = vpop.f32.mrb[0].mxu0
    %4717 = vmatprep.mubr.f32.mxu0 0.0
    %4718 = vmatmul.mubr.f32.gmra.mrb[0].mxu0 %v4592
    %v4719 = vpop.f32.mrb[0].mxu0
    %v4720 = vadd.f32 0.0, %v4719
    %v4721 = vpop.f32.mrb[0].mxu0
    %4722 = vmatprep.mubr.f32.mxu0 0.0
    %4723 = vmatmul.mubr.f32.gmra.mrb[0].mxu0 %v4595
    %v4724 = vpop.f32.mrb[0].mxu0
    %v4725 = vadd.f32 0.0, %v4724
    %v4726 = vpop.f32.mrb[0].mxu0
    %4727 = vmatprep.mubr.f32.mxu0 0.0
    %4728 = vmatmul.mubr.f32.gmra.mrb[0].mxu0 %v4598
    %v4729 = vpop.f32.mrb[0].mxu0
    %v4730 = vadd.f32 0.0, %v4729
    %v4731 = vpop.f32.mrb[0].mxu0
    %4732 = vmatprep.mubr.f32.mxu0 0.0
    %4733 = vmatmul.mubr.f32.gmra.mrb[0].mxu0 %v4601
    %v4734 = vpop.f32.mrb[0].mxu0
    %v4735 = vadd.f32 0.0, %v4734
    %v4736 = vpop.f32.mrb[0].mxu0
    %4737 = vmatprep.mubr.f32.mxu0 0.0
    %4738 = vmatmul.mubr.f32.gmra.mrb[0].mxu0 %v4604
    %v4739 = vpop.f32.mrb[0].mxu0
    %v4740 = vadd.f32 0.0, %v4739
    %v4741 = vpop.f32.mrb[0].mxu0
    %4742 = vmatprep.mubr.f32.mxu0 0.0
    %4743 = vmatmul.mubr.f32.gmra.mrb[0].mxu0 %v4607
    %v4744 = vpop.f32.mrb[0].mxu0
    %v4745 = vadd.f32 0.0, %v4744
    %v4746 = vpop.f32.mrb[0].mxu0
    %4747 = vmatprep.mubr.f32.mxu0 0.0
    %4748 = vmatmul.mubr.f32.gmra.mrb[0].mxu0 %v4610
    %v4749 = vpop.f32.mrb[0].mxu0
    %v4750 = vadd.f32 0.0, %v4749
    %v4751 = vpop.f32.mrb[0].mxu0
    %4752 = vmatprep.mubr.f32.mxu0 0.0
    %4753 = vmatmul.mubr.f32.gmra.mrb[0].mxu0 %v4613
    %v4754 = vpop.f32.mrb[0].mxu0
    %v4755 = vadd.f32 0.0, %v4754
    %v4756 = vpop.f32.mrb[0].mxu0
    %4757 = vmatprep.mubr.f32.mxu0 0.0
    %4758 = vmatmul.mubr.f32.gmra.mrb[0].mxu0 %v4616
    %v4759 = vpop.f32.mrb[0].mxu0
    %v4760 = vadd.f32 0.0, %v4759
    %v4761 = vpop.f32.mrb[0].mxu0
    %4762 = vdwg.mxu0
    %v4764 = vsel %vm791, %v4685, 0
    %v4767 = vsel %vm791, %v4690, 0
    %v4770 = vsel %vm791, %v4695, 0
    %v4773 = vsel %vm791, %v4700, 0
    %v4776 = vsel %vm791, %v4705, 0
    %v4779 = vsel %vm791, %v4710, 0
    %v4782 = vsel %vm791, %v4715, 0
    %v4785 = vsel %vm791, %v4720, 0
    %v4788 = vsel %vm791, %v4725, 0
    %v4791 = vsel %vm791, %v4730, 0
    %v4794 = vsel %vm791, %v4735, 0
    %v4797 = vsel %vm791, %v4740, 0
    %v4800 = vsel %vm791, %v4745, 0
    %v4803 = vsel %vm791, %v4750, 0
    %v4806 = vsel %vm791, %v4755, 0
    %v4809 = vsel %vm791, %v4760, 0
    %4811 = vmatprep.subr.mxu0 0.0
    %4812 = vmatpush1.msra.mxu0 %v1398
    %4813 = vmatprep.subr.mxu0 0.0
    %4814 = vmatpush1.msra.mxu0 %v1399
    %4815 = vmatprep.subr.mxu0 0.0
    %4816 = vmatpush1.msra.mxu0 %v1400
    %4817 = vmatprep.subr.mxu0 0.0
    %4818 = vmatpush1.msra.mxu0 %v1401
    %4819 = vmatprep.subr.mxu0 0.0
    %4820 = vmatpush1.msra.mxu0 %v1402
    %4821 = vmatprep.subr.mxu0 0.0
    %4822 = vmatpush1.msra.mxu0 %v1403
    %4823 = vmatprep.subr.mxu0 0.0
    %4824 = vmatpush1.msra.mxu0 %v1404
    %4825 = vmatprep.subr.mxu0 0.0
    %4826 = vmatpush1.msra.mxu0 %v1405
    %4827 = vmatprep.subr.mxu0 0.0
    %4828 = vmatpush1.msra.mxu0 0.0
    %4829 = vmatprep.subr.mxu0 0.0
    %4830 = vmatpush1.msra.mxu0 0.0
    %4831 = vmatprep.subr.mxu0 0.0
    %4832 = vmatpush1.msra.mxu0 0.0
    %4833 = vmatprep.subr.mxu0 0.0
    %4834 = vmatpush1.msra.mxu0 0.0
    %4835 = vmatprep.subr.mxu0 0.0
    %4836 = vmatpush1.msra.mxu0 0.0
    %4837 = vmatprep.subr.mxu0 0.0
    %4838 = vmatpush1.msra.mxu0 0.0
    %4839 = vmatprep.subr.mxu0 0.0
    %4840 = vmatpush1.msra.mxu0 0.0
    %4841 = vmatprep.subr.mxu0 0.0
    %4842 = vmatpush1.msra.mxu0 0.0
    %4843 = vmatprep.subr.mxu0 0.0
    %4844 = vmatpush1.msra.mxu0 0.0
    %4845 = vmatprep.subr.mxu0 0.0
    %4846 = vmatpush1.msra.mxu0 0.0
    %4847 = vmatprep.subr.mxu0 0.0
    %4848 = vmatpush1.msra.mxu0 0.0
    %4849 = vmatprep.subr.mxu0 0.0
    %4850 = vmatpush1.msra.mxu0 0.0
    %4851 = vmatprep.subr.mxu0 0.0
    %4852 = vmatpush1.msra.mxu0 0.0
    %4853 = vmatprep.subr.mxu0 0.0
    %4854 = vmatpush1.msra.mxu0 0.0
    %4855 = vmatprep.subr.mxu0 0.0
    %4856 = vmatpush1.msra.mxu0 0.0
    %4857 = vmatprep.subr.mxu0 0.0
    %4858 = vmatpush1.msra.mxu0 0.0
    %4859 = vmatprep.subr.mxu0 0.0
    %4860 = vmatpush1.msra.mxu0 0.0
    %4861 = vmatprep.subr.mxu0 0.0
    %4862 = vmatpush1.msra.mxu0 0.0
    %4863 = vmatprep.subr.mxu0 0.0
    %4864 = vmatpush1.msra.mxu0 0.0
    %4865 = vmatprep.subr.mxu0 0.0
    %4866 = vmatpush1.msra.mxu0 0.0
    %4867 = vmatprep.subr.mxu0 0.0
    %4868 = vmatpush1.msra.mxu0 0.0
    %4869 = vmatprep.subr.mxu0 0.0
    %4870 = vmatpush1.msra.mxu0 0.0
    %4871 = vmatprep.subr.mxu0 0.0
    %4872 = vmatpush1.msra.mxu0 0.0
    %4873 = vmatprep.subr.mxu0 0.0
    %4874 = vmatpush1.msra.mxu0 0.0
    %4875 = vmatprep.mubr.f32.mxu0 0.0
    %4876 = vmatmul.mubr.f32.gmra.mrb[0].mxu0 %v4764
    %v4877 = vpop.f32.mrb[0].mxu0
    %v4878 = vadd.f32 0.0, %v4877
    %v4879 = vpop.f32.mrb[0].mxu0
    %4880 = vmatprep.mubr.f32.mxu0 0.0
    %4881 = vmatmul.mubr.f32.gmra.mrb[0].mxu0 %v4767
    %v4882 = vpop.f32.mrb[0].mxu0
    %v4883 = vadd.f32 0.0, %v4882
    %v4884 = vpop.f32.mrb[0].mxu0
    %4885 = vmatprep.mubr.f32.mxu0 0.0
    %4886 = vmatmul.mubr.f32.gmra.mrb[0].mxu0 %v4770
    %v4887 = vpop.f32.mrb[0].mxu0
    %v4888 = vadd.f32 0.0, %v4887
    %v4889 = vpop.f32.mrb[0].mxu0
    %4890 = vmatprep.mubr.f32.mxu0 0.0
    %4891 = vmatmul.mubr.f32.gmra.mrb[0].mxu0 %v4773
    %v4892 = vpop.f32.mrb[0].mxu0
    %v4893 = vadd.f32 0.0, %v4892
    %v4894 = vpop.f32.mrb[0].mxu0
    %4895 = vmatprep.mubr.f32.mxu0 0.0
    %4896 = vmatmul.mubr.f32.gmra.mrb[0].mxu0 %v4776
    %v4897 = vpop.f32.mrb[0].mxu0
    %v4898 = vadd.f32 0.0, %v4897
    %v4899 = vpop.f32.mrb[0].mxu0
    %4900 = vmatprep.mubr.f32.mxu0 0.0
    %4901 = vmatmul.mubr.f32.gmra.mrb[0].mxu0 %v4779
    %v4902 = vpop.f32.mrb[0].mxu0
    %v4903 = vadd.f32 0.0, %v4902
    %v4904 = vpop.f32.mrb[0].mxu0
    %4905 = vmatprep.mubr.f32.mxu0 0.0
    %4906 = vmatmul.mubr.f32.gmra.mrb[0].mxu0 %v4782
    %v4907 = vpop.f32.mrb[0].mxu0
    %v4908 = vadd.f32 0.0, %v4907
    %v4909 = vpop.f32.mrb[0].mxu0
    %4910 = vmatprep.mubr.f32.mxu0 0.0
    %4911 = vmatmul.mubr.f32.gmra.mrb[0].mxu0 %v4785
    %v4912 = vpop.f32.mrb[0].mxu0
    %v4913 = vadd.f32 0.0, %v4912
    %v4914 = vpop.f32.mrb[0].mxu0
    %4915 = vmatprep.mubr.f32.mxu0 0.0
    %4916 = vmatmul.mubr.f32.gmra.mrb[0].mxu0 %v4788
    %v4917 = vpop.f32.mrb[0].mxu0
    %v4918 = vadd.f32 0.0, %v4917
    %v4919 = vpop.f32.mrb[0].mxu0
    %4920 = vmatprep.mubr.f32.mxu0 0.0
    %4921 = vmatmul.mubr.f32.gmra.mrb[0].mxu0 %v4791
    %v4922 = vpop.f32.mrb[0].mxu0
    %v4923 = vadd.f32 0.0, %v4922
    %v4924 = vpop.f32.mrb[0].mxu0
    %4925 = vmatprep.mubr.f32.mxu0 0.0
    %4926 = vmatmul.mubr.f32.gmra.mrb[0].mxu0 %v4794
    %v4927 = vpop.f32.mrb[0].mxu0
    %v4928 = vadd.f32 0.0, %v4927
    %v4929 = vpop.f32.mrb[0].mxu0
    %4930 = vmatprep.mubr.f32.mxu0 0.0
    %4931 = vmatmul.mubr.f32.gmra.mrb[0].mxu0 %v4797
    %v4932 = vpop.f32.mrb[0].mxu0
    %v4933 = vadd.f32 0.0, %v4932
    %v4934 = vpop.f32.mrb[0].mxu0
    %4935 = vmatprep.mubr.f32.mxu0 0.0
    %4936 = vmatmul.mubr.f32.gmra.mrb[0].mxu0 %v4800
    %v4937 = vpop.f32.mrb[0].mxu0
    %v4938 = vadd.f32 0.0, %v4937
    %v4939 = vpop.f32.mrb[0].mxu0
    %4940 = vmatprep.mubr.f32.mxu0 0.0
    %4941 = vmatmul.mubr.f32.gmra.mrb[0].mxu0 %v4803
    %v4942 = vpop.f32.mrb[0].mxu0
    %v4943 = vadd.f32 0.0, %v4942
    %v4944 = vpop.f32.mrb[0].mxu0
    %4945 = vmatprep.mubr.f32.mxu0 0.0
    %4946 = vmatmul.mubr.f32.gmra.mrb[0].mxu0 %v4806
    %v4947 = vpop.f32.mrb[0].mxu0
    %v4948 = vadd.f32 0.0, %v4947
    %v4949 = vpop.f32.mrb[0].mxu0
    %4950 = vmatprep.mubr.f32.mxu0 0.0
    %4951 = vmatmul.mubr.f32.gmra.mrb[0].mxu0 %v4809
    %v4952 = vpop.f32.mrb[0].mxu0
    %v4953 = vadd.f32 0.0, %v4952
    %v4954 = vpop.f32.mrb[0].mxu0
    %4955 = vdwg.mxu0
    %4956 = vst.msk [vmem:[%s13] sm:$0xff] %vm52, %v4878
    %4957 = vst.msk [vmem:[%s13 + $0x8] sm:$0xff] %vm52, %v4883
    %4958 = vst.msk [vmem:[%s13 + $0x10] sm:$0xff] %vm52, %v4888
    %4959 = vst.msk [vmem:[%s13 + $0x18] sm:$0xff] %vm52, %v4893
    %4960 = vst.msk [vmem:[%s13 + $0x20] sm:$0xff] %vm52, %v4898
    %4961 = vst.msk [vmem:[%s13 + $0x28] sm:$0xff] %vm52, %v4903
    %4962 = vst.msk [vmem:[%s13 + $0x30] sm:$0xff] %vm52, %v4908
    %4963 = vst.msk [vmem:[%s13 + $0x38] sm:$0xff] %vm52, %v4913
    %4964 = vst.msk [vmem:[%s13 + $0x40] sm:$0xff] %vm52, %v4918
    %4965 = vst.msk [vmem:[%s13 + $0x48] sm:$0xff] %vm52, %v4923
    %4966 = vst.msk [vmem:[%s13 + $0x50] sm:$0xff] %vm52, %v4928
    %4967 = vst.msk [vmem:[%s13 + $0x58] sm:$0xff] %vm52, %v4933
    %4968 = vst.msk [vmem:[%s13 + $0x60] sm:$0xff] %vm52, %v4938
    %4969 = vst.msk [vmem:[%s13 + $0x68] sm:$0xff] %vm52, %v4943
    %4970 = vst.msk [vmem:[%s13 + $0x70] sm:$0xff] %vm52, %v4948
    %4971 = vst.msk [vmem:[%s13 + $0x78] sm:$0xff] %vm52, %v4953
    %v4973 = vsel %vm52, %v1398, 0
    %v4976 = vsel %vm52, %v1399, 0
    %v4979 = vsel %vm52, %v1400, 0
    %v4982 = vsel %vm52, %v1401, 0
    %v4985 = vsel %vm52, %v1402, 0
    %v4988 = vsel %vm52, %v1403, 0
    %v4991 = vsel %vm52, %v1404, 0
    %v4994 = vsel %vm52, %v1405, 0
    %4996 = vmatprep.subr.mxu0 0.0
    %4997 = vmatpush1.msra.mxu0 %v310
    %4998 = vmatprep.subr.mxu0 0.0
    %4999 = vmatpush1.msra.mxu0 %v315
    %5000 = vmatprep.subr.mxu0 0.0
    %5001 = vmatpush1.msra.mxu0 %v320
    %5002 = vmatprep.subr.mxu0 0.0
    %5003 = vmatpush1.msra.mxu0 %v325
    %5004 = vmatprep.subr.mxu0 0.0
    %5005 = vmatpush1.msra.mxu0 0.0
    %5006 = vmatprep.subr.mxu0 0.0
    %5007 = vmatpush1.msra.mxu0 0.0
    %5008 = vmatprep.subr.mxu0 0.0
    %5009 = vmatpush1.msra.mxu0 0.0
    %5010 = vmatprep.subr.mxu0 0.0
    %5011 = vmatpush1.msra.mxu0 0.0
    %5012 = vmatprep.subr.mxu0 0.0
    %5013 = vmatpush1.msra.mxu0 0.0
    %5014 = vmatprep.subr.mxu0 0.0
    %5015 = vmatpush1.msra.mxu0 0.0
    %5016 = vmatprep.subr.mxu0 0.0
    %5017 = vmatpush1.msra.mxu0 0.0
    %5018 = vmatprep.subr.mxu0 0.0
    %5019 = vmatpush1.msra.mxu0 0.0
    %5020 = vmatprep.subr.mxu0 0.0
    %5021 = vmatpush1.msra.mxu0 0.0
    %5022 = vmatprep.subr.mxu0 0.0
    %5023 = vmatpush1.msra.mxu0 0.0
    %5024 = vmatprep.subr.mxu0 0.0
    %5025 = vmatpush1.msra.mxu0 0.0
    %5026 = vmatprep.subr.mxu0 0.0
    %5027 = vmatpush1.msra.mxu0 0.0
    %5028 = vmatprep.subr.mxu0 0.0
    %5029 = vmatpush1.msra.mxu0 0.0
    %5030 = vmatprep.subr.mxu0 0.0
    %5031 = vmatpush1.msra.mxu0 0.0
    %5032 = vmatprep.subr.mxu0 0.0
    %5033 = vmatpush1.msra.mxu0 0.0
    %5034 = vmatprep.subr.mxu0 0.0
    %5035 = vmatpush1.msra.mxu0 0.0
    %5036 = vmatprep.subr.mxu0 0.0
    %5037 = vmatpush1.msra.mxu0 0.0
    %5038 = vmatprep.subr.mxu0 0.0
    %5039 = vmatpush1.msra.mxu0 0.0
    %5040 = vmatprep.subr.mxu0 0.0
    %5041 = vmatpush1.msra.mxu0 0.0
    %5042 = vmatprep.subr.mxu0 0.0
    %5043 = vmatpush1.msra.mxu0 0.0
    %5044 = vmatprep.subr.mxu0 0.0
    %5045 = vmatpush1.msra.mxu0 0.0
    %5046 = vmatprep.subr.mxu0 0.0
    %5047 = vmatpush1.msra.mxu0 0.0
    %5048 = vmatprep.subr.mxu0 0.0
    %5049 = vmatpush1.msra.mxu0 0.0
    %5050 = vmatprep.subr.mxu0 0.0
    %5051 = vmatpush1.msra.mxu0 0.0
    %5052 = vmatprep.subr.mxu0 0.0
    %5053 = vmatpush1.msra.mxu0 0.0
    %5054 = vmatprep.subr.mxu0 0.0
    %5055 = vmatpush1.msra.mxu0 0.0
    %5056 = vmatprep.subr.mxu0 0.0
    %5057 = vmatpush1.msra.mxu0 0.0
    %5058 = vmatprep.subr.mxu0 0.0
    %5059 = vmatpush1.msra.mxu0 0.0
    %5060 = vmatprep.mubr.f32.mxu0 0.0
    %5061 = vmatmul.mubr.f32.gmra.mrb[0].mxu0 %v4973
    %v5062 = vpop.f32.mrb[0].mxu0
    %v5063 = vadd.f32 0.0, %v5062
    %v5064 = vpop.f32.mrb[0].mxu0
    %5065 = vmatprep.mubr.f32.mxu0 0.0
    %5066 = vmatmul.mubr.f32.gmra.mrb[0].mxu0 %v4976
    %v5067 = vpop.f32.mrb[0].mxu0
    %v5068 = vadd.f32 0.0, %v5067
    %v5069 = vpop.f32.mrb[0].mxu0
    %5070 = vmatprep.mubr.f32.mxu0 0.0
    %5071 = vmatmul.mubr.f32.gmra.mrb[0].mxu0 %v4979
    %v5072 = vpop.f32.mrb[0].mxu0
    %v5073 = vadd.f32 0.0, %v5072
    %v5074 = vpop.f32.mrb[0].mxu0
    %5075 = vmatprep.mubr.f32.mxu0 0.0
    %5076 = vmatmul.mubr.f32.gmra.mrb[0].mxu0 %v4982
    %v5077 = vpop.f32.mrb[0].mxu0
    %v5078 = vadd.f32 0.0, %v5077
    %v5079 = vpop.f32.mrb[0].mxu0
    %5080 = vmatprep.mubr.f32.mxu0 0.0
    %5081 = vmatmul.mubr.f32.gmra.mrb[0].mxu0 %v4985
    %v5082 = vpop.f32.mrb[0].mxu0
    %v5083 = vadd.f32 0.0, %v5082
    %v5084 = vpop.f32.mrb[0].mxu0
    %5085 = vmatprep.mubr.f32.mxu0 0.0
    %5086 = vmatmul.mubr.f32.gmra.mrb[0].mxu0 %v4988
    %v5087 = vpop.f32.mrb[0].mxu0
    %v5088 = vadd.f32 0.0, %v5087
    %v5089 = vpop.f32.mrb[0].mxu0
    %5090 = vmatprep.mubr.f32.mxu0 0.0
    %5091 = vmatmul.mubr.f32.gmra.mrb[0].mxu0 %v4991
    %v5092 = vpop.f32.mrb[0].mxu0
    %v5093 = vadd.f32 0.0, %v5092
    %v5094 = vpop.f32.mrb[0].mxu0
    %5095 = vmatprep.mubr.f32.mxu0 0.0
    %5096 = vmatmul.mubr.f32.gmra.mrb[0].mxu0 %v4994
    %v5097 = vpop.f32.mrb[0].mxu0
    %v5098 = vadd.f32 0.0, %v5097
    %v5099 = vpop.f32.mrb[0].mxu0
    %5100 = vdwg.mxu0
    %v5101 = vmul.f32 %v5063, %v328
    %v5102 = vmul.f32 %v5068, %v329
    %v5103 = vmul.f32 %v5073, %v330
    %v5104 = vmul.f32 %v5078, %v331
    %v5105 = vmul.f32 %v5083, %v332
    %v5106 = vmul.f32 %v5088, %v333
    %v5107 = vmul.f32 %v5093, %v334
    %v5108 = vmul.f32 %v5098, %v335
    %5109 = vmatprep.subr.mxu0 0.0
    %5110 = vmatpush1.msra.mxu0 %v5101
    %5111 = vmatprep.subr.mxu0 0.0
    %5112 = vmatpush1.msra.mxu0 %v5102
    %5113 = vmatprep.subr.mxu0 0.0
    %5114 = vmatpush1.msra.mxu0 %v5103
    %5115 = vmatprep.subr.mxu0 0.0
    %5116 = vmatpush1.msra.mxu0 %v5104
    %5117 = vmatprep.subr.mxu0 0.0
    %5118 = vmatpush1.msra.mxu0 %v5105
    %5119 = vmatprep.subr.mxu0 0.0
    %5120 = vmatpush1.msra.mxu0 %v5106
    %5121 = vmatprep.subr.mxu0 0.0
    %5122 = vmatpush1.msra.mxu0 %v5107
    %5123 = vmatprep.subr.mxu0 0.0
    %5124 = vmatpush1.msra.mxu0 %v5108
    %5125 = vmatprep.subr.mxu0 0.0
    %5126 = vmatpush1.msra.mxu0 0.0
    %5127 = vmatprep.subr.mxu0 0.0
    %5128 = vmatpush1.msra.mxu0 0.0
    %5129 = vmatprep.subr.mxu0 0.0
    %5130 = vmatpush1.msra.mxu0 0.0
    %5131 = vmatprep.subr.mxu0 0.0
    %5132 = vmatpush1.msra.mxu0 0.0
    %5133 = vmatprep.subr.mxu0 0.0
    %5134 = vmatpush1.msra.mxu0 0.0
    %5135 = vmatprep.subr.mxu0 0.0
    %5136 = vmatpush1.msra.mxu0 0.0
    %5137 = vmatprep.subr.mxu0 0.0
    %5138 = vmatpush1.msra.mxu0 0.0
    %5139 = vmatprep.subr.mxu0 0.0
    %5140 = vmatpush1.msra.mxu0 0.0
    %5141 = vmatprep.subr.mxu0 0.0
    %5142 = vmatpush1.msra.mxu0 0.0
    %5143 = vmatprep.subr.mxu0 0.0
    %5144 = vmatpush1.msra.mxu0 0.0
    %5145 = vmatprep.subr.mxu0 0.0
    %5146 = vmatpush1.msra.mxu0 0.0
    %5147 = vmatprep.subr.mxu0 0.0
    %5148 = vmatpush1.msra.mxu0 0.0
    %5149 = vmatprep.subr.mxu0 0.0
    %5150 = vmatpush1.msra.mxu0 0.0
    %5151 = vmatprep.subr.mxu0 0.0
    %5152 = vmatpush1.msra.mxu0 0.0
    %5153 = vmatprep.subr.mxu0 0.0
    %5154 = vmatpush1.msra.mxu0 0.0
    %5155 = vmatprep.subr.mxu0 0.0
    %5156 = vmatpush1.msra.mxu0 0.0
    %5157 = vmatprep.subr.mxu0 0.0
    %5158 = vmatpush1.msra.mxu0 0.0
    %5159 = vmatprep.subr.mxu0 0.0
    %5160 = vmatpush1.msra.mxu0 0.0
    %5161 = vmatprep.subr.mxu0 0.0
    %5162 = vmatpush1.msra.mxu0 0.0
    %5163 = vmatprep.subr.mxu0 0.0
    %5164 = vmatpush1.msra.mxu0 0.0
    %5165 = vmatprep.subr.mxu0 0.0
    %5166 = vmatpush1.msra.mxu0 0.0
    %5167 = vmatprep.subr.mxu0 0.0
    %5168 = vmatpush1.msra.mxu0 0.0
    %5169 = vmatprep.subr.mxu0 0.0
    %5170 = vmatpush1.msra.mxu0 0.0
    %5171 = vmatprep.subr.mxu0 0.0
    %5172 = vmatpush1.msra.mxu0 0.0
    %5173 = vmatprep.mubr.f32.mxu0 0.0
    %5174 = vmatmul.mubr.f32.gmra.mrb[0].mxu0 %v4764
    %v5175 = vpop.f32.mrb[0].mxu0
    %v5176 = vadd.f32 0.0, %v5175
    %v5177 = vpop.f32.mrb[0].mxu0
    %5178 = vmatprep.mubr.f32.mxu0 0.0
    %5179 = vmatmul.mubr.f32.gmra.mrb[0].mxu0 %v4767
    %v5180 = vpop.f32.mrb[0].mxu0
    %v5181 = vadd.f32 0.0, %v5180
    %v5182 = vpop.f32.mrb[0].mxu0
    %5183 = vmatprep.mubr.f32.mxu0 0.0
    %5184 = vmatmul.mubr.f32.gmra.mrb[0].mxu0 %v4770
    %v5185 = vpop.f32.mrb[0].mxu0
    %v5186 = vadd.f32 0.0, %v5185
    %v5187 = vpop.f32.mrb[0].mxu0
    %5188 = vmatprep.mubr.f32.mxu0 0.0
    %5189 = vmatmul.mubr.f32.gmra.mrb[0].mxu0 %v4773
    %v5190 = vpop.f32.mrb[0].mxu0
    %v5191 = vadd.f32 0.0, %v5190
    %v5192 = vpop.f32.mrb[0].mxu0
    %5193 = vmatprep.mubr.f32.mxu0 0.0
    %5194 = vmatmul.mubr.f32.gmra.mrb[0].mxu0 %v4776
    %v5195 = vpop.f32.mrb[0].mxu0
    %v5196 = vadd.f32 0.0, %v5195
    %v5197 = vpop.f32.mrb[0].mxu0
    %5198 = vmatprep.mubr.f32.mxu0 0.0
    %5199 = vmatmul.mubr.f32.gmra.mrb[0].mxu0 %v4779
    %v5200 = vpop.f32.mrb[0].mxu0
    %v5201 = vadd.f32 0.0, %v5200
    %v5202 = vpop.f32.mrb[0].mxu0
    %5203 = vmatprep.mubr.f32.mxu0 0.0
    %5204 = vmatmul.mubr.f32.gmra.mrb[0].mxu0 %v4782
    %v5205 = vpop.f32.mrb[0].mxu0
    %v5206 = vadd.f32 0.0, %v5205
    %v5207 = vpop.f32.mrb[0].mxu0
    %5208 = vmatprep.mubr.f32.mxu0 0.0
    %5209 = vmatmul.mubr.f32.gmra.mrb[0].mxu0 %v4785
    %v5210 = vpop.f32.mrb[0].mxu0
    %v5211 = vadd.f32 0.0, %v5210
    %v5212 = vpop.f32.mrb[0].mxu0
    %5213 = vmatprep.mubr.f32.mxu0 0.0
    %5214 = vmatmul.mubr.f32.gmra.mrb[0].mxu0 %v4788
    %v5215 = vpop.f32.mrb[0].mxu0
    %v5216 = vadd.f32 0.0, %v5215
    %v5217 = vpop.f32.mrb[0].mxu0
    %5218 = vmatprep.mubr.f32.mxu0 0.0
    %5219 = vmatmul.mubr.f32.gmra.mrb[0].mxu0 %v4791
    %v5220 = vpop.f32.mrb[0].mxu0
    %v5221 = vadd.f32 0.0, %v5220
    %v5222 = vpop.f32.mrb[0].mxu0
    %5223 = vmatprep.mubr.f32.mxu0 0.0
    %5224 = vmatmul.mubr.f32.gmra.mrb[0].mxu0 %v4794
    %v5225 = vpop.f32.mrb[0].mxu0
    %v5226 = vadd.f32 0.0, %v5225
    %v5227 = vpop.f32.mrb[0].mxu0
    %5228 = vmatprep.mubr.f32.mxu0 0.0
    %5229 = vmatmul.mubr.f32.gmra.mrb[0].mxu0 %v4797
    %v5230 = vpop.f32.mrb[0].mxu0
    %v5231 = vadd.f32 0.0, %v5230
    %v5232 = vpop.f32.mrb[0].mxu0
    %5233 = vmatprep.mubr.f32.mxu0 0.0
    %5234 = vmatmul.mubr.f32.gmra.mrb[0].mxu0 %v4800
    %v5235 = vpop.f32.mrb[0].mxu0
    %v5236 = vadd.f32 0.0, %v5235
    %v5237 = vpop.f32.mrb[0].mxu0
    %5238 = vmatprep.mubr.f32.mxu0 0.0
    %5239 = vmatmul.mubr.f32.gmra.mrb[0].mxu0 %v4803
    %v5240 = vpop.f32.mrb[0].mxu0
    %v5241 = vadd.f32 0.0, %v5240
    %v5242 = vpop.f32.mrb[0].mxu0
    %5243 = vmatprep.mubr.f32.mxu0 0.0
    %5244 = vmatmul.mubr.f32.gmra.mrb[0].mxu0 %v4806
    %v5245 = vpop.f32.mrb[0].mxu0
    %v5246 = vadd.f32 0.0, %v5245
    %v5247 = vpop.f32.mrb[0].mxu0
    %5248 = vmatprep.mubr.f32.mxu0 0.0
    %5249 = vmatmul.mubr.f32.gmra.mrb[0].mxu0 %v4809
    %v5250 = vpop.f32.mrb[0].mxu0
    %v5251 = vadd.f32 0.0, %v5250
    %v5252 = vpop.f32.mrb[0].mxu0
    %5253 = vdwg.mxu0
    %v5254 = vadd.f32 %v5176, %v5196
    %v5255 = vadd.f32 %v5181, %v5201
    %v5256 = vadd.f32 %v5186, %v5206
    %v5257 = vadd.f32 %v5191, %v5211
    %v5258 = vadd.f32 %v5254, %v5216
    %v5259 = vadd.f32 %v5255, %v5221
    %v5260 = vadd.f32 %v5256, %v5226
    %v5261 = vadd.f32 %v5257, %v5231
    %v5262 = vadd.f32 %v5258, %v5236
    %v5263 = vadd.f32 %v5259, %v5241
    %v5264 = vadd.f32 %v5260, %v5246
    %v5265 = vadd.f32 %v5261, %v5251
    %v5266 = vld [vmem:[%s4] sm:$0xff]
    %v5267 = vld [vmem:[%s4 + $0x8] sm:$0xff]
    %v5268 = vld [vmem:[%s4 + $0x10] sm:$0xff]
    %v5269 = vld [vmem:[%s4 + $0x18] sm:$0xff]
    %v5270 = vld [vmem:[%s5] sm:$0x1]
    %v5272 = vlaneseq
    %v5273 = vshrl.u32 %v5272, 7
    %v5274 = vsub.s32 0, %v5273
    %v5275 = vrot.slane %v5270, %v5274
    %v5278 = vsel %vm52, %v5262, 0
    %v5281 = vsel %vm52, %v5263, 0
    %v5284 = vsel %vm52, %v5264, 0
    %v5287 = vsel %vm52, %v5265, 0
    %5289 = vmatprep.subr.mxu0 0.0
    %5290 = vmatpush1.msra.mxu0 %v5266
    %5291 = vmatprep.subr.mxu0 0.0
    %5292 = vmatpush1.msra.mxu0 %v5267
    %5293 = vmatprep.subr.mxu0 0.0
    %5294 = vmatpush1.msra.mxu0 %v5268
    %5295 = vmatprep.subr.mxu0 0.0
    %5296 = vmatpush1.msra.mxu0 %v5269
    %5297 = vmatprep.subr.mxu0 0.0
    %5298 = vmatpush1.msra.mxu0 0.0
    %5299 = vmatprep.subr.mxu0 0.0
    %5300 = vmatpush1.msra.mxu0 0.0
    %5301 = vmatprep.subr.mxu0 0.0
    %5302 = vmatpush1.msra.mxu0 0.0
    %5303 = vmatprep.subr.mxu0 0.0
    %5304 = vmatpush1.msra.mxu0 0.0
    %5305 = vmatprep.subr.mxu0 0.0
    %5306 = vmatpush1.msra.mxu0 0.0
    %5307 = vmatprep.subr.mxu0 0.0
    %5308 = vmatpush1.msra.mxu0 0.0
    %5309 = vmatprep.subr.mxu0 0.0
    %5310 = vmatpush1.msra.mxu0 0.0
    %5311 = vmatprep.subr.mxu0 0.0
    %5312 = vmatpush1.msra.mxu0 0.0
    %5313 = vmatprep.subr.mxu0 0.0
    %5314 = vmatpush1.msra.mxu0 0.0
    %5315 = vmatprep.subr.mxu0 0.0
    %5316 = vmatpush1.msra.mxu0 0.0
    %5317 = vmatprep.subr.mxu0 0.0
    %5318 = vmatpush1.msra.mxu0 0.0
    %5319 = vmatprep.subr.mxu0 0.0
    %5320 = vmatpush1.msra.mxu0 0.0
    %5321 = vmatprep.subr.mxu0 0.0
    %5322 = vmatpush1.msra.mxu0 0.0
    %5323 = vmatprep.subr.mxu0 0.0
    %5324 = vmatpush1.msra.mxu0 0.0
    %5325 = vmatprep.subr.mxu0 0.0
    %5326 = vmatpush1.msra.mxu0 0.0
    %5327 = vmatprep.subr.mxu0 0.0
    %5328 = vmatpush1.msra.mxu0 0.0
    %5329 = vmatprep.subr.mxu0 0.0
    %5330 = vmatpush1.msra.mxu0 0.0
    %5331 = vmatprep.subr.mxu0 0.0
    %5332 = vmatpush1.msra.mxu0 0.0
    %5333 = vmatprep.subr.mxu0 0.0
    %5334 = vmatpush1.msra.mxu0 0.0
    %5335 = vmatprep.subr.mxu0 0.0
    %5336 = vmatpush1.msra.mxu0 0.0
    %5337 = vmatprep.subr.mxu0 0.0
    %5338 = vmatpush1.msra.mxu0 0.0
    %5339 = vmatprep.subr.mxu0 0.0
    %5340 = vmatpush1.msra.mxu0 0.0
    %5341 = vmatprep.subr.mxu0 0.0
    %5342 = vmatpush1.msra.mxu0 0.0
    %5343 = vmatprep.subr.mxu0 0.0
    %5344 = vmatpush1.msra.mxu0 0.0
    %5345 = vmatprep.subr.mxu0 0.0
    %5346 = vmatpush1.msra.mxu0 0.0
    %5347 = vmatprep.subr.mxu0 0.0
    %5348 = vmatpush1.msra.mxu0 0.0
    %5349 = vmatprep.subr.mxu0 0.0
    %5350 = vmatpush1.msra.mxu0 0.0
    %5351 = vmatprep.subr.mxu0 0.0
    %5352 = vmatpush1.msra.mxu0 0.0
    %5353 = vmatprep.mubr.f32.mxu0 0.0
    %5354 = vmatmul.mubr.f32.gmra.mrb[0].mxu0 %v5278
    %v5355 = vpop.f32.mrb[0].mxu0
    %v5356 = vadd.f32 %v5275, %v5355
    %v5357 = vpop.f32.mrb[0].mxu0
    %5358 = vmatprep.mubr.f32.mxu0 0.0
    %5359 = vmatmul.mubr.f32.gmra.mrb[0].mxu0 %v5281
    %v5360 = vpop.f32.mrb[0].mxu0
    %v5361 = vadd.f32 %v5275, %v5360
    %v5362 = vpop.f32.mrb[0].mxu0
    %5363 = vmatprep.mubr.f32.mxu0 0.0
    %5364 = vmatmul.mubr.f32.gmra.mrb[0].mxu0 %v5284
    %v5365 = vpop.f32.mrb[0].mxu0
    %v5366 = vadd.f32 %v5275, %v5365
    %v5367 = vpop.f32.mrb[0].mxu0
    %5368 = vmatprep.mubr.f32.mxu0 0.0
    %5369 = vmatmul.mubr.f32.gmra.mrb[0].mxu0 %v5287
    %v5370 = vpop.f32.mrb[0].mxu0
    %v5371 = vadd.f32 %v5275, %v5370
    %v5372 = vpop.f32.mrb[0].mxu0
    %5373 = vdwg.mxu0
    %5374 = vst.msk [vmem:[#allocation2] sm:$0xff] %vm52, %v5356
    %5375 = vst.msk [vmem:[#allocation2 + $0x8] sm:$0xff] %vm52, %v5361
    %5376 = vst.msk [vmem:[#allocation2 + $0x10] sm:$0xff] %vm52, %v5366
    %5377 = vst.msk [vmem:[#allocation2 + $0x18] sm:$0xff] %vm52, %v5371
    // Predicated region
    $region50: #{tpu_custom_call.1} parent=1 // pred_check
      _
    $region51: #{tpu_custom_call.1} parent=1 // pred_check_branch
      %5379 = sbr.rel (0) target = $region53
    $region52: #{tpu_custom_call.1} parent=1 // pred_region
      %s5381 = ssub.s32 512, 512
      %5382 = vsyncadd [#allocation3], %s5381
      %s5383 = sshll.u32 [#allocation2], 4
      %s5384 = int_to_ptr.vmem [resolvable:$true] %s5383
      %5389 = dma.vmem_to_hbm [thread:$0]  %s5384, 512, %s12, [#allocation3], 128, 128, 8
    $region53: #{tpu_custom_call.1} parent=1 // pred_fallthru
      _
    // Predicated region
    $region54: #{tpu_custom_call.1} parent=1 // pred_check
      _
    $region55: #{tpu_custom_call.1} parent=1 // pred_check_branch
      %5391 = sbr.rel (0) target = $region57
    $region56: #{tpu_custom_call.1} parent=1 // pred_region
      _
    $region57: #{tpu_custom_call.1} parent=1 // pred_fallthru
      _
    // Predicated region
    $region58: #{tpu_custom_call.1} parent=1 // pred_check
      _
    $region59: #{tpu_custom_call.1} parent=1 // pred_check_branch
      %5393 = sbr.rel (0) target = $region61
    $region60: #{tpu_custom_call.1} parent=1 // pred_region
      %5394 = dma.done [#allocation3], 512
    $region61: #{tpu_custom_call.1} parent=1 // pred_fallthru
      _
    // Predicated region
    $region62: #{tpu_custom_call.1} parent=1 // pred_check
      _
    $region63: #{tpu_custom_call.1} parent=1 // pred_check_branch
      %5396 = sbr.rel (0) target = $region65
    $region64: #{tpu_custom_call.1} parent=1 // pred_region
      _
    $region65: #{tpu_custom_call.1} parent=1 // pred_fallthru
      _
    %5397 = vsyncpa [#allocation3], 1

</llo_original>
